<compile_context>
chip_gen: v7x
topology: tpu7x:2x2x1
jax: 0.10.0
libtpu: 0.0.40
codegen_flags: <defaults>
</compile_context>

<pallas_src>
import functools

import jax
import jax.numpy as jnp
from jax.experimental import pallas as pl
from jax.experimental.pallas import tpu as pltpu

BN_EPS = 1e-5
PH = 6   # input row halo: |dr| <= 3 taps, evaluated on branch_2's extended row range (+-3)
PW = 8   # input col halo: only 3 needed; 8 makes the demo input row exactly 128 lanes


# ------------------------------ Pallas kernel -------------------------------

def _inception_kernel(x_ref, ws1_ref, w2b_ref, wm_ref, ep_ref, o_ref, *, H, W, Cout, th):
    """Fused Inception_Block forward for one (batch, row-tile) grid cell."""
    f32, bf16 = jnp.float32, jnp.bfloat16
    WC = W * Cout
    nrE, nrE2 = th + 2, th + 6          # branch rows needed by merge / by branch_2 stage 1
    h0 = pl.program_id(1) * th          # first output row of this tile (global coords)

    def affine(acc, lane0):
        # conv bias -> ReLU -> BatchNorm(eval), per output lane (= (w, channel) pair).
        n = acc.shape[-1]
        e = ep_ref[:, lane0:lane0 + n]                       # (3, n) f32
        return jnp.maximum(acc + e[0:1], 0.0) * e[1:2] + e[2:3]

    # --- stage 1: branch_1 | branch_2a | branch_3 | branch_4 in ONE matmul ----------
    # Row taps enter K via 7 row-shifted slabs (128-lane aligned concat); column taps
    # and the left/right 'same' zero borders live in the block-Toeplitz weight.
    xa = x_ref[pl.ds(h0, th + 2 * PH), :]                    # (th+12, Wp*Cin) bf16
    lhs1 = jnp.concatenate([xa[d:d + nrE2] for d in range(7)], axis=-1)
    y = affine(jnp.dot(lhs1, ws1_ref[...], preferred_element_type=f32), 0)
    # y: (nrE2, 4*WC); rows = image rows [h0-3, h0+th+3); lanes = [b1 | b2a | b3 | b4]

    # --- branch_2 second conv (5,1): 5 row taps folded into K ------------------------
    gi = jax.lax.broadcasted_iota(jnp.int32, (nrE2, 1), 0) + (h0 - 3)
    t = jnp.where((gi >= 0) & (gi < H), y[:, WC:2 * WC], 0.0).astype(bf16)
    lhs2 = jnp.concatenate([t[a:a + nrE] for a in range(5)], axis=-1)   # (nrE, 5*WC)
    b2 = affine(jnp.dot(lhs2, w2b_ref[...], preferred_element_type=f32), 4 * WC)

    # --- branch sums on rows [h0-1, h0+th+1); rows outside the image are zeroed
    #     (this is the merge conv's 'same' zero padding along H) ---------------------
    ge = jax.lax.broadcasted_iota(jnp.int32, (nrE, 1), 0) + (h0 - 1)
    oke = (ge >= 0) & (ge < H)
    s12 = jnp.where(oke, y[2:2 + nrE, 0:WC] + b2, 0.0).astype(bf16)
    s34 = jnp.where(oke, y[2:2 + nrE, 2 * WC:3 * WC] + y[2:2 + nrE, 3 * WC:4 * WC],
                    0.0).astype(bf16)

    # --- merge Depwise_Block (folded dw3x3 + pw) on cat(s12, s34): ONE matmul whose
    #     result is already the lane-dense (th, W*Cout) output block ------------------
    lhsm = jnp.concatenate(
        [p for a in range(3) for p in (s12[a:a + th], s34[a:a + th])], axis=-1)
    om = jnp.dot(lhsm, wm_ref[...], preferred_element_type=f32)          # (th, WC)
    o_ref[...] = affine(om, 5 * WC)


# --------------------------- weight / epilogue packing ---------------------------

def _taps3(d):
    return [(d * (a - 1), d * (b - 1)) for a in range(3) for b in range(3)]


def _conv_taps(w):
    # (Co, Ci, KH, KW) -> (KH*KW, Ci, Co); tap k = kh*KW + kw
    co, ci, kh, kw = w.shape
    return jnp.transpose(w, (2, 3, 1, 0)).reshape(kh * kw, ci, co)


def _depsep_fold(dw_w, dw_b, pw_w, pw_b):
    # Depthwise (Ci,1,3,3) then pointwise (Co,Ci,1,1) -> one (9, Ci, Co) weight + bias.
    # Exact: the reference Depwise_Block has no nonlinearity between the two convs.
    ci = dw_w.shape[0]
    dwr = jnp.transpose(dw_w[:, 0], (1, 2, 0)).reshape(9, ci)        # [k, ci]
    pwr = jnp.transpose(pw_w[:, :, 0, 0], (1, 0))                    # [ci, co]
    return dwr[:, :, None] * pwr[None, :, :], dw_b @ pwr + pw_b


def _bn_scale_shift(bn):
    s = bn['gamma'] / jnp.sqrt(bn['var'] + BN_EPS)
    return s, bn['beta'] - bn['mean'] * s


def _epilogue(bias, bn, W):
    # (3, W*Cout): rows [bias, BN scale, BN shift], each tiled across the W lane groups.
    s, t = _bn_scale_shift(bn)
    return jnp.stack([jnp.tile(bias, W), jnp.tile(s, W), jnp.tile(t, W)])


def _stage1_toeplitz(branch_taps, branch_w, Cin, Cout, W, Wp):
    """Width-unrolled weight of the fused first-stage convs.

    Rows: (dr+3, wi, ci)  -- matches the kernel's 7-slab LHS lane order.
    Cols: (branch, w, co) -- matches y's lane order.
    Entry W_b[tap (dr,dc)][ci,co] iff wi == w + dc + PW (also encodes 'same' borders).
    """
    wi = jnp.arange(Wp)[:, None]
    w = jnp.arange(W)[None, :]
    per_branch = []
    for taps, wt in zip(branch_taps, branch_w):
        blk = jnp.zeros((7, Wp, Cin, W, Cout), jnp.float32)
        for k, (dr, dc) in enumerate(taps):
            sel = (wi == w + dc + PW).astype(jnp.float32)                    # (Wp, W)
            blk = blk.at[dr + 3].add(sel[:, None, :, None] * wt[k][None, :, None, :])
        per_branch.append(blk)
    z = jnp.stack(per_branch, axis=3)                      # (7, Wp, Cin, 4, W, Cout)
    return z.reshape(7 * Wp * Cin, 4 * W * Cout)


def _conv51_toeplitz(w2b, Cout, W):
    # branch_2 (5,1) conv: rows (kh, w', ci), cols (w, co); column-preserving (w' == w).
    eye = jnp.eye(W, dtype=jnp.float32)
    z = eye[None, :, None, :, None] * w2b[:, None, :, None, :]    # (5, W, Ci, W, Co)
    return z.reshape(5 * W * Cout, W * Cout)


def _merge_toeplitz(wm_eff, Cout, W):
    # merge dw3x3+pw folded: rows (a, half, w', c'), cols (w, co); col taps b in {0,1,2}.
    wp_ = jnp.arange(W)[:, None]
    w = jnp.arange(W)[None, :]
    eb = jnp.stack([(wp_ == w + b - 1).astype(jnp.float32) for b in range(3)])  # (3,W,W)
    wm_r = wm_eff.reshape(3, 3, 2, Cout, Cout)                    # (a, b, half, c', co)
    z = jnp.einsum('bvw,abhco->ahvcwo', eb, wm_r)                 # (a, half, w', c', w, co)
    return z.reshape(6 * W * Cout, W * Cout)


# ------------------------------- JAX glue ------------------------------------

def inception_block_forward(params, x_nchw):
    N, Cin, H, W = x_nchw.shape
    p = params
    Cout = p['b1']['w'].shape[0]
    WC = W * Cout
    th = H if H <= 32 else (32 if H % 32 == 0 else (16 if H % 16 == 0 else
                            (8 if H % 8 == 0 else H)))
    Hp, Wp = H + 2 * PH, W + 2 * PW

    # Input: NCHW -> zero-padded, lane-dense (N, Hp, Wp*Cin) bf16 slab.
    x = jnp.transpose(x_nchw, (0, 2, 3, 1)).astype(jnp.float32)
    xp = jnp.pad(x, ((0, 0), (PH, PH), (PW, PW), (0, 0)))
    x2 = xp.reshape(N, Hp, Wp * Cin).astype(jnp.bfloat16)

    # Packed bf16 weights (fold done in f32) + one packed f32 epilogue table.
    w1 = _conv_taps(p['b1']['w'])
    w2a = _conv_taps(p['b2']['w1'])
    w2b = _conv_taps(p['b2']['w2'])
    w3, b3 = _depsep_fold(p['b3']['dw_w'], p['b3']['dw_b'], p['b3']['pw_w'], p['b3']['pw_b'])
    w4, b4 = _depsep_fold(p['b4']['dw_w'], p['b4']['dw_b'], p['b4']['pw_w'], p['b4']['pw_b'])
    wm, bm = _depsep_fold(p['merge']['dw_w'], p['merge']['dw_b'],
                          p['merge']['pw_w'], p['merge']['pw_b'])

    ws1 = _stage1_toeplitz(
        [_taps3(1), [(0, b - 2) for b in range(5)], _taps3(2), _taps3(3)],
        [w1, w2a, w3, w4], Cin, Cout, W, Wp).astype(jnp.bfloat16)
    w2b_t = _conv51_toeplitz(w2b, Cout, W).astype(jnp.bfloat16)
    wm_t = _merge_toeplitz(wm, Cout, W).astype(jnp.bfloat16)
    ep = jnp.concatenate([
        _epilogue(p['b1']['b'], p['b1']['bn'], W),
        _epilogue(p['b2']['b1'], p['b2']['bn1'], W),
        _epilogue(b3, p['b3']['bn'], W),
        _epilogue(b4, p['b4']['bn'], W),
        _epilogue(p['b2']['b2'], p['b2']['bn2'], W),
        _epilogue(bm, p['merge']['bn'], W),
    ], axis=1).astype(jnp.float32)                                   # (3, 6*W*Cout)

    kernel = functools.partial(_inception_kernel, H=H, W=W, Cout=Cout, th=th)
    out = pl.pallas_call(
        kernel,
        out_shape=jax.ShapeDtypeStruct((N, H, WC), jnp.float32),
        grid=(N, H // th),
        in_specs=[
            # Whole padded image per batch (tiny, lane-dense): resident across row tiles.
            pl.BlockSpec((None, Hp, Wp * Cin), lambda n, h: (n, 0, 0)),
            pl.BlockSpec((7 * Wp * Cin, 4 * WC), lambda n, h: (0, 0)),
            pl.BlockSpec((5 * WC, WC), lambda n, h: (0, 0)),
            pl.BlockSpec((6 * WC, WC), lambda n, h: (0, 0)),
            pl.BlockSpec((3, 6 * WC), lambda n, h: (0, 0)),
        ],
        out_specs=pl.BlockSpec((None, th, WC), lambda n, h: (n, h, 0)),
        compiler_params=pltpu.CompilerParams(
            dimension_semantics=("parallel", "parallel"),
            vmem_limit_bytes=64 * 1024 * 1024),
    )(x2, ws1, w2b_t, wm_t, ep)

    return jnp.transpose(out.reshape(N, H, W, Cout), (0, 3, 1, 2))   # back to NCHW


# --------------------------- pure-JAX f32 reference --------------------------

def _ref_conv(x, w, b, dil=1, groups=1):
    dn = jax.lax.conv_dimension_numbers(x.shape, w.shape, ('NCHW', 'OIHW', 'NCHW'))
    y = jax.lax.conv_general_dilated(
        x, w, window_strides=(1, 1), padding='SAME',
        rhs_dilation=(dil, dil), dimension_numbers=dn, feature_group_count=groups)
    return y + b[None, :, None, None]


def _ref_bn(x, bn):
    s, t = _bn_scale_shift(bn)
    return x * s[None, :, None, None] + t[None, :, None, None]


def inception_block_reference(params, x):
    p = params
    relu = lambda v: jnp.maximum(v, 0.0)

    def depwise(v, q, dil):
        y = _ref_conv(v, q['dw_w'], q['dw_b'], dil=dil, groups=v.shape[1])
        y = _ref_conv(y, q['pw_w'], q['pw_b'])
        return _ref_bn(relu(y), q['bn'])

    b1 = _ref_bn(relu(_ref_conv(x, p['b1']['w'], p['b1']['b'])), p['b1']['bn'])
    t = _ref_bn(relu(_ref_conv(x, p['b2']['w1'], p['b2']['b1'])), p['b2']['bn1'])
    b2 = _ref_bn(relu(_ref_conv(t, p['b2']['w2'], p['b2']['b2'])), p['b2']['bn2'])
    b3 = depwise(x, p['b3'], 2)
    b4 = depwise(x, p['b4'], 3)
    return depwise(jnp.concatenate([b1 + b2, b3 + b4], axis=1), p['merge'], 1)


# --------------------------- parameter construction --------------------------

def init_params(key, cin, cout):
    ks = iter(jax.random.split(key, 64))

    def conv(co, ci, kh, kw):
        return {'w': 0.15 * jax.random.normal(next(ks), (co, ci, kh, kw), jnp.float32),
                'b': 0.05 * jax.random.normal(next(ks), (co,), jnp.float32)}

    def bn(c):
        return {'gamma': 1.0 + 0.1 * jax.random.normal(next(ks), (c,), jnp.float32),
                'beta': 0.1 * jax.random.normal(next(ks), (c,), jnp.float32),
                'mean': 0.05 * jax.random.normal(next(ks), (c,), jnp.float32),
                'var': 1.0 + 0.1 * jax.random.uniform(next(ks), (c,), jnp.float32)}

    def depwise(ci, co):
        dw = conv(ci, 1, 3, 3)          # groups=ci -> (ci, 1, 3, 3)
        pw = conv(co, ci, 1, 1)
        return {'dw_w': dw['w'], 'dw_b': dw['b'],
                'pw_w': pw['w'], 'pw_b': pw['b'], 'bn': bn(co)}

    c1 = conv(cout, cin, 3, 3)
    c2a = conv(cout, cin, 1, 5)
    c2b = conv(cout, cout, 5, 1)
    return {
        'b1': {'w': c1['w'], 'b': c1['b'], 'bn': bn(cout)},
        'b2': {'w1': c2a['w'], 'b1': c2a['b'], 'bn1': bn(cout),
               'w2': c2b['w'], 'b2': c2b['b'], 'bn2': bn(cout)},
        'b3': depwise(cin, cout),       # dilation 2
        'b4': depwise(cin, cout),       # dilation 3
        'merge': depwise(2 * cout, cout),
    }


if __name__ == "__main__":
    key = jax.random.PRNGKey(0)
    kx, kp = jax.random.split(key)
    in_c, out_c = 4, 8
    x = jax.random.normal(kx, (2, in_c, 16, 16), jnp.float32)
    params = init_params(kp, in_c, out_c)

    out = jax.jit(inception_block_forward)(params, x)
    jax.block_until_ready(out)
    assert out.shape == (2, out_c, 16, 16), out.shape
    assert bool(jnp.all(jnp.isfinite(out))), "non-finite output"

    # Tolerance test vs. pure-f32 reference (kernel uses bf16 operands, f32 accumulation).
    ref = inception_block_reference(params, x)
    err = float(jnp.max(jnp.abs(out - ref)))
    assert err < 0.15, f"kernel deviates from f32 reference: max|diff|={err}"
    print("KERNEL_OK")
</pallas_src>

<mosaic_0001>
module attributes {stable_mosaic.version = 11 : i64} {
  func.func @_inception_kernel(%arg0: i32, %arg1: i32, %arg2: memref<1x28x128xbf16, #tpu.memory_space<vmem>>, %arg3: memref<896x512xbf16, #tpu.memory_space<vmem>>, %arg4: memref<640x128xbf16, #tpu.memory_space<vmem>>, %arg5: memref<768x128xbf16, #tpu.memory_space<vmem>>, %arg6: memref<3x768xf32, #tpu.memory_space<vmem>>, %arg7: memref<1x16x128xf32, #tpu.memory_space<vmem>>) attributes {dimension_semantics = [#tpu.dimension_semantics<parallel>, #tpu.dimension_semantics<parallel>], iteration_bounds = array<i64: 2, 1>, scalar_prefetch = 0 : i64, scratch_operands = 0 : i64, tpu.core_type = #tpu.core_type<tc>, window_params = [{transform_indices = @transform_0, window_bounds = array<i64: 1, 28, 128>}, {pipeline_mode = #tpu.pipeline_mode<synchronous>, transform_indices = @transform_1, window_bounds = array<i64: 896, 512>}, {pipeline_mode = #tpu.pipeline_mode<synchronous>, transform_indices = @transform_2, window_bounds = array<i64: 640, 128>}, {pipeline_mode = #tpu.pipeline_mode<synchronous>, transform_indices = @transform_3, window_bounds = array<i64: 768, 128>}, {pipeline_mode = #tpu.pipeline_mode<synchronous>, transform_indices = @transform_4, window_bounds = array<i64: 3, 768>}, {transform_indices = @transform_5, window_bounds = array<i64: 1, 16, 128>}]} {
    %c16_i32 = arith.constant 16 : i32
    %0 = arith.muli %arg1, %c16_i32 : i32
    %c0 = arith.constant 0 : index
    %1 = arith.index_cast %0 : i32 to index
    %c0_0 = arith.constant 0 : index
    %2 = vector.load %arg2[%c0, %1, %c0_0] : memref<1x28x128xbf16, #tpu.memory_space<vmem>>, vector<1x28x128xbf16>
    %3 = vector.shape_cast %2 : vector<1x28x128xbf16> to vector<28x128xbf16>
    %4 = vector.extract_strided_slice %3 {offsets = [0, 0], sizes = [22, 128], strides = [1, 1]} : vector<28x128xbf16> to vector<22x128xbf16>
    %5 = vector.extract_strided_slice %3 {offsets = [1, 0], sizes = [22, 128], strides = [1, 1]} : vector<28x128xbf16> to vector<22x128xbf16>
    %6 = vector.extract_strided_slice %3 {offsets = [2, 0], sizes = [22, 128], strides = [1, 1]} : vector<28x128xbf16> to vector<22x128xbf16>
    %7 = vector.extract_strided_slice %3 {offsets = [3, 0], sizes = [22, 128], strides = [1, 1]} : vector<28x128xbf16> to vector<22x128xbf16>
    %8 = vector.extract_strided_slice %3 {offsets = [4, 0], sizes = [22, 128], strides = [1, 1]} : vector<28x128xbf16> to vector<22x128xbf16>
    %9 = vector.extract_strided_slice %3 {offsets = [5, 0], sizes = [22, 128], strides = [1, 1]} : vector<28x128xbf16> to vector<22x128xbf16>
    %10 = vector.extract_strided_slice %3 {offsets = [6, 0], sizes = [22, 128], strides = [1, 1]} : vector<28x128xbf16> to vector<22x128xbf16>
    %11 = tpu.concatenate %4, %5, %6, %7, %8, %9, %10 in 1 : vector<22x128xbf16>, vector<22x128xbf16>, vector<22x128xbf16>, vector<22x128xbf16>, vector<22x128xbf16>, vector<22x128xbf16>, vector<22x128xbf16> -> vector<22x896xbf16>
    %c0_1 = arith.constant 0 : index
    %c0_2 = arith.constant 0 : index
    %12 = vector.load %arg3[%c0_1, %c0_2] : memref<896x512xbf16, #tpu.memory_space<vmem>>, vector<896x512xbf16>
    %cst = arith.constant dense<0.000000e+00> : vector<22x512xf32>
    %13 = tpu.matmul %11, %12, %cst {dimension_numbers = #tpu.dot_dimension_numbers<[1], [0], [0], [1], [0, 0, 1, 1], [], []>} : vector<22x896xbf16>, vector<896x512xbf16>, vector<22x512xf32> -> vector<22x512xf32>
    %c0_3 = arith.constant 0 : index
    %c0_4 = arith.constant 0 : index
    %14 = vector.load %arg6[%c0_3, %c0_4] : memref<3x768xf32, #tpu.memory_space<vmem>>, vector<3x512xf32>
    %15 = vector.extract_strided_slice %14 {offsets = [0, 0], sizes = [1, 512], strides = [1, 1]} : vector<3x512xf32> to vector<1x512xf32>
    %16 = vector.broadcast %15 : vector<1x512xf32> to vector<22x512xf32>
    %17 = arith.addf %13, %16 : vector<22x512xf32>
    %cst_5 = arith.constant 0.000000e+00 : f32
    %18 = vector.broadcast %cst_5 : f32 to vector<22x512xf32>
    %19 = arith.maximumf %17, %18 : vector<22x512xf32>
    %20 = vector.extract_strided_slice %14 {offsets = [1, 0], sizes = [1, 512], strides = [1, 1]} : vector<3x512xf32> to vector<1x512xf32>
    %21 = vector.broadcast %20 : vector<1x512xf32> to vector<22x512xf32>
    %22 = arith.mulf %19, %21 : vector<22x512xf32>
    %23 = vector.extract_strided_slice %14 {offsets = [2, 0], sizes = [1, 512], strides = [1, 1]} : vector<3x512xf32> to vector<1x512xf32>
    %24 = vector.broadcast %23 : vector<1x512xf32> to vector<22x512xf32>
    %25 = arith.addf %22, %24 : vector<22x512xf32>
    %26 = tpu.iota {dimensions = array<i32: 0>} : vector<22x1xi32>
    %c3_i32 = arith.constant 3 : i32
    %27 = arith.subi %0, %c3_i32 : i32
    %28 = vector.broadcast %27 : i32 to vector<22x1xi32>
    %29 = arith.addi %26, %28 : vector<22x1xi32>
    %c0_i32 = arith.constant 0 : i32
    %30 = vector.broadcast %c0_i32 : i32 to vector<22x1xi32>
    %31 = arith.cmpi sge, %29, %30 : vector<22x1xi32>
    %c16_i32_6 = arith.constant 16 : i32
    %32 = vector.broadcast %c16_i32_6 : i32 to vector<22x1xi32>
    %33 = arith.cmpi slt, %29, %32 : vector<22x1xi32>
    %34 = arith.andi %31, %33 : vector<22x1xi1>
    %35 = vector.extract_strided_slice %25 {offsets = [0, 128], sizes = [22, 128], strides = [1, 1]} : vector<22x512xf32> to vector<22x128xf32>
    %cst_7 = arith.constant 0.000000e+00 : f32
    %36 = vector.shape_cast %34 : vector<22x1xi1> to vector<22x1xi1>
    %37 = vector.broadcast %36 : vector<22x1xi1> to vector<22x128xi1>
    %38 = vector.broadcast %cst_7 : f32 to vector<22x128xf32>
    %39 = arith.select %37, %35, %38 : vector<22x128xi1>, vector<22x128xf32>
    %40 = arith.truncf %39 : vector<22x128xf32> to vector<22x128xbf16>
    %41 = vector.extract_strided_slice %40 {offsets = [0, 0], sizes = [18, 128], strides = [1, 1]} : vector<22x128xbf16> to vector<18x128xbf16>
    %42 = vector.extract_strided_slice %40 {offsets = [1, 0], sizes = [18, 128], strides = [1, 1]} : vector<22x128xbf16> to vector<18x128xbf16>
    %43 = vector.extract_strided_slice %40 {offsets = [2, 0], sizes = [18, 128], strides = [1, 1]} : vector<22x128xbf16> to vector<18x128xbf16>
    %44 = vector.extract_strided_slice %40 {offsets = [3, 0], sizes = [18, 128], strides = [1, 1]} : vector<22x128xbf16> to vector<18x128xbf16>
    %45 = vector.extract_strided_slice %40 {offsets = [4, 0], sizes = [18, 128], strides = [1, 1]} : vector<22x128xbf16> to vector<18x128xbf16>
    %46 = tpu.concatenate %41, %42, %43, %44, %45 in 1 : vector<18x128xbf16>, vector<18x128xbf16>, vector<18x128xbf16>, vector<18x128xbf16>, vector<18x128xbf16> -> vector<18x640xbf16>
    %c0_8 = arith.constant 0 : index
    %c0_9 = arith.constant 0 : index
    %47 = vector.load %arg4[%c0_8, %c0_9] : memref<640x128xbf16, #tpu.memory_space<vmem>>, vector<640x128xbf16>
    %cst_10 = arith.constant dense<0.000000e+00> : vector<18x128xf32>
    %48 = tpu.matmul %46, %47, %cst_10 {dimension_numbers = #tpu.dot_dimension_numbers<[1], [0], [0], [1], [0, 0, 1, 1], [], []>} : vector<18x640xbf16>, vector<640x128xbf16>, vector<18x128xf32> -> vector<18x128xf32>
    %c0_11 = arith.constant 0 : index
    %c512 = arith.constant 512 : index
    %49 = vector.load %arg6[%c0_11, %c512] : memref<3x768xf32, #tpu.memory_space<vmem>>, vector<3x128xf32>
    %50 = vector.extract_strided_slice %49 {offsets = [0, 0], sizes = [1, 128], strides = [1, 1]} : vector<3x128xf32> to vector<1x128xf32>
    %51 = vector.broadcast %50 : vector<1x128xf32> to vector<18x128xf32>
    %52 = arith.addf %48, %51 : vector<18x128xf32>
    %cst_12 = arith.constant 0.000000e+00 : f32
    %53 = vector.broadcast %cst_12 : f32 to vector<18x128xf32>
    %54 = arith.maximumf %52, %53 : vector<18x128xf32>
    %55 = vector.extract_strided_slice %49 {offsets = [1, 0], sizes = [1, 128], strides = [1, 1]} : vector<3x128xf32> to vector<1x128xf32>
    %56 = vector.broadcast %55 : vector<1x128xf32> to vector<18x128xf32>
    %57 = arith.mulf %54, %56 : vector<18x128xf32>
    %58 = vector.extract_strided_slice %49 {offsets = [2, 0], sizes = [1, 128], strides = [1, 1]} : vector<3x128xf32> to vector<1x128xf32>
    %59 = vector.broadcast %58 : vector<1x128xf32> to vector<18x128xf32>
    %60 = arith.addf %57, %59 : vector<18x128xf32>
    %61 = tpu.iota {dimensions = array<i32: 0>} : vector<18x1xi32>
    %c1_i32 = arith.constant 1 : i32
    %62 = arith.subi %0, %c1_i32 : i32
    %63 = vector.broadcast %62 : i32 to vector<18x1xi32>
    %64 = arith.addi %61, %63 : vector<18x1xi32>
    %c0_i32_13 = arith.constant 0 : i32
    %65 = vector.broadcast %c0_i32_13 : i32 to vector<18x1xi32>
    %66 = arith.cmpi sge, %64, %65 : vector<18x1xi32>
    %c16_i32_14 = arith.constant 16 : i32
    %67 = vector.broadcast %c16_i32_14 : i32 to vector<18x1xi32>
    %68 = arith.cmpi slt, %64, %67 : vector<18x1xi32>
    %69 = arith.andi %66, %68 : vector<18x1xi1>
    %70 = vector.extract_strided_slice %25 {offsets = [2, 0], sizes = [18, 128], strides = [1, 1]} : vector<22x512xf32> to vector<18x128xf32>
    %71 = arith.addf %70, %60 : vector<18x128xf32>
    %cst_15 = arith.constant 0.000000e+00 : f32
    %72 = vector.shape_cast %69 : vector<18x1xi1> to vector<18x1xi1>
    %73 = vector.broadcast %72 : vector<18x1xi1> to vector<18x128xi1>
    %74 = vector.broadcast %cst_15 : f32 to vector<18x128xf32>
    %75 = arith.select %73, %71, %74 : vector<18x128xi1>, vector<18x128xf32>
    %76 = arith.truncf %75 : vector<18x128xf32> to vector<18x128xbf16>
    %77 = vector.extract_strided_slice %25 {offsets = [2, 256], sizes = [18, 128], strides = [1, 1]} : vector<22x512xf32> to vector<18x128xf32>
    %78 = vector.extract_strided_slice %25 {offsets = [2, 384], sizes = [18, 128], strides = [1, 1]} : vector<22x512xf32> to vector<18x128xf32>
    %79 = arith.addf %77, %78 : vector<18x128xf32>
    %cst_16 = arith.constant 0.000000e+00 : f32
    %80 = vector.shape_cast %69 : vector<18x1xi1> to vector<18x1xi1>
    %81 = vector.broadcast %80 : vector<18x1xi1> to vector<18x128xi1>
    %82 = vector.broadcast %cst_16 : f32 to vector<18x128xf32>
    %83 = arith.select %81, %79, %82 : vector<18x128xi1>, vector<18x128xf32>
    %84 = arith.truncf %83 : vector<18x128xf32> to vector<18x128xbf16>
    %85 = vector.extract_strided_slice %76 {offsets = [0, 0], sizes = [16, 128], strides = [1, 1]} : vector<18x128xbf16> to vector<16x128xbf16>
    %86 = vector.extract_strided_slice %84 {offsets = [0, 0], sizes = [16, 128], strides = [1, 1]} : vector<18x128xbf16> to vector<16x128xbf16>
    %87 = vector.extract_strided_slice %76 {offsets = [1, 0], sizes = [16, 128], strides = [1, 1]} : vector<18x128xbf16> to vector<16x128xbf16>
    %88 = vector.extract_strided_slice %84 {offsets = [1, 0], sizes = [16, 128], strides = [1, 1]} : vector<18x128xbf16> to vector<16x128xbf16>
    %89 = vector.extract_strided_slice %76 {offsets = [2, 0], sizes = [16, 128], strides = [1, 1]} : vector<18x128xbf16> to vector<16x128xbf16>
    %90 = vector.extract_strided_slice %84 {offsets = [2, 0], sizes = [16, 128], strides = [1, 1]} : vector<18x128xbf16> to vector<16x128xbf16>
    %91 = tpu.concatenate %85, %86, %87, %88, %89, %90 in 1 : vector<16x128xbf16>, vector<16x128xbf16>, vector<16x128xbf16>, vector<16x128xbf16>, vector<16x128xbf16>, vector<16x128xbf16> -> vector<16x768xbf16>
    %c0_17 = arith.constant 0 : index
    %c0_18 = arith.constant 0 : index
    %92 = vector.load %arg5[%c0_17, %c0_18] : memref<768x128xbf16, #tpu.memory_space<vmem>>, vector<768x128xbf16>
    %cst_19 = arith.constant dense<0.000000e+00> : vector<16x128xf32>
    %93 = tpu.matmul %91, %92, %cst_19 {dimension_numbers = #tpu.dot_dimension_numbers<[1], [0], [0], [1], [0, 0, 1, 1], [], []>} : vector<16x768xbf16>, vector<768x128xbf16>, vector<16x128xf32> -> vector<16x128xf32>
    %c0_20 = arith.constant 0 : index
    %c640 = arith.constant 640 : index
    %94 = vector.load %arg6[%c0_20, %c640] : memref<3x768xf32, #tpu.memory_space<vmem>>, vector<3x128xf32>
    %95 = vector.extract_strided_slice %94 {offsets = [0, 0], sizes = [1, 128], strides = [1, 1]} : vector<3x128xf32> to vector<1x128xf32>
    %96 = vector.broadcast %95 : vector<1x128xf32> to vector<16x128xf32>
    %97 = arith.addf %93, %96 : vector<16x128xf32>
    %cst_21 = arith.constant 0.000000e+00 : f32
    %98 = vector.broadcast %cst_21 : f32 to vector<16x128xf32>
    %99 = arith.maximumf %97, %98 : vector<16x128xf32>
    %100 = vector.extract_strided_slice %94 {offsets = [1, 0], sizes = [1, 128], strides = [1, 1]} : vector<3x128xf32> to vector<1x128xf32>
    %101 = vector.broadcast %100 : vector<1x128xf32> to vector<16x128xf32>
    %102 = arith.mulf %99, %101 : vector<16x128xf32>
    %103 = vector.extract_strided_slice %94 {offsets = [2, 0], sizes = [1, 128], strides = [1, 1]} : vector<3x128xf32> to vector<1x128xf32>
    %104 = vector.broadcast %103 : vector<1x128xf32> to vector<16x128xf32>
    %105 = arith.addf %102, %104 : vector<16x128xf32>
    %c0_22 = arith.constant 0 : index
    %c0_23 = arith.constant 0 : index
    %c0_24 = arith.constant 0 : index
    %106 = vector.load %arg7[%c0_22, %c0_23, %c0_24] : memref<1x16x128xf32, #tpu.memory_space<vmem>>, vector<1x16x128xf32>
    %107 = vector.shape_cast %106 : vector<1x16x128xf32> to vector<16x128xf32>
    %108 = vector.shape_cast %105 : vector<16x128xf32> to vector<1x16x128xf32>
    tpu.vector_store %arg7[%c0_22, %c0_23, %c0_24], %108 {strides = array<i32>} : memref<1x16x128xf32, #tpu.memory_space<vmem>>, vector<1x16x128xf32>,
    return
  }
  func.func @transform_0(%arg0: i32, %arg1: i32) -> (i32, i32, i32) {
    %c0_i32 = arith.constant 0 : i32
    %c0_i32_0 = arith.constant 0 : i32
    %c0_i32_1 = arith.constant 0 : i32
    return %arg0, %c0_i32, %c0_i32_0 : i32, i32, i32
  }
  func.func @transform_1(%arg0: i32, %arg1: i32) -> (i32, i32) {
    %c0_i32 = arith.constant 0 : i32
    %c0_i32_0 = arith.constant 0 : i32
    %c0_i32_1 = arith.constant 0 : i32
    return %c0_i32, %c0_i32_0 : i32, i32
  }
  func.func @transform_2(%arg0: i32, %arg1: i32) -> (i32, i32) {
    %c0_i32 = arith.constant 0 : i32
    %c0_i32_0 = arith.constant 0 : i32
    %c0_i32_1 = arith.constant 0 : i32
    return %c0_i32, %c0_i32_0 : i32, i32
  }
  func.func @transform_3(%arg0: i32, %arg1: i32) -> (i32, i32) {
    %c0_i32 = arith.constant 0 : i32
    %c0_i32_0 = arith.constant 0 : i32
    %c0_i32_1 = arith.constant 0 : i32
    return %c0_i32, %c0_i32_0 : i32, i32
  }
  func.func @transform_4(%arg0: i32, %arg1: i32) -> (i32, i32) {
    %c0_i32 = arith.constant 0 : i32
    %c0_i32_0 = arith.constant 0 : i32
    %c0_i32_1 = arith.constant 0 : i32
    return %c0_i32, %c0_i32_0 : i32, i32
  }
  func.func @transform_5(%arg0: i32, %arg1: i32) -> (i32, i32, i32) {
    %c0_i32 = arith.constant 0 : i32
    %c0_i32_0 = arith.constant 0 : i32
    return %arg0, %arg1, %c0_i32 : i32, i32, i32
  }
}

</mosaic_0001>

<llo_original>
// kernel: mul.266
$region0: #{mul.266}
  %s0 = inlined_call_operand.vmem [shape: f32[3,3,4], index: 0, kind: input, shape index: {}]
  %s1 = inlined_call_operand.vmem [shape: f32[9,4], index: 1, kind: output, shape index: {}]
  $region1: #{mul.266} parent=0
    #allocation0 [shape = 'u8[4096]{0}', space=vmem, size = 0x1000, scoped, tag = 'scoped mem for output reshape']
    #allocation1 [shape = 'u8[16384]{0}', space=vmem, size = 0x4000, scoped, tag = 'scoped mem for input reshape']
    %s3 = sshllo.u32 0, 4
    %s4 = smul.addr 4, 3
    %s5 = scalar_lea.vmem %s0, %s4
    %v6 = vld [vmem:[%s5] sm:%s3]
    %s7 = scalar_lea.vmem [#allocation1], 24
    %8 = vst [vmem:[%s7] sm:%s3] %v6
    %s9 = smul.addr 4, 2
    %s10 = scalar_lea.vmem %s0, %s9
    %v11 = vld [vmem:[%s10] sm:%s3]
    %s12 = scalar_lea.vmem [#allocation1], 16
    %13 = vst [vmem:[%s12] sm:%s3] %v11
    %s14 = scalar_lea.vmem %s0, 4
    %v15 = vld [vmem:[%s14] sm:%s3]
    %s16 = scalar_lea.vmem [#allocation1], 8
    %17 = vst [vmem:[%s16] sm:%s3] %v15
    %v18 = vld [vmem:[%s0] sm:%s3]
    %19 = vst [vmem:[#allocation1] sm:%s3] %v18
    %v20 = vld [vmem:[#allocation1] ss:$8 sm:$0xf]
    %vm21 = vcmask 23552
    %22 = vst.msk [vmem:[#allocation0] sm:$0xf] %vm21, %v20
    %s23 = scalar_lea.vmem [#allocation1], 2
    %v24 = vld [vmem:[%s23] ss:$8 sm:$0xf]
    %25 = vrot.lane.b32.xlu0 %v24, 6
    %v26 = vpop.permute.xlu0 %25
    %vm27 = vcmask 72752
    %28 = vst.msk [vmem:[#allocation0] sm:$0xf] %vm27, %v26
    %s29 = scalar_lea.vmem [#allocation1], 1
    %v30 = vld [vmem:[%s29] ss:$8 sm:$0xf]
    %31 = vrot.lane.b32.xlu0 %v30, 3
    %v32 = vpop.permute.xlu0 %31
    %vm33 = vcmask 48152
    %34 = vst.msk [vmem:[#allocation0] sm:$0xf] %vm33, %v32
    %s36 = sshllo.u32 0, 4
    %v38 = vld [vmem:[#allocation0] sm:%s36]
    %s39 = sshllo.u32 0, 4
    %40 = vst [vmem:[%s1] sm:%s39] %v38

// kernel: tile.97
$region0: #{tile.97}
  #allocation0 [shape = 's32[1]{0}', space=sflag, size = 0x4, scoped, tag = 'scoped memory for tile.97']
  %s0 = inlined_call_operand.vmem [shape: f32[8], index: 0, kind: input, shape index: {}]
  %s1 = inlined_call_operand.vmem [shape: f32[16,8], index: 1, kind: output, shape index: {}]
  // Predicated region
  $region2: #{tile.97} parent=0 // pred_check
    _
  $region3: #{tile.97} parent=0 // pred_check_branch
    %3 = sbr.rel (0) target = $region5
  $region4: #{tile.97} parent=0 // pred_region
    _
  $region5: #{tile.97} parent=0 // pred_fallthru
    _
  %v4 = vld [vmem:[%s0] ss:$0 sm:$0xff]
  %5 = vst [vmem:[%s1] sm:$0xff] %v4
  %s6 = scalar_lea.vmem %s1, 8
  %7 = vst [vmem:[%s6] sm:$0xff] %v4

// kernel: tile.103
$region0: #{tile.103}
  %s0 = inlined_call_operand.vmem [shape: f32[16,8], index: 0, kind: input, shape index: {}]
  %s1 = inlined_call_operand.vmem [shape: f32[1,128], index: 1, kind: output, shape index: {}]
  $region1: #{tile.103} parent=0
    #allocation0 [shape = 'u8[4096]{0}', space=vmem, size = 0x1000, scoped, tag = 'scoped mem for output reshape']
    %v2 = vld [vmem:[%s0] sm:$0x1]
    %vm3 = vcmask 64512
    %4 = vst.msk [vmem:[#allocation0] sm:$0x1] %vm3, %v2
    %s5 = scalar_lea.vmem %s0, 15
    %v6 = vld [vmem:[%s5] sm:$0x1]
    %7 = vrot.lane.b32.xlu0 %v6, 120
    %v8 = vpop.permute.xlu0 %7
    %vm9 = vcmask 1048512
    %10 = vst.msk [vmem:[#allocation0] sm:$0x1] %vm9, %v8
    %s11 = scalar_lea.vmem %s0, 14
    %v12 = vld [vmem:[%s11] sm:$0x1]
    %13 = vrot.lane.b32.xlu0 %v12, 112
    %v14 = vpop.permute.xlu0 %13
    %vm15 = vcmask 982912
    %16 = vst.msk [vmem:[#allocation0] sm:$0x1] %vm15, %v14
    %s17 = scalar_lea.vmem %s0, 13
    %v18 = vld [vmem:[%s17] sm:$0x1]
    %19 = vrot.lane.b32.xlu0 %v18, 104
    %v20 = vpop.permute.xlu0 %19
    %vm21 = vcmask 917312
    %22 = vst.msk [vmem:[#allocation0] sm:$0x1] %vm21, %v20
    %s23 = scalar_lea.vmem %s0, 12
    %v24 = vld [vmem:[%s23] sm:$0x1]
    %25 = vrot.lane.b32.xlu0 %v24, 96
    %v26 = vpop.permute.xlu0 %25
    %vm27 = vcmask 851712
    %28 = vst.msk [vmem:[#allocation0] sm:$0x1] %vm27, %v26
    %s29 = scalar_lea.vmem %s0, 11
    %v30 = vld [vmem:[%s29] sm:$0x1]
    %31 = vrot.lane.b32.xlu0 %v30, 88
    %v32 = vpop.permute.xlu0 %31
    %vm33 = vcmask 786112
    %34 = vst.msk [vmem:[#allocation0] sm:$0x1] %vm33, %v32
    %s35 = scalar_lea.vmem %s0, 10
    %v36 = vld [vmem:[%s35] sm:$0x1]
    %37 = vrot.lane.b32.xlu0 %v36, 80
    %v38 = vpop.permute.xlu0 %37
    %vm39 = vcmask 720512
    %40 = vst.msk [vmem:[#allocation0] sm:$0x1] %vm39, %v38
    %s41 = scalar_lea.vmem %s0, 9
    %v42 = vld [vmem:[%s41] sm:$0x1]
    %43 = vrot.lane.b32.xlu0 %v42, 72
    %v44 = vpop.permute.xlu0 %43
    %vm45 = vcmask 654912
    %46 = vst.msk [vmem:[#allocation0] sm:$0x1] %vm45, %v44
    %s47 = scalar_lea.vmem %s0, 8
    %v48 = vld [vmem:[%s47] sm:$0x1]
    %49 = vrot.lane.b32.xlu0 %v48, 64
    %v50 = vpop.permute.xlu0 %49
    %vm51 = vcmask 589312
    %52 = vst.msk [vmem:[#allocation0] sm:$0x1] %vm51, %v50
    %s53 = scalar_lea.vmem %s0, 7
    %v54 = vld [vmem:[%s53] sm:$0x1]
    %55 = vrot.lane.b32.xlu0 %v54, 56
    %v56 = vpop.permute.xlu0 %55
    %vm57 = vcmask 523712
    %58 = vst.msk [vmem:[#allocation0] sm:$0x1] %vm57, %v56
    %s59 = scalar_lea.vmem %s0, 6
    %v60 = vld [vmem:[%s59] sm:$0x1]
    %61 = vrot.lane.b32.xlu0 %v60, 48
    %v62 = vpop.permute.xlu0 %61
    %vm63 = vcmask 458112
    %64 = vst.msk [vmem:[#allocation0] sm:$0x1] %vm63, %v62
    %s65 = scalar_lea.vmem %s0, 5
    %v66 = vld [vmem:[%s65] sm:$0x1]
    %67 = vrot.lane.b32.xlu0 %v66, 40
    %v68 = vpop.permute.xlu0 %67
    %vm69 = vcmask 392512
    %70 = vst.msk [vmem:[#allocation0] sm:$0x1] %vm69, %v68
    %s71 = scalar_lea.vmem %s0, 4
    %v72 = vld [vmem:[%s71] sm:$0x1]
    %73 = vrot.lane.b32.xlu0 %v72, 32
    %v74 = vpop.permute.xlu0 %73
    %vm75 = vcmask 326912
    %76 = vst.msk [vmem:[#allocation0] sm:$0x1] %vm75, %v74
    %s77 = scalar_lea.vmem %s0, 3
    %v78 = vld [vmem:[%s77] sm:$0x1]
    %79 = vrot.lane.b32.xlu0 %v78, 24
    %v80 = vpop.permute.xlu0 %79
    %vm81 = vcmask 261312
    %82 = vst.msk [vmem:[#allocation0] sm:$0x1] %vm81, %v80
    %s83 = scalar_lea.vmem %s0, 2
    %v84 = vld [vmem:[%s83] sm:$0x1]
    %85 = vrot.lane.b32.xlu0 %v84, 16
    %v86 = vpop.permute.xlu0 %85
    %vm87 = vcmask 195712
    %88 = vst.msk [vmem:[#allocation0] sm:$0x1] %vm87, %v86
    %s89 = scalar_lea.vmem %s0, 1
    %v90 = vld [vmem:[%s89] sm:$0x1]
    %91 = vrot.lane.b32.xlu0 %v90, 8
    %v92 = vpop.permute.xlu0 %91
    %vm93 = vcmask 130112
    %94 = vst.msk [vmem:[#allocation0] sm:$0x1] %vm93, %v92
    %s96 = sshllo.u32 0, 1
    %v98 = vld [vmem:[#allocation0] sm:%s96]
    %s99 = sshllo.u32 0, 1
    %100 = vst [vmem:[%s1] sm:%s99] %v98

// kernel: inception_block_forward.1
$region0: #{inception_block_forward.1}
  #allocation0 [shape = 'u32[]', space=smem, size = 0x4, offset = 0x4, fixed_abs, tag = 'smem constant byte address 0x4 - core index']
  #allocation1 [shape = 'u32[144,128]{1,0:T(1,128)}', space=vmem, size = 0x12000, scoped, tag = 'internal scratch']
  %s0 = inlined_call_operand.hbm [shape: bf16[2,28,128], index: 0, kind: input, shape index: {}]
  %s1 = inlined_call_operand.hbm [shape: bf16[896,512], index: 1, kind: input, shape index: {}]
  %s2 = inlined_call_operand.hbm [shape: bf16[640,128], index: 2, kind: input, shape index: {}]
  %s3 = inlined_call_operand.hbm [shape: bf16[768,128], index: 3, kind: input, shape index: {}]
  %s4 = inlined_call_operand.hbm [shape: f32[3,768], index: 4, kind: input, shape index: {}]
  %s5 = inlined_call_operand.hbm [shape: f32[2,16,128], index: 5, kind: output, shape index: {}]
  %s6 = sld [smem:[#allocation0]]
  $region73: #{inception_block_forward.1} parent=0
    _
  %s8 = ssub.s32 1, %s6
  %s9 = scalar_select 0, %s8, %s6
  $region1: #{inception_block_forward.1} parent=0
    #allocation2 [shape = 'u8[16384]{0}', space=vmem, size = 0x4000, scoped, tag = 'input window, operand 0']
    #allocation3 [shape = 's32[2]{0}', space=sflag, size = 0x8, scoped, tag = 'scoped memory for inception_block_forward.1']
    #allocation4 [shape = 's32[2]{0}', space=sflag, size = 0x8, scoped, tag = 'scoped memory for inception_block_forward.1']
    #allocation5 [shape = 'u8[917504]{0}', space=vmem, size = 0xe0000, scoped, tag = 'input window, operand 1, single buffered']
    #allocation6 [shape = 's32[1]{0}', space=sflag, size = 0x4, scoped, tag = 'scoped memory for inception_block_forward.1']
    #allocation7 [shape = 'u8[163840]{0}', space=vmem, size = 0x28000, scoped, tag = 'input window, operand 2, single buffered']
    #allocation8 [shape = 'u8[196608]{0}', space=vmem, size = 0x30000, scoped, tag = 'input window, operand 3, single buffered']
    #allocation9 [shape = 's32[1]{0}', space=sflag, size = 0x4, scoped, tag = 'scoped memory for inception_block_forward.1']
    #allocation10 [shape = 'u8[12288]{0}', space=vmem, size = 0x3000, scoped, tag = 'input window, operand 4, single buffered']
    #allocation11 [shape = 'u8[16384]{0}', space=vmem, size = 0x4000, scoped, tag = 'output window, operand 0']
    %10 = vsyncpa [#allocation3], 0
    %s11 = scalar_lea.sflag [#allocation3], 1
    %12 = vsyncpa %s11, 0
    %13 = vsyncpa [#allocation6], 0
    %14 = vsyncpa [#allocation9], 0
    %15 = vsyncpa [#allocation4], 0
    %s16 = scalar_lea.sflag [#allocation4], 1
    %17 = vsyncpa %s16, 0
    loop: start=0, step=1, limit=4
    $region2: #{inception_block_forward.1} parent=1 // loop_pre_header
      _
    $region3: #{inception_block_forward.1} parent=1 // loop_header
      %s19 = sphi 0, %s23
      %p20 = scmp.ge.s32.totalorder %s19, 4
      %s26 = sphi 0, %s38
      %s27 = sphi 0, %s34
      %s28 = sphi 0, %s26
      %s29 = sphi 0, %s27
      %s30 = sphi 0, %s28
      %s31 = sphi 0, %s29
      %s41 = sphi 0, %s43
      %s44 = sphi 0, %s41
      %s45 = sphi 0, %s44
      %s61 = sphi 0, %s45
      %s65 = sphi 0, %s65
      %s67 = sphi 0, %s65
      %s68 = sphi 0, %s67
      %s82 = sphi 0, %s68
      %s86 = sphi 0, %s86
      %s88 = sphi 0, %s86
      %s89 = sphi 0, %s88
      %s103 = sphi 0, %s89
      %s107 = sphi 0, %s107
      %s109 = sphi 0, %s107
      %s110 = sphi 0, %s109
      %s124 = sphi 0, %s110
      %s128 = sphi 0, %s128
      %s130 = sphi 0, %s128
      %s131 = sphi 0, %s130
      %s145 = sphi 0, %s131
      %s153 = sphi 0, %s155
      %s156 = sphi 0, %s153
      %s157 = sphi 0, %s156
      %s173 = sphi 0, %s157
    $region4: #{inception_block_forward.1} parent=1 // loop_header_branch
      %22 = sbr.rel (%p20) target = $region8
    $region5: #{inception_block_forward.1} parent=1 // loop_body
      %s24 = ssub.s32 %s19, 1
      %s25 = ssub.s32 %s19, 2
      %s32 = sadd.s32 1, %s27
      %p33 = scmp.ge.s32.totalorder %s32, 1
      %s34 = scalar_select %p33, 0, %s32
      %s35 = sadd.s32 1, %s26
      %s36 = scalar_select %p33, %s35, %s26
      %p37 = scmp.ge.s32.totalorder %s36, 2
      %s38 = scalar_select %p37, 0, %s36
      %s39 = ssub.s32 %s26, %s38
      %p40 = scmp.eq.s32.totalorder %s39, 0
      %s42 = sadd.s32 %s41, 1
      %s43 = scalar_select %p40, %s41, %s42
      %p46 = pneg %p40
      %p47 = scmp.eq.s32.totalorder %s19, 1
      %p48 = por %p46, %p47
      %p49 = scmp.ne.s32.totalorder %s41, %s44
      %p50 = scmp.eq.s32.totalorder %s19, 0
      %p51 = por %p49, %p50
      %p52 = scmp.ne.s32.totalorder %s41, %s44
      %p53 = scmp.eq.s32.totalorder %s24, 1
      %p54 = por %p52, %p53
      %p55 = scmp.ne.s32.totalorder %s44, %s45
      %p56 = scmp.eq.s32.totalorder %s24, 0
      %p57 = por %p55, %p56
      %p58 = scmp.ne.s32.totalorder %s44, %s45
      %p59 = scmp.eq.s32.totalorder %s25, 1
      %p60 = por %p58, %p59
      %p62 = scmp.ne.s32.totalorder %s45, %s61
      %p63 = scmp.eq.s32.totalorder %s25, 0
      %p64 = por %p62, %p63
      %s66 = sadd.s32 %s65, 1
      %p69 = scmp.eq.s32.totalorder %s19, 1
      %p70 = scmp.ne.s32.totalorder %s65, %s67
      %p71 = scmp.eq.s32.totalorder %s19, 0
      %p72 = por %p70, %p71
      %p73 = scmp.ne.s32.totalorder %s65, %s67
      %p74 = scmp.eq.s32.totalorder %s24, 1
      %p75 = por %p73, %p74
      %p76 = scmp.ne.s32.totalorder %s67, %s68
      %p77 = scmp.eq.s32.totalorder %s24, 0
      %p78 = por %p76, %p77
      %p79 = scmp.ne.s32.totalorder %s67, %s68
      %p80 = scmp.eq.s32.totalorder %s25, 1
      %p81 = por %p79, %p80
      %p83 = scmp.ne.s32.totalorder %s68, %s82
      %p84 = scmp.eq.s32.totalorder %s25, 0
      %p85 = por %p83, %p84
      %s87 = sadd.s32 %s86, 1
      %p90 = scmp.eq.s32.totalorder %s19, 1
      %p91 = scmp.ne.s32.totalorder %s86, %s88
      %p92 = scmp.eq.s32.totalorder %s19, 0
      %p93 = por %p91, %p92
      %p94 = scmp.ne.s32.totalorder %s86, %s88
      %p95 = scmp.eq.s32.totalorder %s24, 1
      %p96 = por %p94, %p95
      %p97 = scmp.ne.s32.totalorder %s88, %s89
      %p98 = scmp.eq.s32.totalorder %s24, 0
      %p99 = por %p97, %p98
      %p100 = scmp.ne.s32.totalorder %s88, %s89
      %p101 = scmp.eq.s32.totalorder %s25, 1
      %p102 = por %p100, %p101
      %p104 = scmp.ne.s32.totalorder %s89, %s103
      %p105 = scmp.eq.s32.totalorder %s25, 0
      %p106 = por %p104, %p105
      %s108 = sadd.s32 %s107, 1
      %p111 = scmp.eq.s32.totalorder %s19, 1
      %p112 = scmp.ne.s32.totalorder %s107, %s109
      %p113 = scmp.eq.s32.totalorder %s19, 0
      %p114 = por %p112, %p113
      %p115 = scmp.ne.s32.totalorder %s107, %s109
      %p116 = scmp.eq.s32.totalorder %s24, 1
      %p117 = por %p115, %p116
      %p118 = scmp.ne.s32.totalorder %s109, %s110
      %p119 = scmp.eq.s32.totalorder %s24, 0
      %p120 = por %p118, %p119
      %p121 = scmp.ne.s32.totalorder %s109, %s110
      %p122 = scmp.eq.s32.totalorder %s25, 1
      %p123 = por %p121, %p122
      %p125 = scmp.ne.s32.totalorder %s110, %s124
      %p126 = scmp.eq.s32.totalorder %s25, 0
      %p127 = por %p125, %p126
      %s129 = sadd.s32 %s128, 1
      %p132 = scmp.eq.s32.totalorder %s19, 1
      %p133 = scmp.ne.s32.totalorder %s128, %s130
      %p134 = scmp.eq.s32.totalorder %s19, 0
      %p135 = por %p133, %p134
      %p136 = scmp.ne.s32.totalorder %s128, %s130
      %p137 = scmp.eq.s32.totalorder %s24, 1
      %p138 = por %p136, %p137
      %p139 = scmp.ne.s32.totalorder %s130, %s131
      %p140 = scmp.eq.s32.totalorder %s24, 0
      %p141 = por %p139, %p140
      %p142 = scmp.ne.s32.totalorder %s130, %s131
      %p143 = scmp.eq.s32.totalorder %s25, 1
      %p144 = por %p142, %p143
      %p146 = scmp.ne.s32.totalorder %s131, %s145
      %p147 = scmp.eq.s32.totalorder %s25, 0
      %p148 = por %p146, %p147
      %s149 = ssub.s32 %s26, %s38
      %s150 = ssub.s32 %s27, %s34
      %s151 = sor.u32 %s149, %s150
      %p152 = scmp.eq.s32.totalorder %s151, 0
      %s154 = sadd.s32 %s153, 1
      %s155 = scalar_select %p152, %s153, %s154
      %p158 = pneg %p152
      %p159 = scmp.eq.s32.totalorder %s19, 1
      %p160 = por %p158, %p159
      %p161 = scmp.ne.s32.totalorder %s153, %s156
      %p162 = scmp.eq.s32.totalorder %s19, 0
      %p163 = por %p161, %p162
      %p164 = scmp.ne.s32.totalorder %s153, %s156
      %p165 = scmp.eq.s32.totalorder %s24, 1
      %p166 = por %p164, %p165
      %p167 = scmp.ne.s32.totalorder %s156, %s157
      %p168 = scmp.eq.s32.totalorder %s24, 0
      %p169 = por %p167, %p168
      %p170 = scmp.ne.s32.totalorder %s156, %s157
      %p171 = scmp.eq.s32.totalorder %s25, 1
      %p172 = por %p170, %p171
      %p174 = scmp.ne.s32.totalorder %s157, %s173
      %p175 = scmp.eq.s32.totalorder %s25, 0
      %p176 = por %p174, %p175
      %p177 = scmp.le.s32.totalorder 1, %s19
      %p178 = scmp.lt.s32.totalorder %s19, 3
      %p179 = pnand %p177, %p178
      %p180 = pneg %p179
      // Predicated region
      $region9: #{inception_block_forward.1} parent=5 // pred_check
        _
      $region10: #{inception_block_forward.1} parent=5 // pred_check_branch
        %182 = sbr.rel (%p179) target = $region12
      $region11: #{inception_block_forward.1} parent=5 // pred_region
        %s183 = ssub.s32 %s19, 1
        // Predicated region
        $region13: #{inception_block_forward.1} parent=11 // pred_check
          %p184 = pneg %p78
        $region14: #{inception_block_forward.1} parent=11 // pred_check_branch
          %186 = sbr.rel (%p184) target = $region16
        $region15: #{inception_block_forward.1} parent=11 // pred_region
          %s188 = ssub.s32 28672, 28672
          %189 = vsyncadd [#allocation6], %s188
          %s190 = sshll.u32 [#allocation5], 4
          %s191 = int_to_ptr.vmem [resolvable:$true] %s190
          %196 = dma.hbm_to_vmem [thread:$0]  %s1, 28672, %s191, [#allocation6], 256, 256, 16
        $region16: #{inception_block_forward.1} parent=11 // pred_fallthru
          _
        // Predicated region
        $region17: #{inception_block_forward.1} parent=11 // pred_check
          %p197 = pneg %p99
        $region18: #{inception_block_forward.1} parent=11 // pred_check_branch
          %199 = sbr.rel (%p197) target = $region20
        $region19: #{inception_block_forward.1} parent=11 // pred_region
          %s201 = ssub.s32 5120, 5120
          %202 = vsyncadd [#allocation6], %s201
          %s203 = sshll.u32 [#allocation7], 4
          %s204 = int_to_ptr.vmem [resolvable:$true] %s203
          %209 = dma.hbm_to_vmem [thread:$0]  %s2, 5120, %s204, [#allocation6], 64, 64, 4
        $region20: #{inception_block_forward.1} parent=11 // pred_fallthru
          _
        // Predicated region
        $region21: #{inception_block_forward.1} parent=11 // pred_check
          %p210 = pneg %p120
        $region22: #{inception_block_forward.1} parent=11 // pred_check_branch
          %212 = sbr.rel (%p210) target = $region24
        $region23: #{inception_block_forward.1} parent=11 // pred_region
          %s214 = ssub.s32 6144, 6144
          %215 = vsyncadd [#allocation9], %s214
          %s216 = sshll.u32 [#allocation8], 4
          %s217 = int_to_ptr.vmem [resolvable:$true] %s216
          %222 = dma.hbm_to_vmem [thread:$0]  %s3, 6144, %s217, [#allocation9], 64, 64, 4
        $region24: #{inception_block_forward.1} parent=11 // pred_fallthru
          _
        // Predicated region
        $region25: #{inception_block_forward.1} parent=11 // pred_check
          %p223 = pneg %p141
        $region26: #{inception_block_forward.1} parent=11 // pred_check_branch
          %225 = sbr.rel (%p223) target = $region28
        $region27: #{inception_block_forward.1} parent=11 // pred_region
          %s227 = ssub.s32 384, 384
          %228 = vsyncadd [#allocation9], %s227
          %s230 = sshll.u32 [#allocation10], 4
          %s231 = int_to_ptr.vmem [resolvable:$true] %s230
          %233 = dma.hbm_to_vmem [thread:$0]  %s4, 384, %s231, [#allocation9]
        $region28: #{inception_block_forward.1} parent=11 // pred_fallthru
          _
      $region12: #{inception_block_forward.1} parent=5 // pred_fallthru
        _
      %p234 = scmp.lt.s32.totalorder %s19, 2
      // Predicated region
      $region29: #{inception_block_forward.1} parent=5 // pred_check
        %p235 = pneg %p234
      $region30: #{inception_block_forward.1} parent=5 // pred_check_branch
        %237 = sbr.rel (%p235) target = $region32
      $region31: #{inception_block_forward.1} parent=5 // pred_region
        // Predicated region
        $region33: #{inception_block_forward.1} parent=31 // pred_check
          %p238 = pneg %p51
        $region34: #{inception_block_forward.1} parent=31 // pred_check_branch
          %240 = sbr.rel (%p238) target = $region36
        $region35: #{inception_block_forward.1} parent=31 // pred_region
          %s241 = sand.u32 %s41, 1
          %s242 = scalar_lea.sflag [#allocation3], %s241
          %s243 = sand.u32 %s41, 1
          %s244 = smul.addr %s243, 16
          %s245 = scalar_lea.vmem [#allocation2], %s244
          %s247 = ssub.s32 256, 256
          %248 = vsyncadd %s242, %s247
          %s249 = smul.addr %s26, 4
          %s250 = smul.addr %s249, 64
          %s251 = scalar_lea.hbm %s0, %s250
          %s252 = sshll.u32 %s245, 4
          %s253 = int_to_ptr.vmem [resolvable:$true] %s252
          %258 = dma.hbm_to_vmem [thread:$0]  %s251, 256, %s253, %s242, 64, 64, 4
        $region36: #{inception_block_forward.1} parent=31 // pred_fallthru
          _
      $region32: #{inception_block_forward.1} parent=5 // pred_fallthru
        _
      %p259 = scmp.le.s32.totalorder 1, %s19
      %p260 = scmp.lt.s32.totalorder %s19, 3
      %p261 = pnand %p259, %p260
      %p262 = pneg %p261
      // Predicated region
      $region37: #{inception_block_forward.1} parent=5 // pred_check
        _
      $region38: #{inception_block_forward.1} parent=5 // pred_check_branch
        %264 = sbr.rel (%p261) target = $region40
      $region39: #{inception_block_forward.1} parent=5 // pred_region
        %s265 = ssub.s32 %s19, 1
        %s266 = sand.u32 %s44, 1
        %s267 = scalar_lea.sflag [#allocation3], %s266
        %s268 = sand.u32 %s44, 1
        %s269 = smul.addr %s268, 16
        %s270 = scalar_lea.vmem [#allocation2], %s269
        // Predicated region
        $region41: #{inception_block_forward.1} parent=39 // pred_check
          %p271 = pneg %p57
        $region42: #{inception_block_forward.1} parent=39 // pred_check_branch
          %273 = sbr.rel (%p271) target = $region44
        $region43: #{inception_block_forward.1} parent=39 // pred_region
          %274 = dma.done %s267, 256
        $region44: #{inception_block_forward.1} parent=39 // pred_fallthru
          _
        // Predicated region
        $region45: #{inception_block_forward.1} parent=39 // pred_check
          %p275 = pneg %p78
        $region46: #{inception_block_forward.1} parent=39 // pred_check_branch
          %277 = sbr.rel (%p275) target = $region48
        $region47: #{inception_block_forward.1} parent=39 // pred_region
          %278 = dma.done [#allocation6], 28672
        $region48: #{inception_block_forward.1} parent=39 // pred_fallthru
          _
        // Predicated region
        $region49: #{inception_block_forward.1} parent=39 // pred_check
          %p279 = pneg %p99
        $region50: #{inception_block_forward.1} parent=39 // pred_check_branch
          %281 = sbr.rel (%p279) target = $region52
        $region51: #{inception_block_forward.1} parent=39 // pred_region
          %282 = dma.done [#allocation6], 5120
        $region52: #{inception_block_forward.1} parent=39 // pred_fallthru
          _
        // Predicated region
        $region53: #{inception_block_forward.1} parent=39 // pred_check
          %p283 = pneg %p120
        $region54: #{inception_block_forward.1} parent=39 // pred_check_branch
          %285 = sbr.rel (%p283) target = $region56
        $region55: #{inception_block_forward.1} parent=39 // pred_region
          %286 = dma.done [#allocation9], 6144
        $region56: #{inception_block_forward.1} parent=39 // pred_fallthru
          _
        // Predicated region
        $region57: #{inception_block_forward.1} parent=39 // pred_check
          %p287 = pneg %p141
        $region58: #{inception_block_forward.1} parent=39 // pred_check_branch
          %289 = sbr.rel (%p287) target = $region60
        $region59: #{inception_block_forward.1} parent=39 // pred_region
          %290 = dma.done [#allocation9], 384
        $region60: #{inception_block_forward.1} parent=39 // pred_fallthru
          _
        %s291 = sand.u32 %s44, 1
        %s292 = scalar_lea.sflag [#allocation3], %s291
        %s293 = sand.u32 %s44, 1
        %s294 = smul.addr %s293, 16
        %s295 = scalar_lea.vmem [#allocation2], %s294
        %p296 = pneg %p57
        %p297 = pneg %p54
        %p298 = pneg %p78
        %p299 = pneg %p75
        %p300 = pneg %p99
        %p301 = pneg %p96
        %p302 = pneg %p120
        %p303 = pneg %p117
        %p304 = pneg %p141
        %p305 = pneg %p138
        %p306 = pneg %p169
        %p307 = pneg %p166
        %s308 = sand.u32 %s156, 1
        %s309 = scalar_lea.sflag [#allocation4], %s308
        %s310 = sand.u32 %s156, 1
        %s311 = smul.addr %s310, 16
        %s312 = scalar_lea.vmem [#allocation11], %s311
        %s313 = smul.u32 2, %s29
        %s315 = smul.u32 %s29, 16
        %s316 = sshra.s32 %s315, 3
        %s317 = sand.u32 %s315, 7
        %s318 = smul.addr %s316, 4
        %s319 = scalar_lea.vmem %s270, %s318 [#allocation2]
        %v320 = vld [vmem:[%s319] sm:$0xf]
        %v321 = vld [vmem:[%s319 + $0x4] sm:$0xf]
        %v322 = vld [vmem:[%s319 + $0x8] sm:$0xf]
        %v323 = vld [vmem:[%s319 + $0xc] sm:$0x3]
        %v327 = vunpack.c.l.b16 %v320
        %v328 = vunpack.c.l.b16 %v321
        %v329 = vunpack.c.l.b16 %v322
        %v330 = vpack.c.b16 %v328, %v327
        %v331 = vpack.c.b16 %v329, %v329
        %vm334 = vsmask.f32 7424
        %v336 = vshrl.u32 %v330, 16
        %v338 = vshll.u32 %v330, 16
        %v340 = vrot.slane %v338, 1
        %v341 = vor.u32 %v336, %v340
        %v343 = vshll.u32 %v331, 16
        %v345 = vrot.slane %v343, 1
        %v346 = vsel %vm334, %v341, %v345
        %v347 = vshrl.u32 %v331, 16
        %v349 = vor.u32 %v347, %v345
        %vm352 = vcmask 1046528
        %v353 = vrot.slane %v330, 1
        %v354 = vrot.slane %v331, 1
        %v355 = vsel %vm352, %v353, %v354
        %v359 = vunpack.c.l.b16 %v323
        %v360 = vpack.c.b16 %v359, %v329
        %vm361 = vsmask.f32 6400
        %v362 = vrot.slane %v336, 1
        %v363 = vrot.slane %v338, 2
        %v364 = vor.u32 %v362, %v363
        %v366 = vshrl.u32 %v360, 16
        %v368 = vrot.slane %v366, 1
        %v369 = vshll.u32 %v360, 16
        %v371 = vrot.slane %v369, 2
        %v372 = vor.u32 %v368, %v371
        %v373 = vsel %vm361, %v364, %v372
        %vm376 = vcmask 1045504
        %v377 = vrot.slane %v330, 2
        %v378 = vrot.slane %v360, 2
        %v379 = vsel %vm376, %v377, %v378
        %vm382 = vsmask.f32 5376
        %v383 = vrot.slane %v336, 2
        %v384 = vrot.slane %v338, 3
        %v385 = vor.u32 %v383, %v384
        %v386 = vrot.slane %v366, 2
        %v387 = vrot.slane %v369, 3
        %v388 = vor.u32 %v386, %v387
        %v389 = vsel %vm382, %v385, %v388
        %vm392 = vcmask 1044480
        %v393 = vrot.slane %v330, 3
        %v394 = vrot.slane %v360, 3
        %v395 = vsel %vm392, %v393, %v394
        %v398 = vld [vmem:[#allocation5] sm:$0xff]
        %v399 = vld [vmem:[#allocation5 + $0x8] sm:$0xff]
        %v400 = vld [vmem:[#allocation5 + $0x10] sm:$0xff]
        %v401 = vld [vmem:[#allocation5 + $0x18] sm:$0xff]
        %v402 = vld [vmem:[#allocation5 + $0x20] sm:$0xff]
        %v403 = vld [vmem:[#allocation5 + $0x28] sm:$0xff]
        %v404 = vld [vmem:[#allocation5 + $0x30] sm:$0xff]
        %v405 = vld [vmem:[#allocation5 + $0x38] sm:$0xff]
        %v406 = vld [vmem:[#allocation5 + $0x40] sm:$0xff]
        %v407 = vld [vmem:[#allocation5 + $0x48] sm:$0xff]
        %v408 = vld [vmem:[#allocation5 + $0x50] sm:$0xff]
        %v409 = vld [vmem:[#allocation5 + $0x58] sm:$0xff]
        %v410 = vld [vmem:[#allocation5 + $0x60] sm:$0xff]
        %v411 = vld [vmem:[#allocation5 + $0x68] sm:$0xff]
        %v412 = vld [vmem:[#allocation5 + $0x70] sm:$0xff]
        %v413 = vld [vmem:[#allocation5 + $0x78] sm:$0xff]
        %v414 = vld [vmem:[#allocation5 + $0x80] sm:$0xff]
        %v415 = vld [vmem:[#allocation5 + $0x88] sm:$0xff]
        %v416 = vld [vmem:[#allocation5 + $0x90] sm:$0xff]
        %v417 = vld [vmem:[#allocation5 + $0x98] sm:$0xff]
        %v418 = vld [vmem:[#allocation5 + $0xa0] sm:$0xff]
        %v419 = vld [vmem:[#allocation5 + $0xa8] sm:$0xff]
        %v420 = vld [vmem:[#allocation5 + $0xb0] sm:$0xff]
        %v421 = vld [vmem:[#allocation5 + $0xb8] sm:$0xff]
        %v422 = vld [vmem:[#allocation5 + $0xc0] sm:$0xff]
        %v423 = vld [vmem:[#allocation5 + $0xc8] sm:$0xff]
        %v424 = vld [vmem:[#allocation5 + $0xd0] sm:$0xff]
        %v425 = vld [vmem:[#allocation5 + $0xd8] sm:$0xff]
        %v426 = vld [vmem:[#allocation5 + $0xe0] sm:$0xff]
        %v427 = vld [vmem:[#allocation5 + $0xe8] sm:$0xff]
        %v428 = vld [vmem:[#allocation5 + $0xf0] sm:$0xff]
        %v429 = vld [vmem:[#allocation5 + $0xf8] sm:$0xff]
        %v430 = vld [vmem:[#allocation5 + $0x100] sm:$0xff]
        %v431 = vld [vmem:[#allocation5 + $0x108] sm:$0xff]
        %v432 = vld [vmem:[#allocation5 + $0x110] sm:$0xff]
        %v433 = vld [vmem:[#allocation5 + $0x118] sm:$0xff]
        %v434 = vld [vmem:[#allocation5 + $0x120] sm:$0xff]
        %v435 = vld [vmem:[#allocation5 + $0x128] sm:$0xff]
        %v436 = vld [vmem:[#allocation5 + $0x130] sm:$0xff]
        %v437 = vld [vmem:[#allocation5 + $0x138] sm:$0xff]
        %v438 = vld [vmem:[#allocation5 + $0x140] sm:$0xff]
        %v439 = vld [vmem:[#allocation5 + $0x148] sm:$0xff]
        %v440 = vld [vmem:[#allocation5 + $0x150] sm:$0xff]
        %v441 = vld [vmem:[#allocation5 + $0x158] sm:$0xff]
        %v442 = vld [vmem:[#allocation5 + $0x160] sm:$0xff]
        %v443 = vld [vmem:[#allocation5 + $0x168] sm:$0xff]
        %v444 = vld [vmem:[#allocation5 + $0x170] sm:$0xff]
        %v445 = vld [vmem:[#allocation5 + $0x178] sm:$0xff]
        %v446 = vld [vmem:[#allocation5 + $0x180] sm:$0xff]
        %v447 = vld [vmem:[#allocation5 + $0x188] sm:$0xff]
        %v448 = vld [vmem:[#allocation5 + $0x190] sm:$0xff]
        %v449 = vld [vmem:[#allocation5 + $0x198] sm:$0xff]
        %v450 = vld [vmem:[#allocation5 + $0x1a0] sm:$0xff]
        %v451 = vld [vmem:[#allocation5 + $0x1a8] sm:$0xff]
        %v452 = vld [vmem:[#allocation5 + $0x1b0] sm:$0xff]
        %v453 = vld [vmem:[#allocation5 + $0x1b8] sm:$0xff]
        %v454 = vld [vmem:[#allocation5 + $0x1c0] sm:$0xff]
        %v455 = vld [vmem:[#allocation5 + $0x1c8] sm:$0xff]
        %v456 = vld [vmem:[#allocation5 + $0x1d0] sm:$0xff]
        %v457 = vld [vmem:[#allocation5 + $0x1d8] sm:$0xff]
        %v458 = vld [vmem:[#allocation5 + $0x1e0] sm:$0xff]
        %v459 = vld [vmem:[#allocation5 + $0x1e8] sm:$0xff]
        %v460 = vld [vmem:[#allocation5 + $0x1f0] sm:$0xff]
        %v461 = vld [vmem:[#allocation5 + $0x1f8] sm:$0xff]
        %v462 = vld [vmem:[#allocation5 + $0x200] sm:$0xff]
        %v463 = vld [vmem:[#allocation5 + $0x208] sm:$0xff]
        %v464 = vld [vmem:[#allocation5 + $0x210] sm:$0xff]
        %v465 = vld [vmem:[#allocation5 + $0x218] sm:$0xff]
        %v466 = vld [vmem:[#allocation5 + $0x220] sm:$0xff]
        %v467 = vld [vmem:[#allocation5 + $0x228] sm:$0xff]
        %v468 = vld [vmem:[#allocation5 + $0x230] sm:$0xff]
        %v469 = vld [vmem:[#allocation5 + $0x238] sm:$0xff]
        %v470 = vld [vmem:[#allocation5 + $0x240] sm:$0xff]
        %v471 = vld [vmem:[#allocation5 + $0x248] sm:$0xff]
        %v472 = vld [vmem:[#allocation5 + $0x250] sm:$0xff]
        %v473 = vld [vmem:[#allocation5 + $0x258] sm:$0xff]
        %v474 = vld [vmem:[#allocation5 + $0x260] sm:$0xff]
        %v475 = vld [vmem:[#allocation5 + $0x268] sm:$0xff]
        %v476 = vld [vmem:[#allocation5 + $0x270] sm:$0xff]
        %v477 = vld [vmem:[#allocation5 + $0x278] sm:$0xff]
        %v478 = vld [vmem:[#allocation5 + $0x280] sm:$0xff]
        %v479 = vld [vmem:[#allocation5 + $0x288] sm:$0xff]
        %v480 = vld [vmem:[#allocation5 + $0x290] sm:$0xff]
        %v481 = vld [vmem:[#allocation5 + $0x298] sm:$0xff]
        %v482 = vld [vmem:[#allocation5 + $0x2a0] sm:$0xff]
        %v483 = vld [vmem:[#allocation5 + $0x2a8] sm:$0xff]
        %v484 = vld [vmem:[#allocation5 + $0x2b0] sm:$0xff]
        %v485 = vld [vmem:[#allocation5 + $0x2b8] sm:$0xff]
        %v486 = vld [vmem:[#allocation5 + $0x2c0] sm:$0xff]
        %v487 = vld [vmem:[#allocation5 + $0x2c8] sm:$0xff]
        %v488 = vld [vmem:[#allocation5 + $0x2d0] sm:$0xff]
        %v489 = vld [vmem:[#allocation5 + $0x2d8] sm:$0xff]
        %v490 = vld [vmem:[#allocation5 + $0x2e0] sm:$0xff]
        %v491 = vld [vmem:[#allocation5 + $0x2e8] sm:$0xff]
        %v492 = vld [vmem:[#allocation5 + $0x2f0] sm:$0xff]
        %v493 = vld [vmem:[#allocation5 + $0x2f8] sm:$0xff]
        %v494 = vld [vmem:[#allocation5 + $0x300] sm:$0xff]
        %v495 = vld [vmem:[#allocation5 + $0x308] sm:$0xff]
        %v496 = vld [vmem:[#allocation5 + $0x310] sm:$0xff]
        %v497 = vld [vmem:[#allocation5 + $0x318] sm:$0xff]
        %v498 = vld [vmem:[#allocation5 + $0x320] sm:$0xff]
        %v499 = vld [vmem:[#allocation5 + $0x328] sm:$0xff]
        %v500 = vld [vmem:[#allocation5 + $0x330] sm:$0xff]
        %v501 = vld [vmem:[#allocation5 + $0x338] sm:$0xff]
        %v502 = vld [vmem:[#allocation5 + $0x340] sm:$0xff]
        %v503 = vld [vmem:[#allocation5 + $0x348] sm:$0xff]
        %v504 = vld [vmem:[#allocation5 + $0x350] sm:$0xff]
        %v505 = vld [vmem:[#allocation5 + $0x358] sm:$0xff]
        %v506 = vld [vmem:[#allocation5 + $0x360] sm:$0xff]
        %v507 = vld [vmem:[#allocation5 + $0x368] sm:$0xff]
        %v508 = vld [vmem:[#allocation5 + $0x370] sm:$0xff]
        %v509 = vld [vmem:[#allocation5 + $0x378] sm:$0xff]
        %v510 = vld [vmem:[#allocation5 + $0x380] sm:$0xff]
        %v511 = vld [vmem:[#allocation5 + $0x388] sm:$0xff]
        %v512 = vld [vmem:[#allocation5 + $0x390] sm:$0xff]
        %v513 = vld [vmem:[#allocation5 + $0x398] sm:$0xff]
        %v514 = vld [vmem:[#allocation5 + $0x3a0] sm:$0xff]
        %v515 = vld [vmem:[#allocation5 + $0x3a8] sm:$0xff]
        %v516 = vld [vmem:[#allocation5 + $0x3b0] sm:$0xff]
        %v517 = vld [vmem:[#allocation5 + $0x3b8] sm:$0xff]
        %v518 = vld [vmem:[#allocation5 + $0x3c0] sm:$0xff]
        %v519 = vld [vmem:[#allocation5 + $0x3c8] sm:$0xff]
        %v520 = vld [vmem:[#allocation5 + $0x3d0] sm:$0xff]
        %v521 = vld [vmem:[#allocation5 + $0x3d8] sm:$0xff]
        %v522 = vld [vmem:[#allocation5 + $0x3e0] sm:$0xff]
        %v523 = vld [vmem:[#allocation5 + $0x3e8] sm:$0xff]
        %v524 = vld [vmem:[#allocation5 + $0x3f0] sm:$0xff]
        %v525 = vld [vmem:[#allocation5 + $0x3f8] sm:$0xff]
        %v526 = vld [vmem:[#allocation5 + $0x400] sm:$0xff]
        %v527 = vld [vmem:[#allocation5 + $0x408] sm:$0xff]
        %v528 = vld [vmem:[#allocation5 + $0x410] sm:$0xff]
        %v529 = vld [vmem:[#allocation5 + $0x418] sm:$0xff]
        %v530 = vld [vmem:[#allocation5 + $0x420] sm:$0xff]
        %v531 = vld [vmem:[#allocation5 + $0x428] sm:$0xff]
        %v532 = vld [vmem:[#allocation5 + $0x430] sm:$0xff]
        %v533 = vld [vmem:[#allocation5 + $0x438] sm:$0xff]
        %v534 = vld [vmem:[#allocation5 + $0x440] sm:$0xff]
        %v535 = vld [vmem:[#allocation5 + $0x448] sm:$0xff]
        %v536 = vld [vmem:[#allocation5 + $0x450] sm:$0xff]
        %v537 = vld [vmem:[#allocation5 + $0x458] sm:$0xff]
        %v538 = vld [vmem:[#allocation5 + $0x460] sm:$0xff]
        %v539 = vld [vmem:[#allocation5 + $0x468] sm:$0xff]
        %v540 = vld [vmem:[#allocation5 + $0x470] sm:$0xff]
        %v541 = vld [vmem:[#allocation5 + $0x478] sm:$0xff]
        %v542 = vld [vmem:[#allocation5 + $0x480] sm:$0xff]
        %v543 = vld [vmem:[#allocation5 + $0x488] sm:$0xff]
        %v544 = vld [vmem:[#allocation5 + $0x490] sm:$0xff]
        %v545 = vld [vmem:[#allocation5 + $0x498] sm:$0xff]
        %v546 = vld [vmem:[#allocation5 + $0x4a0] sm:$0xff]
        %v547 = vld [vmem:[#allocation5 + $0x4a8] sm:$0xff]
        %v548 = vld [vmem:[#allocation5 + $0x4b0] sm:$0xff]
        %v549 = vld [vmem:[#allocation5 + $0x4b8] sm:$0xff]
        %v550 = vld [vmem:[#allocation5 + $0x4c0] sm:$0xff]
        %v551 = vld [vmem:[#allocation5 + $0x4c8] sm:$0xff]
        %v552 = vld [vmem:[#allocation5 + $0x4d0] sm:$0xff]
        %v553 = vld [vmem:[#allocation5 + $0x4d8] sm:$0xff]
        %v554 = vld [vmem:[#allocation5 + $0x4e0] sm:$0xff]
        %v555 = vld [vmem:[#allocation5 + $0x4e8] sm:$0xff]
        %v556 = vld [vmem:[#allocation5 + $0x4f0] sm:$0xff]
        %v557 = vld [vmem:[#allocation5 + $0x4f8] sm:$0xff]
        %v558 = vld [vmem:[#allocation5 + $0x500] sm:$0xff]
        %v559 = vld [vmem:[#allocation5 + $0x508] sm:$0xff]
        %v560 = vld [vmem:[#allocation5 + $0x510] sm:$0xff]
        %v561 = vld [vmem:[#allocation5 + $0x518] sm:$0xff]
        %v562 = vld [vmem:[#allocation5 + $0x520] sm:$0xff]
        %v563 = vld [vmem:[#allocation5 + $0x528] sm:$0xff]
        %v564 = vld [vmem:[#allocation5 + $0x530] sm:$0xff]
        %v565 = vld [vmem:[#allocation5 + $0x538] sm:$0xff]
        %v566 = vld [vmem:[#allocation5 + $0x540] sm:$0xff]
        %v567 = vld [vmem:[#allocation5 + $0x548] sm:$0xff]
        %v568 = vld [vmem:[#allocation5 + $0x550] sm:$0xff]
        %v569 = vld [vmem:[#allocation5 + $0x558] sm:$0xff]
        %v570 = vld [vmem:[#allocation5 + $0x560] sm:$0xff]
        %v571 = vld [vmem:[#allocation5 + $0x568] sm:$0xff]
        %v572 = vld [vmem:[#allocation5 + $0x570] sm:$0xff]
        %v573 = vld [vmem:[#allocation5 + $0x578] sm:$0xff]
        %v574 = vld [vmem:[#allocation5 + $0x580] sm:$0xff]
        %v575 = vld [vmem:[#allocation5 + $0x588] sm:$0xff]
        %v576 = vld [vmem:[#allocation5 + $0x590] sm:$0xff]
        %v577 = vld [vmem:[#allocation5 + $0x598] sm:$0xff]
        %v578 = vld [vmem:[#allocation5 + $0x5a0] sm:$0xff]
        %v579 = vld [vmem:[#allocation5 + $0x5a8] sm:$0xff]
        %v580 = vld [vmem:[#allocation5 + $0x5b0] sm:$0xff]
        %v581 = vld [vmem:[#allocation5 + $0x5b8] sm:$0xff]
        %v582 = vld [vmem:[#allocation5 + $0x5c0] sm:$0xff]
        %v583 = vld [vmem:[#allocation5 + $0x5c8] sm:$0xff]
        %v584 = vld [vmem:[#allocation5 + $0x5d0] sm:$0xff]
        %v585 = vld [vmem:[#allocation5 + $0x5d8] sm:$0xff]
        %v586 = vld [vmem:[#allocation5 + $0x5e0] sm:$0xff]
        %v587 = vld [vmem:[#allocation5 + $0x5e8] sm:$0xff]
        %v588 = vld [vmem:[#allocation5 + $0x5f0] sm:$0xff]
        %v589 = vld [vmem:[#allocation5 + $0x5f8] sm:$0xff]
        %v590 = vld [vmem:[#allocation5 + $0x600] sm:$0xff]
        %v591 = vld [vmem:[#allocation5 + $0x608] sm:$0xff]
        %v592 = vld [vmem:[#allocation5 + $0x610] sm:$0xff]
        %v593 = vld [vmem:[#allocation5 + $0x618] sm:$0xff]
        %v594 = vld [vmem:[#allocation5 + $0x620] sm:$0xff]
        %v595 = vld [vmem:[#allocation5 + $0x628] sm:$0xff]
        %v596 = vld [vmem:[#allocation5 + $0x630] sm:$0xff]
        %v597 = vld [vmem:[#allocation5 + $0x638] sm:$0xff]
        %v598 = vld [vmem:[#allocation5 + $0x640] sm:$0xff]
        %v599 = vld [vmem:[#allocation5 + $0x648] sm:$0xff]
        %v600 = vld [vmem:[#allocation5 + $0x650] sm:$0xff]
        %v601 = vld [vmem:[#allocation5 + $0x658] sm:$0xff]
        %v602 = vld [vmem:[#allocation5 + $0x660] sm:$0xff]
        %v603 = vld [vmem:[#allocation5 + $0x668] sm:$0xff]
        %v604 = vld [vmem:[#allocation5 + $0x670] sm:$0xff]
        %v605 = vld [vmem:[#allocation5 + $0x678] sm:$0xff]
        %v606 = vld [vmem:[#allocation5 + $0x680] sm:$0xff]
        %v607 = vld [vmem:[#allocation5 + $0x688] sm:$0xff]
        %v608 = vld [vmem:[#allocation5 + $0x690] sm:$0xff]
        %v609 = vld [vmem:[#allocation5 + $0x698] sm:$0xff]
        %v610 = vld [vmem:[#allocation5 + $0x6a0] sm:$0xff]
        %v611 = vld [vmem:[#allocation5 + $0x6a8] sm:$0xff]
        %v612 = vld [vmem:[#allocation5 + $0x6b0] sm:$0xff]
        %v613 = vld [vmem:[#allocation5 + $0x6b8] sm:$0xff]
        %v614 = vld [vmem:[#allocation5 + $0x6c0] sm:$0xff]
        %v615 = vld [vmem:[#allocation5 + $0x6c8] sm:$0xff]
        %v616 = vld [vmem:[#allocation5 + $0x6d0] sm:$0xff]
        %v617 = vld [vmem:[#allocation5 + $0x6d8] sm:$0xff]
        %v618 = vld [vmem:[#allocation5 + $0x6e0] sm:$0xff]
        %v619 = vld [vmem:[#allocation5 + $0x6e8] sm:$0xff]
        %v620 = vld [vmem:[#allocation5 + $0x6f0] sm:$0xff]
        %v621 = vld [vmem:[#allocation5 + $0x6f8] sm:$0xff]
        %v622 = vld [vmem:[#allocation10] sm:$0x77]
        %v623 = vld [vmem:[#allocation10 + $0x8] sm:$0x77]
        %v626 = vlaneseq
        %v627 = vshrl.u32 %v626, 7
        %v628 = vsub.s32 0, %v627
        %v629 = vrot.slane %v622, %v628
        %v630 = vlaneseq
        %v631 = vshrl.u32 %v630, 7
        %v632 = vsub.s32 4, %v631
        %v633 = vrot.slane %v622, %v632
        %v634 = vlaneseq
        %v635 = vshrl.u32 %v634, 7
        %v636 = vsub.s32 0, %v635
        %v637 = vrot.slane %v623, %v636
        %v638 = vlaneseq
        %v639 = vshrl.u32 %v638, 7
        %v640 = vsub.s32 4, %v639
        %v641 = vrot.slane %v623, %v640
        %v646 = vlaneseq
        %v647 = vshrl.u32 %v646, 7
        %v648 = vsub.s32 0, %v647
        %v649 = vrot.slane %v629, %v648
        %v650 = vlaneseq
        %v651 = vshrl.u32 %v650, 7
        %v652 = vsub.s32 0, %v651
        %v653 = vrot.slane %v633, %v652
        %v654 = vlaneseq
        %v655 = vshrl.u32 %v654, 7
        %v656 = vsub.s32 0, %v655
        %v657 = vrot.slane %v637, %v656
        %v658 = vlaneseq
        %v659 = vshrl.u32 %v658, 7
        %v660 = vsub.s32 0, %v659
        %v661 = vrot.slane %v641, %v660
        %v886 = vunpack.c.l.b16 %v398
        %v887 = vunpack.c.h.b16 %v398
        %v888 = vunpack.c.l.b16 %v399
        %v889 = vunpack.c.h.b16 %v399
        %v890 = vunpack.c.l.b16 %v400
        %v891 = vunpack.c.h.b16 %v400
        %v892 = vunpack.c.l.b16 %v401
        %v893 = vunpack.c.h.b16 %v401
        %v894 = vunpack.c.l.b16 %v402
        %v895 = vunpack.c.h.b16 %v402
        %v896 = vunpack.c.l.b16 %v403
        %v897 = vunpack.c.h.b16 %v403
        %v898 = vunpack.c.l.b16 %v404
        %v899 = vunpack.c.h.b16 %v404
        %v900 = vunpack.c.l.b16 %v405
        %v901 = vunpack.c.h.b16 %v405
        %v902 = vunpack.c.l.b16 %v406
        %v903 = vunpack.c.h.b16 %v406
        %v904 = vunpack.c.l.b16 %v407
        %v905 = vunpack.c.h.b16 %v407
        %v906 = vunpack.c.l.b16 %v408
        %v907 = vunpack.c.h.b16 %v408
        %v908 = vunpack.c.l.b16 %v409
        %v909 = vunpack.c.h.b16 %v409
        %v910 = vunpack.c.l.b16 %v410
        %v911 = vunpack.c.h.b16 %v410
        %v912 = vunpack.c.l.b16 %v411
        %v913 = vunpack.c.h.b16 %v411
        %v914 = vunpack.c.l.b16 %v412
        %v915 = vunpack.c.h.b16 %v412
        %v916 = vunpack.c.l.b16 %v413
        %v917 = vunpack.c.h.b16 %v413
        %v918 = vunpack.c.l.b16 %v414
        %v919 = vunpack.c.h.b16 %v414
        %v920 = vunpack.c.l.b16 %v415
        %v921 = vunpack.c.h.b16 %v415
        %v922 = vunpack.c.l.b16 %v416
        %v923 = vunpack.c.h.b16 %v416
        %v924 = vunpack.c.l.b16 %v417
        %v925 = vunpack.c.h.b16 %v417
        %v926 = vunpack.c.l.b16 %v418
        %v927 = vunpack.c.h.b16 %v418
        %v928 = vunpack.c.l.b16 %v419
        %v929 = vunpack.c.h.b16 %v419
        %v930 = vunpack.c.l.b16 %v420
        %v931 = vunpack.c.h.b16 %v420
        %v932 = vunpack.c.l.b16 %v421
        %v933 = vunpack.c.h.b16 %v421
        %v934 = vunpack.c.l.b16 %v422
        %v935 = vunpack.c.h.b16 %v422
        %v936 = vunpack.c.l.b16 %v423
        %v937 = vunpack.c.h.b16 %v423
        %v938 = vunpack.c.l.b16 %v424
        %v939 = vunpack.c.h.b16 %v424
        %v940 = vunpack.c.l.b16 %v425
        %v941 = vunpack.c.h.b16 %v425
        %v942 = vunpack.c.l.b16 %v426
        %v943 = vunpack.c.h.b16 %v426
        %v944 = vunpack.c.l.b16 %v427
        %v945 = vunpack.c.h.b16 %v427
        %v946 = vunpack.c.l.b16 %v428
        %v947 = vunpack.c.h.b16 %v428
        %v948 = vunpack.c.l.b16 %v429
        %v949 = vunpack.c.h.b16 %v429
        %v950 = vunpack.c.l.b16 %v430
        %v951 = vunpack.c.h.b16 %v430
        %v952 = vunpack.c.l.b16 %v431
        %v953 = vunpack.c.h.b16 %v431
        %v954 = vunpack.c.l.b16 %v432
        %v955 = vunpack.c.h.b16 %v432
        %v956 = vunpack.c.l.b16 %v433
        %v957 = vunpack.c.h.b16 %v433
        %v958 = vunpack.c.l.b16 %v434
        %v959 = vunpack.c.h.b16 %v434
        %v960 = vunpack.c.l.b16 %v435
        %v961 = vunpack.c.h.b16 %v435
        %v962 = vunpack.c.l.b16 %v436
        %v963 = vunpack.c.h.b16 %v436
        %v964 = vunpack.c.l.b16 %v437
        %v965 = vunpack.c.h.b16 %v437
        %v966 = vunpack.c.l.b16 %v438
        %v967 = vunpack.c.h.b16 %v438
        %v968 = vunpack.c.l.b16 %v439
        %v969 = vunpack.c.h.b16 %v439
        %v970 = vunpack.c.l.b16 %v440
        %v971 = vunpack.c.h.b16 %v440
        %v972 = vunpack.c.l.b16 %v441
        %v973 = vunpack.c.h.b16 %v441
        %v974 = vunpack.c.l.b16 %v442
        %v975 = vunpack.c.h.b16 %v442
        %v976 = vunpack.c.l.b16 %v443
        %v977 = vunpack.c.h.b16 %v443
        %v978 = vunpack.c.l.b16 %v444
        %v979 = vunpack.c.h.b16 %v444
        %v980 = vunpack.c.l.b16 %v445
        %v981 = vunpack.c.h.b16 %v445
        %v982 = vunpack.c.l.b16 %v446
        %v983 = vunpack.c.h.b16 %v446
        %v984 = vunpack.c.l.b16 %v447
        %v985 = vunpack.c.h.b16 %v447
        %v986 = vunpack.c.l.b16 %v448
        %v987 = vunpack.c.h.b16 %v448
        %v988 = vunpack.c.l.b16 %v449
        %v989 = vunpack.c.h.b16 %v449
        %v990 = vunpack.c.l.b16 %v450
        %v991 = vunpack.c.h.b16 %v450
        %v992 = vunpack.c.l.b16 %v451
        %v993 = vunpack.c.h.b16 %v451
        %v994 = vunpack.c.l.b16 %v452
        %v995 = vunpack.c.h.b16 %v452
        %v996 = vunpack.c.l.b16 %v453
        %v997 = vunpack.c.h.b16 %v453
        %v998 = vunpack.c.l.b16 %v454
        %v999 = vunpack.c.h.b16 %v454
        %v1000 = vunpack.c.l.b16 %v455
        %v1001 = vunpack.c.h.b16 %v455
        %v1002 = vunpack.c.l.b16 %v456
        %v1003 = vunpack.c.h.b16 %v456
        %v1004 = vunpack.c.l.b16 %v457
        %v1005 = vunpack.c.h.b16 %v457
        %v1006 = vunpack.c.l.b16 %v458
        %v1007 = vunpack.c.h.b16 %v458
        %v1008 = vunpack.c.l.b16 %v459
        %v1009 = vunpack.c.h.b16 %v459
        %v1010 = vunpack.c.l.b16 %v460
        %v1011 = vunpack.c.h.b16 %v460
        %v1012 = vunpack.c.l.b16 %v461
        %v1013 = vunpack.c.h.b16 %v461
        %v1014 = vunpack.c.l.b16 %v462
        %v1015 = vunpack.c.h.b16 %v462
        %v1016 = vunpack.c.l.b16 %v463
        %v1017 = vunpack.c.h.b16 %v463
        %v1018 = vunpack.c.l.b16 %v464
        %v1019 = vunpack.c.h.b16 %v464
        %v1020 = vunpack.c.l.b16 %v465
        %v1021 = vunpack.c.h.b16 %v465
        %v1022 = vunpack.c.l.b16 %v466
        %v1023 = vunpack.c.h.b16 %v466
        %v1024 = vunpack.c.l.b16 %v467
        %v1025 = vunpack.c.h.b16 %v467
        %v1026 = vunpack.c.l.b16 %v468
        %v1027 = vunpack.c.h.b16 %v468
        %v1028 = vunpack.c.l.b16 %v469
        %v1029 = vunpack.c.h.b16 %v469
        %v1030 = vunpack.c.l.b16 %v470
        %v1031 = vunpack.c.h.b16 %v470
        %v1032 = vunpack.c.l.b16 %v471
        %v1033 = vunpack.c.h.b16 %v471
        %v1034 = vunpack.c.l.b16 %v472
        %v1035 = vunpack.c.h.b16 %v472
        %v1036 = vunpack.c.l.b16 %v473
        %v1037 = vunpack.c.h.b16 %v473
        %v1038 = vunpack.c.l.b16 %v474
        %v1039 = vunpack.c.h.b16 %v474
        %v1040 = vunpack.c.l.b16 %v475
        %v1041 = vunpack.c.h.b16 %v475
        %v1042 = vunpack.c.l.b16 %v476
        %v1043 = vunpack.c.h.b16 %v476
        %v1044 = vunpack.c.l.b16 %v477
        %v1045 = vunpack.c.h.b16 %v477
        %v1046 = vunpack.c.l.b16 %v478
        %v1047 = vunpack.c.h.b16 %v478
        %v1048 = vunpack.c.l.b16 %v479
        %v1049 = vunpack.c.h.b16 %v479
        %v1050 = vunpack.c.l.b16 %v480
        %v1051 = vunpack.c.h.b16 %v480
        %v1052 = vunpack.c.l.b16 %v481
        %v1053 = vunpack.c.h.b16 %v481
        %v1054 = vunpack.c.l.b16 %v482
        %v1055 = vunpack.c.h.b16 %v482
        %v1056 = vunpack.c.l.b16 %v483
        %v1057 = vunpack.c.h.b16 %v483
        %v1058 = vunpack.c.l.b16 %v484
        %v1059 = vunpack.c.h.b16 %v484
        %v1060 = vunpack.c.l.b16 %v485
        %v1061 = vunpack.c.h.b16 %v485
        %v1062 = vunpack.c.l.b16 %v486
        %v1063 = vunpack.c.h.b16 %v486
        %v1064 = vunpack.c.l.b16 %v487
        %v1065 = vunpack.c.h.b16 %v487
        %v1066 = vunpack.c.l.b16 %v488
        %v1067 = vunpack.c.h.b16 %v488
        %v1068 = vunpack.c.l.b16 %v489
        %v1069 = vunpack.c.h.b16 %v489
        %v1070 = vunpack.c.l.b16 %v490
        %v1071 = vunpack.c.h.b16 %v490
        %v1072 = vunpack.c.l.b16 %v491
        %v1073 = vunpack.c.h.b16 %v491
        %v1074 = vunpack.c.l.b16 %v492
        %v1075 = vunpack.c.h.b16 %v492
        %v1076 = vunpack.c.l.b16 %v493
        %v1077 = vunpack.c.h.b16 %v493
        %v1078 = vunpack.c.l.b16 %v494
        %v1079 = vunpack.c.h.b16 %v494
        %v1080 = vunpack.c.l.b16 %v495
        %v1081 = vunpack.c.h.b16 %v495
        %v1082 = vunpack.c.l.b16 %v496
        %v1083 = vunpack.c.h.b16 %v496
        %v1084 = vunpack.c.l.b16 %v497
        %v1085 = vunpack.c.h.b16 %v497
        %v1086 = vunpack.c.l.b16 %v498
        %v1087 = vunpack.c.h.b16 %v498
        %v1088 = vunpack.c.l.b16 %v499
        %v1089 = vunpack.c.h.b16 %v499
        %v1090 = vunpack.c.l.b16 %v500
        %v1091 = vunpack.c.h.b16 %v500
        %v1092 = vunpack.c.l.b16 %v501
        %v1093 = vunpack.c.h.b16 %v501
        %v1094 = vunpack.c.l.b16 %v502
        %v1095 = vunpack.c.h.b16 %v502
        %v1096 = vunpack.c.l.b16 %v503
        %v1097 = vunpack.c.h.b16 %v503
        %v1098 = vunpack.c.l.b16 %v504
        %v1099 = vunpack.c.h.b16 %v504
        %v1100 = vunpack.c.l.b16 %v505
        %v1101 = vunpack.c.h.b16 %v505
        %v1102 = vunpack.c.l.b16 %v506
        %v1103 = vunpack.c.h.b16 %v506
        %v1104 = vunpack.c.l.b16 %v507
        %v1105 = vunpack.c.h.b16 %v507
        %v1106 = vunpack.c.l.b16 %v508
        %v1107 = vunpack.c.h.b16 %v508
        %v1108 = vunpack.c.l.b16 %v509
        %v1109 = vunpack.c.h.b16 %v509
        %v1110 = vunpack.c.l.b16 %v510
        %v1111 = vunpack.c.h.b16 %v510
        %v1112 = vunpack.c.l.b16 %v511
        %v1113 = vunpack.c.h.b16 %v511
        %v1114 = vunpack.c.l.b16 %v512
        %v1115 = vunpack.c.h.b16 %v512
        %v1116 = vunpack.c.l.b16 %v513
        %v1117 = vunpack.c.h.b16 %v513
        %v1118 = vunpack.c.l.b16 %v514
        %v1119 = vunpack.c.h.b16 %v514
        %v1120 = vunpack.c.l.b16 %v515
        %v1121 = vunpack.c.h.b16 %v515
        %v1122 = vunpack.c.l.b16 %v516
        %v1123 = vunpack.c.h.b16 %v516
        %v1124 = vunpack.c.l.b16 %v517
        %v1125 = vunpack.c.h.b16 %v517
        %v1126 = vunpack.c.l.b16 %v518
        %v1127 = vunpack.c.h.b16 %v518
        %v1128 = vunpack.c.l.b16 %v519
        %v1129 = vunpack.c.h.b16 %v519
        %v1130 = vunpack.c.l.b16 %v520
        %v1131 = vunpack.c.h.b16 %v520
        %v1132 = vunpack.c.l.b16 %v521
        %v1133 = vunpack.c.h.b16 %v521
        %v1134 = vunpack.c.l.b16 %v522
        %v1135 = vunpack.c.h.b16 %v522
        %v1136 = vunpack.c.l.b16 %v523
        %v1137 = vunpack.c.h.b16 %v523
        %v1138 = vunpack.c.l.b16 %v524
        %v1139 = vunpack.c.h.b16 %v524
        %v1140 = vunpack.c.l.b16 %v525
        %v1141 = vunpack.c.h.b16 %v525
        %v1142 = vunpack.c.l.b16 %v526
        %v1143 = vunpack.c.h.b16 %v526
        %v1144 = vunpack.c.l.b16 %v527
        %v1145 = vunpack.c.h.b16 %v527
        %v1146 = vunpack.c.l.b16 %v528
        %v1147 = vunpack.c.h.b16 %v528
        %v1148 = vunpack.c.l.b16 %v529
        %v1149 = vunpack.c.h.b16 %v529
        %v1150 = vunpack.c.l.b16 %v530
        %v1151 = vunpack.c.h.b16 %v530
        %v1152 = vunpack.c.l.b16 %v531
        %v1153 = vunpack.c.h.b16 %v531
        %v1154 = vunpack.c.l.b16 %v532
        %v1155 = vunpack.c.h.b16 %v532
        %v1156 = vunpack.c.l.b16 %v533
        %v1157 = vunpack.c.h.b16 %v533
        %v1158 = vunpack.c.l.b16 %v534
        %v1159 = vunpack.c.h.b16 %v534
        %v1160 = vunpack.c.l.b16 %v535
        %v1161 = vunpack.c.h.b16 %v535
        %v1162 = vunpack.c.l.b16 %v536
        %v1163 = vunpack.c.h.b16 %v536
        %v1164 = vunpack.c.l.b16 %v537
        %v1165 = vunpack.c.h.b16 %v537
        %v1166 = vunpack.c.l.b16 %v538
        %v1167 = vunpack.c.h.b16 %v538
        %v1168 = vunpack.c.l.b16 %v539
        %v1169 = vunpack.c.h.b16 %v539
        %v1170 = vunpack.c.l.b16 %v540
        %v1171 = vunpack.c.h.b16 %v540
        %v1172 = vunpack.c.l.b16 %v541
        %v1173 = vunpack.c.h.b16 %v541
        %v1174 = vunpack.c.l.b16 %v542
        %v1175 = vunpack.c.h.b16 %v542
        %v1176 = vunpack.c.l.b16 %v543
        %v1177 = vunpack.c.h.b16 %v543
        %v1178 = vunpack.c.l.b16 %v544
        %v1179 = vunpack.c.h.b16 %v544
        %v1180 = vunpack.c.l.b16 %v545
        %v1181 = vunpack.c.h.b16 %v545
        %v1182 = vunpack.c.l.b16 %v546
        %v1183 = vunpack.c.h.b16 %v546
        %v1184 = vunpack.c.l.b16 %v547
        %v1185 = vunpack.c.h.b16 %v547
        %v1186 = vunpack.c.l.b16 %v548
        %v1187 = vunpack.c.h.b16 %v548
        %v1188 = vunpack.c.l.b16 %v549
        %v1189 = vunpack.c.h.b16 %v549
        %v1190 = vunpack.c.l.b16 %v550
        %v1191 = vunpack.c.h.b16 %v550
        %v1192 = vunpack.c.l.b16 %v551
        %v1193 = vunpack.c.h.b16 %v551
        %v1194 = vunpack.c.l.b16 %v552
        %v1195 = vunpack.c.h.b16 %v552
        %v1196 = vunpack.c.l.b16 %v553
        %v1197 = vunpack.c.h.b16 %v553
        %v1198 = vunpack.c.l.b16 %v554
        %v1199 = vunpack.c.h.b16 %v554
        %v1200 = vunpack.c.l.b16 %v555
        %v1201 = vunpack.c.h.b16 %v555
        %v1202 = vunpack.c.l.b16 %v556
        %v1203 = vunpack.c.h.b16 %v556
        %v1204 = vunpack.c.l.b16 %v557
        %v1205 = vunpack.c.h.b16 %v557
        %v1206 = vunpack.c.l.b16 %v558
        %v1207 = vunpack.c.h.b16 %v558
        %v1208 = vunpack.c.l.b16 %v559
        %v1209 = vunpack.c.h.b16 %v559
        %v1210 = vunpack.c.l.b16 %v560
        %v1211 = vunpack.c.h.b16 %v560
        %v1212 = vunpack.c.l.b16 %v561
        %v1213 = vunpack.c.h.b16 %v561
        %v1214 = vunpack.c.l.b16 %v562
        %v1215 = vunpack.c.h.b16 %v562
        %v1216 = vunpack.c.l.b16 %v563
        %v1217 = vunpack.c.h.b16 %v563
        %v1218 = vunpack.c.l.b16 %v564
        %v1219 = vunpack.c.h.b16 %v564
        %v1220 = vunpack.c.l.b16 %v565
        %v1221 = vunpack.c.h.b16 %v565
        %v1222 = vunpack.c.l.b16 %v566
        %v1223 = vunpack.c.h.b16 %v566
        %v1224 = vunpack.c.l.b16 %v567
        %v1225 = vunpack.c.h.b16 %v567
        %v1226 = vunpack.c.l.b16 %v568
        %v1227 = vunpack.c.h.b16 %v568
        %v1228 = vunpack.c.l.b16 %v569
        %v1229 = vunpack.c.h.b16 %v569
        %v1230 = vunpack.c.l.b16 %v570
        %v1231 = vunpack.c.h.b16 %v570
        %v1232 = vunpack.c.l.b16 %v571
        %v1233 = vunpack.c.h.b16 %v571
        %v1234 = vunpack.c.l.b16 %v572
        %v1235 = vunpack.c.h.b16 %v572
        %v1236 = vunpack.c.l.b16 %v573
        %v1237 = vunpack.c.h.b16 %v573
        %v1238 = vunpack.c.l.b16 %v574
        %v1239 = vunpack.c.h.b16 %v574
        %v1240 = vunpack.c.l.b16 %v575
        %v1241 = vunpack.c.h.b16 %v575
        %v1242 = vunpack.c.l.b16 %v576
        %v1243 = vunpack.c.h.b16 %v576
        %v1244 = vunpack.c.l.b16 %v577
        %v1245 = vunpack.c.h.b16 %v577
        %v1246 = vunpack.c.l.b16 %v578
        %v1247 = vunpack.c.h.b16 %v578
        %v1248 = vunpack.c.l.b16 %v579
        %v1249 = vunpack.c.h.b16 %v579
        %v1250 = vunpack.c.l.b16 %v580
        %v1251 = vunpack.c.h.b16 %v580
        %v1252 = vunpack.c.l.b16 %v581
        %v1253 = vunpack.c.h.b16 %v581
        %v1254 = vunpack.c.l.b16 %v582
        %v1255 = vunpack.c.h.b16 %v582
        %v1256 = vunpack.c.l.b16 %v583
        %v1257 = vunpack.c.h.b16 %v583
        %v1258 = vunpack.c.l.b16 %v584
        %v1259 = vunpack.c.h.b16 %v584
        %v1260 = vunpack.c.l.b16 %v585
        %v1261 = vunpack.c.h.b16 %v585
        %v1262 = vunpack.c.l.b16 %v586
        %v1263 = vunpack.c.h.b16 %v586
        %v1264 = vunpack.c.l.b16 %v587
        %v1265 = vunpack.c.h.b16 %v587
        %v1266 = vunpack.c.l.b16 %v588
        %v1267 = vunpack.c.h.b16 %v588
        %v1268 = vunpack.c.l.b16 %v589
        %v1269 = vunpack.c.h.b16 %v589
        %v1270 = vunpack.c.l.b16 %v590
        %v1271 = vunpack.c.h.b16 %v590
        %v1272 = vunpack.c.l.b16 %v591
        %v1273 = vunpack.c.h.b16 %v591
        %v1274 = vunpack.c.l.b16 %v592
        %v1275 = vunpack.c.h.b16 %v592
        %v1276 = vunpack.c.l.b16 %v593
        %v1277 = vunpack.c.h.b16 %v593
        %v1278 = vunpack.c.l.b16 %v594
        %v1279 = vunpack.c.h.b16 %v594
        %v1280 = vunpack.c.l.b16 %v595
        %v1281 = vunpack.c.h.b16 %v595
        %v1282 = vunpack.c.l.b16 %v596
        %v1283 = vunpack.c.h.b16 %v596
        %v1284 = vunpack.c.l.b16 %v597
        %v1285 = vunpack.c.h.b16 %v597
        %v1286 = vunpack.c.l.b16 %v598
        %v1287 = vunpack.c.h.b16 %v598
        %v1288 = vunpack.c.l.b16 %v599
        %v1289 = vunpack.c.h.b16 %v599
        %v1290 = vunpack.c.l.b16 %v600
        %v1291 = vunpack.c.h.b16 %v600
        %v1292 = vunpack.c.l.b16 %v601
        %v1293 = vunpack.c.h.b16 %v601
        %v1294 = vunpack.c.l.b16 %v602
        %v1295 = vunpack.c.h.b16 %v602
        %v1296 = vunpack.c.l.b16 %v603
        %v1297 = vunpack.c.h.b16 %v603
        %v1298 = vunpack.c.l.b16 %v604
        %v1299 = vunpack.c.h.b16 %v604
        %v1300 = vunpack.c.l.b16 %v605
        %v1301 = vunpack.c.h.b16 %v605
        %v1302 = vunpack.c.l.b16 %v606
        %v1303 = vunpack.c.h.b16 %v606
        %v1304 = vunpack.c.l.b16 %v607
        %v1305 = vunpack.c.h.b16 %v607
        %v1306 = vunpack.c.l.b16 %v608
        %v1307 = vunpack.c.h.b16 %v608
        %v1308 = vunpack.c.l.b16 %v609
        %v1309 = vunpack.c.h.b16 %v609
        %v1310 = vunpack.c.l.b16 %v610
        %v1311 = vunpack.c.h.b16 %v610
        %v1312 = vunpack.c.l.b16 %v611
        %v1313 = vunpack.c.h.b16 %v611
        %v1314 = vunpack.c.l.b16 %v612
        %v1315 = vunpack.c.h.b16 %v612
        %v1316 = vunpack.c.l.b16 %v613
        %v1317 = vunpack.c.h.b16 %v613
        %v1318 = vunpack.c.l.b16 %v614
        %v1319 = vunpack.c.h.b16 %v614
        %v1320 = vunpack.c.l.b16 %v615
        %v1321 = vunpack.c.h.b16 %v615
        %v1322 = vunpack.c.l.b16 %v616
        %v1323 = vunpack.c.h.b16 %v616
        %v1324 = vunpack.c.l.b16 %v617
        %v1325 = vunpack.c.h.b16 %v617
        %v1326 = vunpack.c.l.b16 %v618
        %v1327 = vunpack.c.h.b16 %v618
        %v1328 = vunpack.c.l.b16 %v619
        %v1329 = vunpack.c.h.b16 %v619
        %v1330 = vunpack.c.l.b16 %v620
        %v1331 = vunpack.c.h.b16 %v620
        %v1332 = vunpack.c.l.b16 %v621
        %v1333 = vunpack.c.h.b16 %v621
        %v1334 = vpack.c.b16 %v890, %v886
        %v1335 = vpack.c.b16 %v891, %v887
        %v1336 = vpack.c.b16 %v892, %v888
        %v1337 = vpack.c.b16 %v893, %v889
        %v1338 = vpack.c.b16 %v898, %v894
        %v1339 = vpack.c.b16 %v899, %v895
        %v1340 = vpack.c.b16 %v900, %v896
        %v1341 = vpack.c.b16 %v901, %v897
        %v1342 = vpack.c.b16 %v906, %v902
        %v1343 = vpack.c.b16 %v907, %v903
        %v1344 = vpack.c.b16 %v908, %v904
        %v1345 = vpack.c.b16 %v909, %v905
        %v1346 = vpack.c.b16 %v914, %v910
        %v1347 = vpack.c.b16 %v915, %v911
        %v1348 = vpack.c.b16 %v916, %v912
        %v1349 = vpack.c.b16 %v917, %v913
        %v1350 = vpack.c.b16 %v922, %v918
        %v1351 = vpack.c.b16 %v923, %v919
        %v1352 = vpack.c.b16 %v924, %v920
        %v1353 = vpack.c.b16 %v925, %v921
        %v1354 = vpack.c.b16 %v930, %v926
        %v1355 = vpack.c.b16 %v931, %v927
        %v1356 = vpack.c.b16 %v932, %v928
        %v1357 = vpack.c.b16 %v933, %v929
        %v1358 = vpack.c.b16 %v938, %v934
        %v1359 = vpack.c.b16 %v939, %v935
        %v1360 = vpack.c.b16 %v940, %v936
        %v1361 = vpack.c.b16 %v941, %v937
        %v1362 = vpack.c.b16 %v946, %v942
        %v1363 = vpack.c.b16 %v947, %v943
        %v1364 = vpack.c.b16 %v948, %v944
        %v1365 = vpack.c.b16 %v949, %v945
        %v1366 = vpack.c.b16 %v954, %v950
        %v1367 = vpack.c.b16 %v955, %v951
        %v1368 = vpack.c.b16 %v956, %v952
        %v1369 = vpack.c.b16 %v957, %v953
        %v1370 = vpack.c.b16 %v962, %v958
        %v1371 = vpack.c.b16 %v963, %v959
        %v1372 = vpack.c.b16 %v964, %v960
        %v1373 = vpack.c.b16 %v965, %v961
        %v1374 = vpack.c.b16 %v970, %v966
        %v1375 = vpack.c.b16 %v971, %v967
        %v1376 = vpack.c.b16 %v972, %v968
        %v1377 = vpack.c.b16 %v973, %v969
        %v1378 = vpack.c.b16 %v978, %v974
        %v1379 = vpack.c.b16 %v979, %v975
        %v1380 = vpack.c.b16 %v980, %v976
        %v1381 = vpack.c.b16 %v981, %v977
        %v1382 = vpack.c.b16 %v986, %v982
        %v1383 = vpack.c.b16 %v987, %v983
        %v1384 = vpack.c.b16 %v988, %v984
        %v1385 = vpack.c.b16 %v989, %v985
        %v1386 = vpack.c.b16 %v994, %v990
        %v1387 = vpack.c.b16 %v995, %v991
        %v1388 = vpack.c.b16 %v996, %v992
        %v1389 = vpack.c.b16 %v997, %v993
        %v1390 = vpack.c.b16 %v1002, %v998
        %v1391 = vpack.c.b16 %v1003, %v999
        %v1392 = vpack.c.b16 %v1004, %v1000
        %v1393 = vpack.c.b16 %v1005, %v1001
        %v1394 = vpack.c.b16 %v1010, %v1006
        %v1395 = vpack.c.b16 %v1011, %v1007
        %v1396 = vpack.c.b16 %v1012, %v1008
        %v1397 = vpack.c.b16 %v1013, %v1009
        %v1398 = vpack.c.b16 %v1018, %v1014
        %v1399 = vpack.c.b16 %v1019, %v1015
        %v1400 = vpack.c.b16 %v1020, %v1016
        %v1401 = vpack.c.b16 %v1021, %v1017
        %v1402 = vpack.c.b16 %v1026, %v1022
        %v1403 = vpack.c.b16 %v1027, %v1023
        %v1404 = vpack.c.b16 %v1028, %v1024
        %v1405 = vpack.c.b16 %v1029, %v1025
        %v1406 = vpack.c.b16 %v1034, %v1030
        %v1407 = vpack.c.b16 %v1035, %v1031
        %v1408 = vpack.c.b16 %v1036, %v1032
        %v1409 = vpack.c.b16 %v1037, %v1033
        %v1410 = vpack.c.b16 %v1042, %v1038
        %v1411 = vpack.c.b16 %v1043, %v1039
        %v1412 = vpack.c.b16 %v1044, %v1040
        %v1413 = vpack.c.b16 %v1045, %v1041
        %v1414 = vpack.c.b16 %v1050, %v1046
        %v1415 = vpack.c.b16 %v1051, %v1047
        %v1416 = vpack.c.b16 %v1052, %v1048
        %v1417 = vpack.c.b16 %v1053, %v1049
        %v1418 = vpack.c.b16 %v1058, %v1054
        %v1419 = vpack.c.b16 %v1059, %v1055
        %v1420 = vpack.c.b16 %v1060, %v1056
        %v1421 = vpack.c.b16 %v1061, %v1057
        %v1422 = vpack.c.b16 %v1066, %v1062
        %v1423 = vpack.c.b16 %v1067, %v1063
        %v1424 = vpack.c.b16 %v1068, %v1064
        %v1425 = vpack.c.b16 %v1069, %v1065
        %v1426 = vpack.c.b16 %v1074, %v1070
        %v1427 = vpack.c.b16 %v1075, %v1071
        %v1428 = vpack.c.b16 %v1076, %v1072
        %v1429 = vpack.c.b16 %v1077, %v1073
        %v1430 = vpack.c.b16 %v1082, %v1078
        %v1431 = vpack.c.b16 %v1083, %v1079
        %v1432 = vpack.c.b16 %v1084, %v1080
        %v1433 = vpack.c.b16 %v1085, %v1081
        %v1434 = vpack.c.b16 %v1090, %v1086
        %v1435 = vpack.c.b16 %v1091, %v1087
        %v1436 = vpack.c.b16 %v1092, %v1088
        %v1437 = vpack.c.b16 %v1093, %v1089
        %v1438 = vpack.c.b16 %v1098, %v1094
        %v1439 = vpack.c.b16 %v1099, %v1095
        %v1440 = vpack.c.b16 %v1100, %v1096
        %v1441 = vpack.c.b16 %v1101, %v1097
        %v1442 = vpack.c.b16 %v1106, %v1102
        %v1443 = vpack.c.b16 %v1107, %v1103
        %v1444 = vpack.c.b16 %v1108, %v1104
        %v1445 = vpack.c.b16 %v1109, %v1105
        %v1446 = vpack.c.b16 %v1114, %v1110
        %v1447 = vpack.c.b16 %v1115, %v1111
        %v1448 = vpack.c.b16 %v1116, %v1112
        %v1449 = vpack.c.b16 %v1117, %v1113
        %v1450 = vpack.c.b16 %v1122, %v1118
        %v1451 = vpack.c.b16 %v1123, %v1119
        %v1452 = vpack.c.b16 %v1124, %v1120
        %v1453 = vpack.c.b16 %v1125, %v1121
        %v1454 = vpack.c.b16 %v1130, %v1126
        %v1455 = vpack.c.b16 %v1131, %v1127
        %v1456 = vpack.c.b16 %v1132, %v1128
        %v1457 = vpack.c.b16 %v1133, %v1129
        %v1458 = vpack.c.b16 %v1138, %v1134
        %v1459 = vpack.c.b16 %v1139, %v1135
        %v1460 = vpack.c.b16 %v1140, %v1136
        %v1461 = vpack.c.b16 %v1141, %v1137
        %v1462 = vpack.c.b16 %v1146, %v1142
        %v1463 = vpack.c.b16 %v1147, %v1143
        %v1464 = vpack.c.b16 %v1148, %v1144
        %v1465 = vpack.c.b16 %v1149, %v1145
        %v1466 = vpack.c.b16 %v1154, %v1150
        %v1467 = vpack.c.b16 %v1155, %v1151
        %v1468 = vpack.c.b16 %v1156, %v1152
        %v1469 = vpack.c.b16 %v1157, %v1153
        %v1470 = vpack.c.b16 %v1162, %v1158
        %v1471 = vpack.c.b16 %v1163, %v1159
        %v1472 = vpack.c.b16 %v1164, %v1160
        %v1473 = vpack.c.b16 %v1165, %v1161
        %v1474 = vpack.c.b16 %v1170, %v1166
        %v1475 = vpack.c.b16 %v1171, %v1167
        %v1476 = vpack.c.b16 %v1172, %v1168
        %v1477 = vpack.c.b16 %v1173, %v1169
        %v1478 = vpack.c.b16 %v1178, %v1174
        %v1479 = vpack.c.b16 %v1179, %v1175
        %v1480 = vpack.c.b16 %v1180, %v1176
        %v1481 = vpack.c.b16 %v1181, %v1177
        %v1482 = vpack.c.b16 %v1186, %v1182
        %v1483 = vpack.c.b16 %v1187, %v1183
        %v1484 = vpack.c.b16 %v1188, %v1184
        %v1485 = vpack.c.b16 %v1189, %v1185
        %v1486 = vpack.c.b16 %v1194, %v1190
        %v1487 = vpack.c.b16 %v1195, %v1191
        %v1488 = vpack.c.b16 %v1196, %v1192
        %v1489 = vpack.c.b16 %v1197, %v1193
        %v1490 = vpack.c.b16 %v1202, %v1198
        %v1491 = vpack.c.b16 %v1203, %v1199
        %v1492 = vpack.c.b16 %v1204, %v1200
        %v1493 = vpack.c.b16 %v1205, %v1201
        %v1494 = vpack.c.b16 %v1210, %v1206
        %v1495 = vpack.c.b16 %v1211, %v1207
        %v1496 = vpack.c.b16 %v1212, %v1208
        %v1497 = vpack.c.b16 %v1213, %v1209
        %v1498 = vpack.c.b16 %v1218, %v1214
        %v1499 = vpack.c.b16 %v1219, %v1215
        %v1500 = vpack.c.b16 %v1220, %v1216
        %v1501 = vpack.c.b16 %v1221, %v1217
        %v1502 = vpack.c.b16 %v1226, %v1222
        %v1503 = vpack.c.b16 %v1227, %v1223
        %v1504 = vpack.c.b16 %v1228, %v1224
        %v1505 = vpack.c.b16 %v1229, %v1225
        %v1506 = vpack.c.b16 %v1234, %v1230
        %v1507 = vpack.c.b16 %v1235, %v1231
        %v1508 = vpack.c.b16 %v1236, %v1232
        %v1509 = vpack.c.b16 %v1237, %v1233
        %v1510 = vpack.c.b16 %v1242, %v1238
        %v1511 = vpack.c.b16 %v1243, %v1239
        %v1512 = vpack.c.b16 %v1244, %v1240
        %v1513 = vpack.c.b16 %v1245, %v1241
        %v1514 = vpack.c.b16 %v1250, %v1246
        %v1515 = vpack.c.b16 %v1251, %v1247
        %v1516 = vpack.c.b16 %v1252, %v1248
        %v1517 = vpack.c.b16 %v1253, %v1249
        %v1518 = vpack.c.b16 %v1258, %v1254
        %v1519 = vpack.c.b16 %v1259, %v1255
        %v1520 = vpack.c.b16 %v1260, %v1256
        %v1521 = vpack.c.b16 %v1261, %v1257
        %v1522 = vpack.c.b16 %v1266, %v1262
        %v1523 = vpack.c.b16 %v1267, %v1263
        %v1524 = vpack.c.b16 %v1268, %v1264
        %v1525 = vpack.c.b16 %v1269, %v1265
        %v1526 = vpack.c.b16 %v1274, %v1270
        %v1527 = vpack.c.b16 %v1275, %v1271
        %v1528 = vpack.c.b16 %v1276, %v1272
        %v1529 = vpack.c.b16 %v1277, %v1273
        %v1530 = vpack.c.b16 %v1282, %v1278
        %v1531 = vpack.c.b16 %v1283, %v1279
        %v1532 = vpack.c.b16 %v1284, %v1280
        %v1533 = vpack.c.b16 %v1285, %v1281
        %v1534 = vpack.c.b16 %v1290, %v1286
        %v1535 = vpack.c.b16 %v1291, %v1287
        %v1536 = vpack.c.b16 %v1292, %v1288
        %v1537 = vpack.c.b16 %v1293, %v1289
        %v1538 = vpack.c.b16 %v1298, %v1294
        %v1539 = vpack.c.b16 %v1299, %v1295
        %v1540 = vpack.c.b16 %v1300, %v1296
        %v1541 = vpack.c.b16 %v1301, %v1297
        %v1542 = vpack.c.b16 %v1306, %v1302
        %v1543 = vpack.c.b16 %v1307, %v1303
        %v1544 = vpack.c.b16 %v1308, %v1304
        %v1545 = vpack.c.b16 %v1309, %v1305
        %v1546 = vpack.c.b16 %v1314, %v1310
        %v1547 = vpack.c.b16 %v1315, %v1311
        %v1548 = vpack.c.b16 %v1316, %v1312
        %v1549 = vpack.c.b16 %v1317, %v1313
        %v1550 = vpack.c.b16 %v1322, %v1318
        %v1551 = vpack.c.b16 %v1323, %v1319
        %v1552 = vpack.c.b16 %v1324, %v1320
        %v1553 = vpack.c.b16 %v1325, %v1321
        %v1554 = vpack.c.b16 %v1330, %v1326
        %v1555 = vpack.c.b16 %v1331, %v1327
        %v1556 = vpack.c.b16 %v1332, %v1328
        %v1557 = vpack.c.b16 %v1333, %v1329
        %1782 = vmatprep.subr.bf16.mxu0 %v1335
        %1783 = vmatpush1.bf16.msra.mxu0 %v1334
        %1784 = vmatprep.subr.bf16.mxu0 %v1339
        %1785 = vmatpush1.bf16.msra.mxu0 %v1338
        %1786 = vmatprep.subr.bf16.mxu0 %v1343
        %1787 = vmatpush1.bf16.msra.mxu0 %v1342
        %1788 = vmatprep.subr.bf16.mxu0 %v1347
        %1789 = vmatpush1.bf16.msra.mxu0 %v1346
        %1790 = vmatprep.subr.bf16.mxu0 %v1351
        %1791 = vmatpush1.bf16.msra.mxu0 %v1350
        %1792 = vmatprep.subr.bf16.mxu0 %v1355
        %1793 = vmatpush1.bf16.msra.mxu0 %v1354
        %1794 = vmatprep.subr.bf16.mxu0 %v1359
        %1795 = vmatpush1.bf16.msra.mxu0 %v1358
        %1796 = vmatprep.subr.bf16.mxu0 %v1363
        %1797 = vmatpush1.bf16.msra.mxu0 %v1362
        %1798 = vmatprep.subr.bf16.mxu0 %v1367
        %1799 = vmatpush1.bf16.msra.mxu0 %v1366
        %1800 = vmatprep.subr.bf16.mxu0 %v1371
        %1801 = vmatpush1.bf16.msra.mxu0 %v1370
        %1802 = vmatprep.subr.bf16.mxu0 %v1375
        %1803 = vmatpush1.bf16.msra.mxu0 %v1374
        %1804 = vmatprep.subr.bf16.mxu0 %v1379
        %1805 = vmatpush1.bf16.msra.mxu0 %v1378
        %1806 = vmatprep.subr.bf16.mxu0 %v1383
        %1807 = vmatpush1.bf16.msra.mxu0 %v1382
        %1808 = vmatprep.subr.bf16.mxu0 %v1387
        %1809 = vmatpush1.bf16.msra.mxu0 %v1386
        %1810 = vmatprep.subr.bf16.mxu0 %v1391
        %1811 = vmatpush1.bf16.msra.mxu0 %v1390
        %1812 = vmatprep.subr.bf16.mxu0 %v1395
        %1813 = vmatpush1.bf16.msra.mxu0 %v1394
        %1814 = vmatprep.mubr.bf16.mxu0 %v346
        %1815 = vmatmul.mubr.bf16.gmra.mrb[0].mxu0 %v330
        %v1816 = vpop.f32.mrb[0].mxu0
        %v1817 = vadd.f32 %v649, %v1816
        %v1818 = vpop.f32.mrb[0].mxu0
        %v1819 = vadd.f32 %v653, %v1818
        %v1820 = vpop.f32.mrb[0].mxu0
        %v1821 = vadd.f32 %v649, %v1820
        %v1822 = vpop.f32.mrb[0].mxu0
        %v1823 = vadd.f32 %v653, %v1822
        %1824 = vmatprep.mubr.bf16.mxu0 %v349
        %1825 = vmatmul.mubr.bf16.gmra.mrb[0].mxu0 %v331
        %v1826 = vpop.f32.mrb[0].mxu0
        %v1827 = vadd.f32 %v649, %v1826
        %v1828 = vpop.f32.mrb[0].mxu0
        %v1829 = vadd.f32 %v653, %v1828
        %v1830 = vpop.f32.mrb[0].mxu0
        %v1831 = vpop.f32.mrb[0].mxu0
        %1832 = vdwg.mxu0
        %1833 = vmatprep.subr.bf16.mxu0 %v1399
        %1834 = vmatpush1.bf16.msra.mxu0 %v1398
        %1835 = vmatprep.subr.bf16.mxu0 %v1403
        %1836 = vmatpush1.bf16.msra.mxu0 %v1402
        %1837 = vmatprep.subr.bf16.mxu0 %v1407
        %1838 = vmatpush1.bf16.msra.mxu0 %v1406
        %1839 = vmatprep.subr.bf16.mxu0 %v1411
        %1840 = vmatpush1.bf16.msra.mxu0 %v1410
        %1841 = vmatprep.subr.bf16.mxu0 %v1415
        %1842 = vmatpush1.bf16.msra.mxu0 %v1414
        %1843 = vmatprep.subr.bf16.mxu0 %v1419
        %1844 = vmatpush1.bf16.msra.mxu0 %v1418
        %1845 = vmatprep.subr.bf16.mxu0 %v1423
        %1846 = vmatpush1.bf16.msra.mxu0 %v1422
        %1847 = vmatprep.subr.bf16.mxu0 %v1427
        %1848 = vmatpush1.bf16.msra.mxu0 %v1426
        %1849 = vmatprep.subr.bf16.mxu0 %v1431
        %1850 = vmatpush1.bf16.msra.mxu0 %v1430
        %1851 = vmatprep.subr.bf16.mxu0 %v1435
        %1852 = vmatpush1.bf16.msra.mxu0 %v1434
        %1853 = vmatprep.subr.bf16.mxu0 %v1439
        %1854 = vmatpush1.bf16.msra.mxu0 %v1438
        %1855 = vmatprep.subr.bf16.mxu0 %v1443
        %1856 = vmatpush1.bf16.msra.mxu0 %v1442
        %1857 = vmatprep.subr.bf16.mxu0 %v1447
        %1858 = vmatpush1.bf16.msra.mxu0 %v1446
        %1859 = vmatprep.subr.bf16.mxu0 %v1451
        %1860 = vmatpush1.bf16.msra.mxu0 %v1450
        %1861 = vmatprep.subr.bf16.mxu0 %v1455
        %1862 = vmatpush1.bf16.msra.mxu0 %v1454
        %1863 = vmatprep.subr.bf16.mxu0 %v1459
        %1864 = vmatpush1.bf16.msra.mxu0 %v1458
        %1865 = vmatprep.mubr.bf16.mxu0 %v373
        %1866 = vmatmul.mubr.bf16.gmra.mrb[0].mxu0 %v355
        %v1867 = vpop.f32.mrb[0].mxu0
        %v1868 = vadd.f32 %v1817, %v1867
        %v1869 = vpop.f32.mrb[0].mxu0
        %v1870 = vadd.f32 %v1819, %v1869
        %v1871 = vpop.f32.mrb[0].mxu0
        %v1872 = vadd.f32 %v1821, %v1871
        %v1873 = vpop.f32.mrb[0].mxu0
        %v1874 = vadd.f32 %v1823, %v1873
        %1875 = vmatprep.mubr.bf16.mxu0 %v372
        %1876 = vmatmul.mubr.bf16.gmra.mrb[0].mxu0 %v354
        %v1877 = vpop.f32.mrb[0].mxu0
        %v1878 = vadd.f32 %v1827, %v1877
        %v1879 = vpop.f32.mrb[0].mxu0
        %v1880 = vadd.f32 %v1829, %v1879
        %v1881 = vpop.f32.mrb[0].mxu0
        %v1882 = vpop.f32.mrb[0].mxu0
        %1883 = vdwg.mxu0
        %1884 = vmatprep.subr.bf16.mxu0 %v1463
        %1885 = vmatpush1.bf16.msra.mxu0 %v1462
        %1886 = vmatprep.subr.bf16.mxu0 %v1467
        %1887 = vmatpush1.bf16.msra.mxu0 %v1466
        %1888 = vmatprep.subr.bf16.mxu0 %v1471
        %1889 = vmatpush1.bf16.msra.mxu0 %v1470
        %1890 = vmatprep.subr.bf16.mxu0 %v1475
        %1891 = vmatpush1.bf16.msra.mxu0 %v1474
        %1892 = vmatprep.subr.bf16.mxu0 %v1479
        %1893 = vmatpush1.bf16.msra.mxu0 %v1478
        %1894 = vmatprep.subr.bf16.mxu0 %v1483
        %1895 = vmatpush1.bf16.msra.mxu0 %v1482
        %1896 = vmatprep.subr.bf16.mxu0 %v1487
        %1897 = vmatpush1.bf16.msra.mxu0 %v1486
        %1898 = vmatprep.subr.bf16.mxu0 %v1491
        %1899 = vmatpush1.bf16.msra.mxu0 %v1490
        %1900 = vmatprep.subr.bf16.mxu0 %v1495
        %1901 = vmatpush1.bf16.msra.mxu0 %v1494
        %1902 = vmatprep.subr.bf16.mxu0 %v1499
        %1903 = vmatpush1.bf16.msra.mxu0 %v1498
        %1904 = vmatprep.subr.bf16.mxu0 %v1503
        %1905 = vmatpush1.bf16.msra.mxu0 %v1502
        %1906 = vmatprep.subr.bf16.mxu0 %v1507
        %1907 = vmatpush1.bf16.msra.mxu0 %v1506
        %1908 = vmatprep.subr.bf16.mxu0 %v1511
        %1909 = vmatpush1.bf16.msra.mxu0 %v1510
        %1910 = vmatprep.subr.bf16.mxu0 %v1515
        %1911 = vmatpush1.bf16.msra.mxu0 %v1514
        %1912 = vmatprep.subr.bf16.mxu0 %v1519
        %1913 = vmatpush1.bf16.msra.mxu0 %v1518
        %1914 = vmatprep.subr.bf16.mxu0 %v1523
        %1915 = vmatpush1.bf16.msra.mxu0 %v1522
        %1916 = vmatprep.mubr.bf16.mxu0 %v389
        %1917 = vmatmul.mubr.bf16.gmra.mrb[0].mxu0 %v379
        %v1918 = vpop.f32.mrb[0].mxu0
        %v1919 = vadd.f32 %v1868, %v1918
        %v1920 = vpop.f32.mrb[0].mxu0
        %v1921 = vadd.f32 %v1870, %v1920
        %v1922 = vpop.f32.mrb[0].mxu0
        %v1923 = vadd.f32 %v1872, %v1922
        %v1924 = vpop.f32.mrb[0].mxu0
        %v1925 = vadd.f32 %v1874, %v1924
        %1926 = vmatprep.mubr.bf16.mxu0 %v388
        %1927 = vmatmul.mubr.bf16.gmra.mrb[0].mxu0 %v378
        %v1928 = vpop.f32.mrb[0].mxu0
        %v1929 = vadd.f32 %v1878, %v1928
        %v1930 = vpop.f32.mrb[0].mxu0
        %v1931 = vadd.f32 %v1880, %v1930
        %v1932 = vpop.f32.mrb[0].mxu0
        %v1933 = vpop.f32.mrb[0].mxu0
        %1934 = vdwg.mxu0
        %1935 = vmatprep.subr.bf16.mxu0 %v1527
        %1936 = vmatpush1.bf16.msra.mxu0 %v1526
        %1937 = vmatprep.subr.bf16.mxu0 %v1531
        %1938 = vmatpush1.bf16.msra.mxu0 %v1530
        %1939 = vmatprep.subr.bf16.mxu0 %v1535
        %1940 = vmatpush1.bf16.msra.mxu0 %v1534
        %1941 = vmatprep.subr.bf16.mxu0 %v1539
        %1942 = vmatpush1.bf16.msra.mxu0 %v1538
        %1943 = vmatprep.subr.bf16.mxu0 %v1543
        %1944 = vmatpush1.bf16.msra.mxu0 %v1542
        %1945 = vmatprep.subr.bf16.mxu0 %v1547
        %1946 = vmatpush1.bf16.msra.mxu0 %v1546
        %1947 = vmatprep.subr.bf16.mxu0 %v1551
        %1948 = vmatpush1.bf16.msra.mxu0 %v1550
        %1949 = vmatprep.subr.bf16.mxu0 %v1555
        %1950 = vmatpush1.bf16.msra.mxu0 %v1554
        %1951 = vmatprep.subr.bf16.mxu0 0
        %1952 = vmatpush1.bf16.msra.mxu0 0
        %1953 = vmatprep.subr.bf16.mxu0 0
        %1954 = vmatpush1.bf16.msra.mxu0 0
        %1955 = vmatprep.subr.bf16.mxu0 0
        %1956 = vmatpush1.bf16.msra.mxu0 0
        %1957 = vmatprep.subr.bf16.mxu0 0
        %1958 = vmatpush1.bf16.msra.mxu0 0
        %1959 = vmatprep.subr.bf16.mxu0 0
        %1960 = vmatpush1.bf16.msra.mxu0 0
        %1961 = vmatprep.subr.bf16.mxu0 0
        %1962 = vmatpush1.bf16.msra.mxu0 0
        %1963 = vmatprep.subr.bf16.mxu0 0
        %1964 = vmatpush1.bf16.msra.mxu0 0
        %1965 = vmatprep.subr.bf16.mxu0 0
        %1966 = vmatpush1.bf16.msra.mxu0 0
        %1967 = vmatprep.mubr.bf16.mxu0 0
        %1968 = vmatmul.mubr.bf16.gmra.mrb[0].mxu0 %v395
        %v1969 = vpop.f32.mrb[0].mxu0
        %v1970 = vadd.f32 %v1919, %v1969
        %v1971 = vpop.f32.mrb[0].mxu0
        %v1972 = vadd.f32 %v1921, %v1971
        %v1973 = vpop.f32.mrb[0].mxu0
        %v1974 = vadd.f32 %v1923, %v1973
        %v1975 = vpop.f32.mrb[0].mxu0
        %v1976 = vadd.f32 %v1925, %v1975
        %1977 = vmatprep.mubr.bf16.mxu0 0
        %1978 = vmatmul.mubr.bf16.gmra.mrb[0].mxu0 %v394
        %v1979 = vpop.f32.mrb[0].mxu0
        %v1980 = vadd.f32 %v1929, %v1979
        %v1981 = vpop.f32.mrb[0].mxu0
        %v1982 = vadd.f32 %v1931, %v1981
        %v1983 = vpop.f32.mrb[0].mxu0
        %v1984 = vpop.f32.mrb[0].mxu0
        %1985 = vdwg.mxu0
        %1986 = vmatprep.subr.bf16.mxu0 %v1337
        %1987 = vmatpush1.bf16.msra.mxu0 %v1336
        %1988 = vmatprep.subr.bf16.mxu0 %v1341
        %1989 = vmatpush1.bf16.msra.mxu0 %v1340
        %1990 = vmatprep.subr.bf16.mxu0 %v1345
        %1991 = vmatpush1.bf16.msra.mxu0 %v1344
        %1992 = vmatprep.subr.bf16.mxu0 %v1349
        %1993 = vmatpush1.bf16.msra.mxu0 %v1348
        %1994 = vmatprep.subr.bf16.mxu0 %v1353
        %1995 = vmatpush1.bf16.msra.mxu0 %v1352
        %1996 = vmatprep.subr.bf16.mxu0 %v1357
        %1997 = vmatpush1.bf16.msra.mxu0 %v1356
        %1998 = vmatprep.subr.bf16.mxu0 %v1361
        %1999 = vmatpush1.bf16.msra.mxu0 %v1360
        %2000 = vmatprep.subr.bf16.mxu0 %v1365
        %2001 = vmatpush1.bf16.msra.mxu0 %v1364
        %2002 = vmatprep.subr.bf16.mxu0 %v1369
        %2003 = vmatpush1.bf16.msra.mxu0 %v1368
        %2004 = vmatprep.subr.bf16.mxu0 %v1373
        %2005 = vmatpush1.bf16.msra.mxu0 %v1372
        %2006 = vmatprep.subr.bf16.mxu0 %v1377
        %2007 = vmatpush1.bf16.msra.mxu0 %v1376
        %2008 = vmatprep.subr.bf16.mxu0 %v1381
        %2009 = vmatpush1.bf16.msra.mxu0 %v1380
        %2010 = vmatprep.subr.bf16.mxu0 %v1385
        %2011 = vmatpush1.bf16.msra.mxu0 %v1384
        %2012 = vmatprep.subr.bf16.mxu0 %v1389
        %2013 = vmatpush1.bf16.msra.mxu0 %v1388
        %2014 = vmatprep.subr.bf16.mxu0 %v1393
        %2015 = vmatpush1.bf16.msra.mxu0 %v1392
        %2016 = vmatprep.subr.bf16.mxu0 %v1397
        %2017 = vmatpush1.bf16.msra.mxu0 %v1396
        %2018 = vmatprep.mubr.bf16.mxu0 %v346
        %2019 = vmatmul.mubr.bf16.gmra.mrb[0].mxu0 %v330
        %v2020 = vpop.f32.mrb[0].mxu0
        %v2021 = vadd.f32 %v657, %v2020
        %v2022 = vpop.f32.mrb[0].mxu0
        %v2023 = vadd.f32 %v661, %v2022
        %v2024 = vpop.f32.mrb[0].mxu0
        %v2025 = vadd.f32 %v657, %v2024
        %v2026 = vpop.f32.mrb[0].mxu0
        %v2027 = vadd.f32 %v661, %v2026
        %2028 = vmatprep.mubr.bf16.mxu0 %v349
        %2029 = vmatmul.mubr.bf16.gmra.mrb[0].mxu0 %v331
        %v2030 = vpop.f32.mrb[0].mxu0
        %v2031 = vadd.f32 %v657, %v2030
        %v2032 = vpop.f32.mrb[0].mxu0
        %v2033 = vadd.f32 %v661, %v2032
        %v2034 = vpop.f32.mrb[0].mxu0
        %v2035 = vpop.f32.mrb[0].mxu0
        %2036 = vdwg.mxu0
        %2037 = vmatprep.subr.bf16.mxu0 %v1401
        %2038 = vmatpush1.bf16.msra.mxu0 %v1400
        %2039 = vmatprep.subr.bf16.mxu0 %v1405
        %2040 = vmatpush1.bf16.msra.mxu0 %v1404
        %2041 = vmatprep.subr.bf16.mxu0 %v1409
        %2042 = vmatpush1.bf16.msra.mxu0 %v1408
        %2043 = vmatprep.subr.bf16.mxu0 %v1413
        %2044 = vmatpush1.bf16.msra.mxu0 %v1412
        %2045 = vmatprep.subr.bf16.mxu0 %v1417
        %2046 = vmatpush1.bf16.msra.mxu0 %v1416
        %2047 = vmatprep.subr.bf16.mxu0 %v1421
        %2048 = vmatpush1.bf16.msra.mxu0 %v1420
        %2049 = vmatprep.subr.bf16.mxu0 %v1425
        %2050 = vmatpush1.bf16.msra.mxu0 %v1424
        %2051 = vmatprep.subr.bf16.mxu0 %v1429
        %2052 = vmatpush1.bf16.msra.mxu0 %v1428
        %2053 = vmatprep.subr.bf16.mxu0 %v1433
        %2054 = vmatpush1.bf16.msra.mxu0 %v1432
        %2055 = vmatprep.subr.bf16.mxu0 %v1437
        %2056 = vmatpush1.bf16.msra.mxu0 %v1436
        %2057 = vmatprep.subr.bf16.mxu0 %v1441
        %2058 = vmatpush1.bf16.msra.mxu0 %v1440
        %2059 = vmatprep.subr.bf16.mxu0 %v1445
        %2060 = vmatpush1.bf16.msra.mxu0 %v1444
        %2061 = vmatprep.subr.bf16.mxu0 %v1449
        %2062 = vmatpush1.bf16.msra.mxu0 %v1448
        %2063 = vmatprep.subr.bf16.mxu0 %v1453
        %2064 = vmatpush1.bf16.msra.mxu0 %v1452
        %2065 = vmatprep.subr.bf16.mxu0 %v1457
        %2066 = vmatpush1.bf16.msra.mxu0 %v1456
        %2067 = vmatprep.subr.bf16.mxu0 %v1461
        %2068 = vmatpush1.bf16.msra.mxu0 %v1460
        %2069 = vmatprep.mubr.bf16.mxu0 %v373
        %2070 = vmatmul.mubr.bf16.gmra.mrb[0].mxu0 %v355
        %v2071 = vpop.f32.mrb[0].mxu0
        %v2072 = vadd.f32 %v2021, %v2071
        %v2073 = vpop.f32.mrb[0].mxu0
        %v2074 = vadd.f32 %v2023, %v2073
        %v2075 = vpop.f32.mrb[0].mxu0
        %v2076 = vadd.f32 %v2025, %v2075
        %v2077 = vpop.f32.mrb[0].mxu0
        %v2078 = vadd.f32 %v2027, %v2077
        %2079 = vmatprep.mubr.bf16.mxu0 %v372
        %2080 = vmatmul.mubr.bf16.gmra.mrb[0].mxu0 %v354
        %v2081 = vpop.f32.mrb[0].mxu0
        %v2082 = vadd.f32 %v2031, %v2081
        %v2083 = vpop.f32.mrb[0].mxu0
        %v2084 = vadd.f32 %v2033, %v2083
        %v2085 = vpop.f32.mrb[0].mxu0
        %v2086 = vpop.f32.mrb[0].mxu0
        %2087 = vdwg.mxu0
        %2088 = vmatprep.subr.bf16.mxu0 %v1465
        %2089 = vmatpush1.bf16.msra.mxu0 %v1464
        %2090 = vmatprep.subr.bf16.mxu0 %v1469
        %2091 = vmatpush1.bf16.msra.mxu0 %v1468
        %2092 = vmatprep.subr.bf16.mxu0 %v1473
        %2093 = vmatpush1.bf16.msra.mxu0 %v1472
        %2094 = vmatprep.subr.bf16.mxu0 %v1477
        %2095 = vmatpush1.bf16.msra.mxu0 %v1476
        %2096 = vmatprep.subr.bf16.mxu0 %v1481
        %2097 = vmatpush1.bf16.msra.mxu0 %v1480
        %2098 = vmatprep.subr.bf16.mxu0 %v1485
        %2099 = vmatpush1.bf16.msra.mxu0 %v1484
        %2100 = vmatprep.subr.bf16.mxu0 %v1489
        %2101 = vmatpush1.bf16.msra.mxu0 %v1488
        %2102 = vmatprep.subr.bf16.mxu0 %v1493
        %2103 = vmatpush1.bf16.msra.mxu0 %v1492
        %2104 = vmatprep.subr.bf16.mxu0 %v1497
        %2105 = vmatpush1.bf16.msra.mxu0 %v1496
        %2106 = vmatprep.subr.bf16.mxu0 %v1501
        %2107 = vmatpush1.bf16.msra.mxu0 %v1500
        %2108 = vmatprep.subr.bf16.mxu0 %v1505
        %2109 = vmatpush1.bf16.msra.mxu0 %v1504
        %2110 = vmatprep.subr.bf16.mxu0 %v1509
        %2111 = vmatpush1.bf16.msra.mxu0 %v1508
        %2112 = vmatprep.subr.bf16.mxu0 %v1513
        %2113 = vmatpush1.bf16.msra.mxu0 %v1512
        %2114 = vmatprep.subr.bf16.mxu0 %v1517
        %2115 = vmatpush1.bf16.msra.mxu0 %v1516
        %2116 = vmatprep.subr.bf16.mxu0 %v1521
        %2117 = vmatpush1.bf16.msra.mxu0 %v1520
        %2118 = vmatprep.subr.bf16.mxu0 %v1525
        %2119 = vmatpush1.bf16.msra.mxu0 %v1524
        %2120 = vmatprep.mubr.bf16.mxu0 %v389
        %2121 = vmatmul.mubr.bf16.gmra.mrb[0].mxu0 %v379
        %v2122 = vpop.f32.mrb[0].mxu0
        %v2123 = vadd.f32 %v2072, %v2122
        %v2124 = vpop.f32.mrb[0].mxu0
        %v2125 = vadd.f32 %v2074, %v2124
        %v2126 = vpop.f32.mrb[0].mxu0
        %v2127 = vadd.f32 %v2076, %v2126
        %v2128 = vpop.f32.mrb[0].mxu0
        %v2129 = vadd.f32 %v2078, %v2128
        %2130 = vmatprep.mubr.bf16.mxu0 %v388
        %2131 = vmatmul.mubr.bf16.gmra.mrb[0].mxu0 %v378
        %v2132 = vpop.f32.mrb[0].mxu0
        %v2133 = vadd.f32 %v2082, %v2132
        %v2134 = vpop.f32.mrb[0].mxu0
        %v2135 = vadd.f32 %v2084, %v2134
        %v2136 = vpop.f32.mrb[0].mxu0
        %v2137 = vpop.f32.mrb[0].mxu0
        %2138 = vdwg.mxu0
        %2139 = vmatprep.subr.bf16.mxu0 %v1529
        %2140 = vmatpush1.bf16.msra.mxu0 %v1528
        %2141 = vmatprep.subr.bf16.mxu0 %v1533
        %2142 = vmatpush1.bf16.msra.mxu0 %v1532
        %2143 = vmatprep.subr.bf16.mxu0 %v1537
        %2144 = vmatpush1.bf16.msra.mxu0 %v1536
        %2145 = vmatprep.subr.bf16.mxu0 %v1541
        %2146 = vmatpush1.bf16.msra.mxu0 %v1540
        %2147 = vmatprep.subr.bf16.mxu0 %v1545
        %2148 = vmatpush1.bf16.msra.mxu0 %v1544
        %2149 = vmatprep.subr.bf16.mxu0 %v1549
        %2150 = vmatpush1.bf16.msra.mxu0 %v1548
        %2151 = vmatprep.subr.bf16.mxu0 %v1553
        %2152 = vmatpush1.bf16.msra.mxu0 %v1552
        %2153 = vmatprep.subr.bf16.mxu0 %v1557
        %2154 = vmatpush1.bf16.msra.mxu0 %v1556
        %2155 = vmatprep.subr.bf16.mxu0 0
        %2156 = vmatpush1.bf16.msra.mxu0 0
        %2157 = vmatprep.subr.bf16.mxu0 0
        %2158 = vmatpush1.bf16.msra.mxu0 0
        %2159 = vmatprep.subr.bf16.mxu0 0
        %2160 = vmatpush1.bf16.msra.mxu0 0
        %2161 = vmatprep.subr.bf16.mxu0 0
        %2162 = vmatpush1.bf16.msra.mxu0 0
        %2163 = vmatprep.subr.bf16.mxu0 0
        %2164 = vmatpush1.bf16.msra.mxu0 0
        %2165 = vmatprep.subr.bf16.mxu0 0
        %2166 = vmatpush1.bf16.msra.mxu0 0
        %2167 = vmatprep.subr.bf16.mxu0 0
        %2168 = vmatpush1.bf16.msra.mxu0 0
        %2169 = vmatprep.subr.bf16.mxu0 0
        %2170 = vmatpush1.bf16.msra.mxu0 0
        %2171 = vmatprep.mubr.bf16.mxu0 0
        %2172 = vmatmul.mubr.bf16.gmra.mrb[0].mxu0 %v395
        %v2173 = vpop.f32.mrb[0].mxu0
        %v2174 = vadd.f32 %v2123, %v2173
        %v2175 = vpop.f32.mrb[0].mxu0
        %v2176 = vadd.f32 %v2125, %v2175
        %v2177 = vpop.f32.mrb[0].mxu0
        %v2178 = vadd.f32 %v2127, %v2177
        %v2179 = vpop.f32.mrb[0].mxu0
        %v2180 = vadd.f32 %v2129, %v2179
        %2181 = vmatprep.mubr.bf16.mxu0 0
        %2182 = vmatmul.mubr.bf16.gmra.mrb[0].mxu0 %v394
        %v2183 = vpop.f32.mrb[0].mxu0
        %v2184 = vadd.f32 %v2133, %v2183
        %v2185 = vpop.f32.mrb[0].mxu0
        %v2186 = vadd.f32 %v2135, %v2185
        %v2187 = vpop.f32.mrb[0].mxu0
        %v2188 = vpop.f32.mrb[0].mxu0
        %2189 = vdwg.mxu0
        %v2190 = vmax.f32 %v1970, 0.0
        %v2191 = vmax.f32 %v1972, 0.0
        %v2192 = vmax.f32 %v2174, 0.0
        %v2193 = vmax.f32 %v2176, 0.0
        %v2194 = vmax.f32 %v1974, 0.0
        %v2195 = vmax.f32 %v1976, 0.0
        %v2196 = vmax.f32 %v2178, 0.0
        %v2197 = vmax.f32 %v2180, 0.0
        %v2198 = vmax.f32 %v1980, 0.0
        %v2199 = vmax.f32 %v1982, 0.0
        %v2200 = vmax.f32 %v2184, 0.0
        %v2201 = vmax.f32 %v2186, 0.0
        %v2202 = vlaneseq
        %v2203 = vshrl.u32 %v2202, 7
        %v2204 = vsub.s32 1, %v2203
        %v2205 = vrot.slane %v622, %v2204
        %v2206 = vlaneseq
        %v2207 = vshrl.u32 %v2206, 7
        %v2208 = vsub.s32 5, %v2207
        %v2209 = vrot.slane %v622, %v2208
        %v2210 = vlaneseq
        %v2211 = vshrl.u32 %v2210, 7
        %v2212 = vsub.s32 1, %v2211
        %v2213 = vrot.slane %v623, %v2212
        %v2214 = vlaneseq
        %v2215 = vshrl.u32 %v2214, 7
        %v2216 = vsub.s32 5, %v2215
        %v2217 = vrot.slane %v623, %v2216
        %v2222 = vlaneseq
        %v2223 = vshrl.u32 %v2222, 7
        %v2224 = vsub.s32 1, %v2223
        %v2225 = vrot.slane %v2205, %v2224
        %v2226 = vlaneseq
        %v2227 = vshrl.u32 %v2226, 7
        %v2228 = vsub.s32 1, %v2227
        %v2229 = vrot.slane %v2209, %v2228
        %v2230 = vlaneseq
        %v2231 = vshrl.u32 %v2230, 7
        %v2232 = vsub.s32 1, %v2231
        %v2233 = vrot.slane %v2213, %v2232
        %v2234 = vlaneseq
        %v2235 = vshrl.u32 %v2234, 7
        %v2236 = vsub.s32 1, %v2235
        %v2237 = vrot.slane %v2217, %v2236
        %v2238 = vmul.f32 %v2190, %v2225
        %v2239 = vmul.f32 %v2191, %v2229
        %v2240 = vmul.f32 %v2192, %v2233
        %v2241 = vmul.f32 %v2193, %v2237
        %v2242 = vmul.f32 %v2194, %v2225
        %v2243 = vmul.f32 %v2195, %v2229
        %v2244 = vmul.f32 %v2196, %v2233
        %v2245 = vmul.f32 %v2197, %v2237
        %v2246 = vmul.f32 %v2198, %v2225
        %v2247 = vmul.f32 %v2199, %v2229
        %v2248 = vmul.f32 %v2200, %v2233
        %v2249 = vmul.f32 %v2201, %v2237
        %v2250 = vlaneseq
        %v2251 = vshrl.u32 %v2250, 7
        %v2252 = vsub.s32 2, %v2251
        %v2253 = vrot.slane %v622, %v2252
        %v2254 = vlaneseq
        %v2255 = vshrl.u32 %v2254, 7
        %v2256 = vsub.s32 6, %v2255
        %v2257 = vrot.slane %v622, %v2256
        %v2258 = vlaneseq
        %v2259 = vshrl.u32 %v2258, 7
        %v2260 = vsub.s32 2, %v2259
        %v2261 = vrot.slane %v623, %v2260
        %v2262 = vlaneseq
        %v2263 = vshrl.u32 %v2262, 7
        %v2264 = vsub.s32 6, %v2263
        %v2265 = vrot.slane %v623, %v2264
        %v2270 = vlaneseq
        %v2271 = vshrl.u32 %v2270, 7
        %v2272 = vsub.s32 2, %v2271
        %v2273 = vrot.slane %v2253, %v2272
        %v2274 = vlaneseq
        %v2275 = vshrl.u32 %v2274, 7
        %v2276 = vsub.s32 2, %v2275
        %v2277 = vrot.slane %v2257, %v2276
        %v2278 = vlaneseq
        %v2279 = vshrl.u32 %v2278, 7
        %v2280 = vsub.s32 2, %v2279
        %v2281 = vrot.slane %v2261, %v2280
        %v2282 = vlaneseq
        %v2283 = vshrl.u32 %v2282, 7
        %v2284 = vsub.s32 2, %v2283
        %v2285 = vrot.slane %v2265, %v2284
        %v2286 = vadd.f32 %v2238, %v2273
        %v2287 = vadd.f32 %v2239, %v2277
        %v2288 = vadd.f32 %v2240, %v2281
        %v2289 = vadd.f32 %v2241, %v2285
        %v2290 = vadd.f32 %v2242, %v2273
        %v2291 = vadd.f32 %v2243, %v2277
        %v2292 = vadd.f32 %v2244, %v2281
        %v2293 = vadd.f32 %v2245, %v2285
        %v2294 = vadd.f32 %v2246, %v2273
        %v2295 = vadd.f32 %v2247, %v2277
        %v2296 = vadd.f32 %v2248, %v2281
        %v2297 = vadd.f32 %v2249, %v2285
        %v2298 = vlaneseq
        %v2299 = vshrl.u32 %v2298, 7
        %v2300 = vadd.s32 %v2299, 8
        %v2301 = vadd.s32 %v2299, 16
        %s2302 = ssub.s32 %s315, 3
        %v2303 = vstv %s2302
        %v2304 = vadd.s32 %v2299, %v2303
        %v2305 = vadd.s32 %v2300, %v2303
        %v2306 = vadd.s32 %v2301, %v2303
        %vm2307 = vcmp.ge.s32.totalorder %v2304, 0
        %vm2308 = vcmp.ge.s32.totalorder %v2305, 0
        %vm2309 = vcmp.ge.s32.totalorder %v2306, 0
        %vm2310 = vcmp.lt.s32.totalorder %v2304, 16
        %vm2311 = vcmp.lt.s32.totalorder %v2305, 16
        %vm2312 = vcmp.lt.s32.totalorder %v2306, 16
        %vm2313 = vmand %vm2307, %vm2310
        %vm2314 = vmand %vm2308, %vm2311
        %vm2315 = vmand %vm2309, %vm2312
        %v2316 = vsel %vm2313, 1, 0
        %v2317 = vsel %vm2314, 1, 0
        %v2318 = vsel %vm2315, 1, 0
        %vm2319 = vcmp.eq.s32.totalorder %v2316, 1
        %vm2320 = vcmp.eq.s32.totalorder %v2317, 1
        %vm2321 = vcmp.eq.s32.totalorder %v2318, 1
        %v2322 = vsel %vm2319, %v2287, 0.0
        %v2323 = vsel %vm2320, %v2291, 0.0
        %v2324 = vsel %vm2321, %v2295, 0.0
        %v2325 = vpack.c.bf16 %v2323, %v2322
        %v2326 = vpack.c.bf16 %v2324, %v2324
        %v2328 = vshrl.u32 %v2325, 16
        %v2330 = vshll.u32 %v2325, 16
        %v2332 = vrot.slane %v2330, 1
        %v2333 = vor.u32 %v2328, %v2332
        %v2335 = vshll.u32 %v2326, 16
        %v2337 = vrot.slane %v2335, 1
        %v2338 = vsel %vm334, %v2333, %v2337
        %v2339 = vshrl.u32 %v2326, 16
        %v2341 = vor.u32 %v2339, %v2337
        %v2346 = vrot.slane %v2325, 1
        %v2347 = vrot.slane %v2326, 1
        %v2348 = vsel %vm352, %v2346, %v2347
        %v2351 = vrot.slane %v2328, 1
        %v2352 = vrot.slane %v2330, 2
        %v2353 = vor.u32 %v2351, %v2352
        %v2354 = vrot.slane %v2339, 1
        %v2355 = vrot.slane %v2335, 2
        %v2356 = vor.u32 %v2354, %v2355
        %v2357 = vsel %vm361, %v2353, %v2356
        %v2360 = vrot.slane %v2325, 2
        %v2361 = vrot.slane %v2326, 2
        %v2362 = vsel %vm376, %v2360, %v2361
        %v2365 = vld [vmem:[#allocation7] sm:$0xf]
        %v2366 = vld [vmem:[#allocation7 + $0x4] sm:$0xf]
        %v2367 = vld [vmem:[#allocation7 + $0x8] sm:$0xf]
        %v2368 = vld [vmem:[#allocation7 + $0xc] sm:$0xf]
        %v2369 = vld [vmem:[#allocation7 + $0x10] sm:$0xf]
        %v2370 = vld [vmem:[#allocation7 + $0x14] sm:$0xf]
        %v2371 = vld [vmem:[#allocation7 + $0x18] sm:$0xf]
        %v2372 = vld [vmem:[#allocation7 + $0x1c] sm:$0xf]
        %v2373 = vld [vmem:[#allocation7 + $0x20] sm:$0xf]
        %v2374 = vld [vmem:[#allocation7 + $0x24] sm:$0xf]
        %v2375 = vld [vmem:[#allocation7 + $0x28] sm:$0xf]
        %v2376 = vld [vmem:[#allocation7 + $0x2c] sm:$0xf]
        %v2377 = vld [vmem:[#allocation7 + $0x30] sm:$0xf]
        %v2378 = vld [vmem:[#allocation7 + $0x34] sm:$0xf]
        %v2379 = vld [vmem:[#allocation7 + $0x38] sm:$0xf]
        %v2380 = vld [vmem:[#allocation7 + $0x3c] sm:$0xf]
        %v2381 = vld [vmem:[#allocation7 + $0x40] sm:$0xf]
        %v2382 = vld [vmem:[#allocation7 + $0x44] sm:$0xf]
        %v2383 = vld [vmem:[#allocation7 + $0x48] sm:$0xf]
        %v2384 = vld [vmem:[#allocation7 + $0x4c] sm:$0xf]
        %v2385 = vld [vmem:[#allocation7 + $0x50] sm:$0xf]
        %v2386 = vld [vmem:[#allocation7 + $0x54] sm:$0xf]
        %v2387 = vld [vmem:[#allocation7 + $0x58] sm:$0xf]
        %v2388 = vld [vmem:[#allocation7 + $0x5c] sm:$0xf]
        %v2389 = vld [vmem:[#allocation7 + $0x60] sm:$0xf]
        %v2390 = vld [vmem:[#allocation7 + $0x64] sm:$0xf]
        %v2391 = vld [vmem:[#allocation7 + $0x68] sm:$0xf]
        %v2392 = vld [vmem:[#allocation7 + $0x6c] sm:$0xf]
        %v2393 = vld [vmem:[#allocation7 + $0x70] sm:$0xf]
        %v2394 = vld [vmem:[#allocation7 + $0x74] sm:$0xf]
        %v2395 = vld [vmem:[#allocation7 + $0x78] sm:$0xf]
        %v2396 = vld [vmem:[#allocation7 + $0x7c] sm:$0xf]
        %v2397 = vld [vmem:[#allocation7 + $0x80] sm:$0xf]
        %v2398 = vld [vmem:[#allocation7 + $0x84] sm:$0xf]
        %v2399 = vld [vmem:[#allocation7 + $0x88] sm:$0xf]
        %v2400 = vld [vmem:[#allocation7 + $0x8c] sm:$0xf]
        %v2401 = vld [vmem:[#allocation7 + $0x90] sm:$0xf]
        %v2402 = vld [vmem:[#allocation7 + $0x94] sm:$0xf]
        %v2403 = vld [vmem:[#allocation7 + $0x98] sm:$0xf]
        %v2404 = vld [vmem:[#allocation7 + $0x9c] sm:$0xf]
        %v2405 = vld [vmem:[#allocation7 + $0xa0] sm:$0xf]
        %v2406 = vld [vmem:[#allocation7 + $0xa4] sm:$0xf]
        %v2407 = vld [vmem:[#allocation7 + $0xa8] sm:$0xf]
        %v2408 = vld [vmem:[#allocation7 + $0xac] sm:$0xf]
        %v2409 = vld [vmem:[#allocation7 + $0xb0] sm:$0xf]
        %v2410 = vld [vmem:[#allocation7 + $0xb4] sm:$0xf]
        %v2411 = vld [vmem:[#allocation7 + $0xb8] sm:$0xf]
        %v2412 = vld [vmem:[#allocation7 + $0xbc] sm:$0xf]
        %v2413 = vld [vmem:[#allocation7 + $0xc0] sm:$0xf]
        %v2414 = vld [vmem:[#allocation7 + $0xc4] sm:$0xf]
        %v2415 = vld [vmem:[#allocation7 + $0xc8] sm:$0xf]
        %v2416 = vld [vmem:[#allocation7 + $0xcc] sm:$0xf]
        %v2417 = vld [vmem:[#allocation7 + $0xd0] sm:$0xf]
        %v2418 = vld [vmem:[#allocation7 + $0xd4] sm:$0xf]
        %v2419 = vld [vmem:[#allocation7 + $0xd8] sm:$0xf]
        %v2420 = vld [vmem:[#allocation7 + $0xdc] sm:$0xf]
        %v2421 = vld [vmem:[#allocation7 + $0xe0] sm:$0xf]
        %v2422 = vld [vmem:[#allocation7 + $0xe4] sm:$0xf]
        %v2423 = vld [vmem:[#allocation7 + $0xe8] sm:$0xf]
        %v2424 = vld [vmem:[#allocation7 + $0xec] sm:$0xf]
        %v2425 = vld [vmem:[#allocation7 + $0xf0] sm:$0xf]
        %v2426 = vld [vmem:[#allocation7 + $0xf4] sm:$0xf]
        %v2427 = vld [vmem:[#allocation7 + $0xf8] sm:$0xf]
        %v2428 = vld [vmem:[#allocation7 + $0xfc] sm:$0xf]
        %v2429 = vld [vmem:[#allocation7 + $0x100] sm:$0xf]
        %v2430 = vld [vmem:[#allocation7 + $0x104] sm:$0xf]
        %v2431 = vld [vmem:[#allocation7 + $0x108] sm:$0xf]
        %v2432 = vld [vmem:[#allocation7 + $0x10c] sm:$0xf]
        %v2433 = vld [vmem:[#allocation7 + $0x110] sm:$0xf]
        %v2434 = vld [vmem:[#allocation7 + $0x114] sm:$0xf]
        %v2435 = vld [vmem:[#allocation7 + $0x118] sm:$0xf]
        %v2436 = vld [vmem:[#allocation7 + $0x11c] sm:$0xf]
        %v2437 = vld [vmem:[#allocation7 + $0x120] sm:$0xf]
        %v2438 = vld [vmem:[#allocation7 + $0x124] sm:$0xf]
        %v2439 = vld [vmem:[#allocation7 + $0x128] sm:$0xf]
        %v2440 = vld [vmem:[#allocation7 + $0x12c] sm:$0xf]
        %v2441 = vld [vmem:[#allocation7 + $0x130] sm:$0xf]
        %v2442 = vld [vmem:[#allocation7 + $0x134] sm:$0xf]
        %v2443 = vld [vmem:[#allocation7 + $0x138] sm:$0xf]
        %v2444 = vld [vmem:[#allocation7 + $0x13c] sm:$0xf]
        %v2445 = vld [vmem:[#allocation10 + $0x10] sm:$0x7]
        %v2446 = vlaneseq
        %v2447 = vshrl.u32 %v2446, 7
        %v2448 = vsub.s32 0, %v2447
        %v2449 = vrot.slane %v2445, %v2448
        %v2530 = vunpack.c.l.b16 %v2365
        %v2531 = vunpack.c.l.b16 %v2366
        %v2532 = vunpack.c.l.b16 %v2367
        %v2533 = vunpack.c.l.b16 %v2368
        %v2534 = vunpack.c.l.b16 %v2369
        %v2535 = vunpack.c.l.b16 %v2370
        %v2536 = vunpack.c.l.b16 %v2371
        %v2537 = vunpack.c.l.b16 %v2372
        %v2538 = vunpack.c.l.b16 %v2373
        %v2539 = vunpack.c.l.b16 %v2374
        %v2540 = vunpack.c.l.b16 %v2375
        %v2541 = vunpack.c.l.b16 %v2376
        %v2542 = vunpack.c.l.b16 %v2377
        %v2543 = vunpack.c.l.b16 %v2378
        %v2544 = vunpack.c.l.b16 %v2379
        %v2545 = vunpack.c.l.b16 %v2380
        %v2546 = vunpack.c.l.b16 %v2381
        %v2547 = vunpack.c.l.b16 %v2382
        %v2548 = vunpack.c.l.b16 %v2383
        %v2549 = vunpack.c.l.b16 %v2384
        %v2550 = vunpack.c.l.b16 %v2385
        %v2551 = vunpack.c.l.b16 %v2386
        %v2552 = vunpack.c.l.b16 %v2387
        %v2553 = vunpack.c.l.b16 %v2388
        %v2554 = vunpack.c.l.b16 %v2389
        %v2555 = vunpack.c.l.b16 %v2390
        %v2556 = vunpack.c.l.b16 %v2391
        %v2557 = vunpack.c.l.b16 %v2392
        %v2558 = vunpack.c.l.b16 %v2393
        %v2559 = vunpack.c.l.b16 %v2394
        %v2560 = vunpack.c.l.b16 %v2395
        %v2561 = vunpack.c.l.b16 %v2396
        %v2562 = vunpack.c.l.b16 %v2397
        %v2563 = vunpack.c.l.b16 %v2398
        %v2564 = vunpack.c.l.b16 %v2399
        %v2565 = vunpack.c.l.b16 %v2400
        %v2566 = vunpack.c.l.b16 %v2401
        %v2567 = vunpack.c.l.b16 %v2402
        %v2568 = vunpack.c.l.b16 %v2403
        %v2569 = vunpack.c.l.b16 %v2404
        %v2570 = vunpack.c.l.b16 %v2405
        %v2571 = vunpack.c.l.b16 %v2406
        %v2572 = vunpack.c.l.b16 %v2407
        %v2573 = vunpack.c.l.b16 %v2408
        %v2574 = vunpack.c.l.b16 %v2409
        %v2575 = vunpack.c.l.b16 %v2410
        %v2576 = vunpack.c.l.b16 %v2411
        %v2577 = vunpack.c.l.b16 %v2412
        %v2578 = vunpack.c.l.b16 %v2413
        %v2579 = vunpack.c.l.b16 %v2414
        %v2580 = vunpack.c.l.b16 %v2415
        %v2581 = vunpack.c.l.b16 %v2416
        %v2582 = vunpack.c.l.b16 %v2417
        %v2583 = vunpack.c.l.b16 %v2418
        %v2584 = vunpack.c.l.b16 %v2419
        %v2585 = vunpack.c.l.b16 %v2420
        %v2586 = vunpack.c.l.b16 %v2421
        %v2587 = vunpack.c.l.b16 %v2422
        %v2588 = vunpack.c.l.b16 %v2423
        %v2589 = vunpack.c.l.b16 %v2424
        %v2590 = vunpack.c.l.b16 %v2425
        %v2591 = vunpack.c.l.b16 %v2426
        %v2592 = vunpack.c.l.b16 %v2427
        %v2593 = vunpack.c.l.b16 %v2428
        %v2594 = vunpack.c.l.b16 %v2429
        %v2595 = vunpack.c.l.b16 %v2430
        %v2596 = vunpack.c.l.b16 %v2431
        %v2597 = vunpack.c.l.b16 %v2432
        %v2598 = vunpack.c.l.b16 %v2433
        %v2599 = vunpack.c.l.b16 %v2434
        %v2600 = vunpack.c.l.b16 %v2435
        %v2601 = vunpack.c.l.b16 %v2436
        %v2602 = vunpack.c.l.b16 %v2437
        %v2603 = vunpack.c.l.b16 %v2438
        %v2604 = vunpack.c.l.b16 %v2439
        %v2605 = vunpack.c.l.b16 %v2440
        %v2606 = vunpack.c.l.b16 %v2441
        %v2607 = vunpack.c.l.b16 %v2442
        %v2608 = vunpack.c.l.b16 %v2443
        %v2609 = vunpack.c.l.b16 %v2444
        %v2610 = vpack.c.b16 %v2531, %v2530
        %v2611 = vpack.c.b16 %v2533, %v2532
        %v2612 = vpack.c.b16 %v2535, %v2534
        %v2613 = vpack.c.b16 %v2537, %v2536
        %v2614 = vpack.c.b16 %v2539, %v2538
        %v2615 = vpack.c.b16 %v2541, %v2540
        %v2616 = vpack.c.b16 %v2543, %v2542
        %v2617 = vpack.c.b16 %v2545, %v2544
        %v2618 = vpack.c.b16 %v2547, %v2546
        %v2619 = vpack.c.b16 %v2549, %v2548
        %v2620 = vpack.c.b16 %v2551, %v2550
        %v2621 = vpack.c.b16 %v2553, %v2552
        %v2622 = vpack.c.b16 %v2555, %v2554
        %v2623 = vpack.c.b16 %v2557, %v2556
        %v2624 = vpack.c.b16 %v2559, %v2558
        %v2625 = vpack.c.b16 %v2561, %v2560
        %v2626 = vpack.c.b16 %v2563, %v2562
        %v2627 = vpack.c.b16 %v2565, %v2564
        %v2628 = vpack.c.b16 %v2567, %v2566
        %v2629 = vpack.c.b16 %v2569, %v2568
        %v2630 = vpack.c.b16 %v2571, %v2570
        %v2631 = vpack.c.b16 %v2573, %v2572
        %v2632 = vpack.c.b16 %v2575, %v2574
        %v2633 = vpack.c.b16 %v2577, %v2576
        %v2634 = vpack.c.b16 %v2579, %v2578
        %v2635 = vpack.c.b16 %v2581, %v2580
        %v2636 = vpack.c.b16 %v2583, %v2582
        %v2637 = vpack.c.b16 %v2585, %v2584
        %v2638 = vpack.c.b16 %v2587, %v2586
        %v2639 = vpack.c.b16 %v2589, %v2588
        %v2640 = vpack.c.b16 %v2591, %v2590
        %v2641 = vpack.c.b16 %v2593, %v2592
        %v2642 = vpack.c.b16 %v2595, %v2594
        %v2643 = vpack.c.b16 %v2597, %v2596
        %v2644 = vpack.c.b16 %v2599, %v2598
        %v2645 = vpack.c.b16 %v2601, %v2600
        %v2646 = vpack.c.b16 %v2603, %v2602
        %v2647 = vpack.c.b16 %v2605, %v2604
        %v2648 = vpack.c.b16 %v2607, %v2606
        %v2649 = vpack.c.b16 %v2609, %v2608
        %2690 = vmatprep.subr.bf16.mxu0 0
        %2691 = vmatpush1.bf16.msra.mxu0 %v2610
        %2692 = vmatprep.subr.bf16.mxu0 0
        %2693 = vmatpush1.bf16.msra.mxu0 %v2611
        %2694 = vmatprep.subr.bf16.mxu0 0
        %2695 = vmatpush1.bf16.msra.mxu0 %v2612
        %2696 = vmatprep.subr.bf16.mxu0 0
        %2697 = vmatpush1.bf16.msra.mxu0 %v2613
        %2698 = vmatprep.subr.bf16.mxu0 0
        %2699 = vmatpush1.bf16.msra.mxu0 %v2614
        %2700 = vmatprep.subr.bf16.mxu0 0
        %2701 = vmatpush1.bf16.msra.mxu0 %v2615
        %2702 = vmatprep.subr.bf16.mxu0 0
        %2703 = vmatpush1.bf16.msra.mxu0 %v2616
        %2704 = vmatprep.subr.bf16.mxu0 0
        %2705 = vmatpush1.bf16.msra.mxu0 %v2617
        %2706 = vmatprep.subr.bf16.mxu0 0
        %2707 = vmatpush1.bf16.msra.mxu0 %v2618
        %2708 = vmatprep.subr.bf16.mxu0 0
        %2709 = vmatpush1.bf16.msra.mxu0 %v2619
        %2710 = vmatprep.subr.bf16.mxu0 0
        %2711 = vmatpush1.bf16.msra.mxu0 %v2620
        %2712 = vmatprep.subr.bf16.mxu0 0
        %2713 = vmatpush1.bf16.msra.mxu0 %v2621
        %2714 = vmatprep.subr.bf16.mxu0 0
        %2715 = vmatpush1.bf16.msra.mxu0 %v2622
        %2716 = vmatprep.subr.bf16.mxu0 0
        %2717 = vmatpush1.bf16.msra.mxu0 %v2623
        %2718 = vmatprep.subr.bf16.mxu0 0
        %2719 = vmatpush1.bf16.msra.mxu0 %v2624
        %2720 = vmatprep.subr.bf16.mxu0 0
        %2721 = vmatpush1.bf16.msra.mxu0 %v2625
        %2722 = vmatprep.mubr.bf16.mxu0 %v2338
        %2723 = vmatmul.mubr.bf16.gmra.mrb[0].mxu0 %v2325
        %v2724 = vpop.f32.mrb[0].mxu0
        %v2725 = vadd.f32 %v2449, %v2724
        %v2726 = vpop.f32.mrb[0].mxu0
        %v2727 = vpop.f32.mrb[0].mxu0
        %v2728 = vadd.f32 %v2449, %v2727
        %v2729 = vpop.f32.mrb[0].mxu0
        %2730 = vmatprep.mubr.bf16.mxu0 %v2341
        %2731 = vmatmul.mubr.bf16.gmra.mrb[0].mxu0 %v2326
        %v2732 = vpop.f32.mrb[0].mxu0
        %v2733 = vadd.f32 %v2449, %v2732
        %v2734 = vpop.f32.mrb[0].mxu0
        %v2735 = vpop.f32.mrb[0].mxu0
        %v2736 = vpop.f32.mrb[0].mxu0
        %2737 = vdwg.mxu0
        %2738 = vmatprep.subr.bf16.mxu0 0
        %2739 = vmatpush1.bf16.msra.mxu0 %v2626
        %2740 = vmatprep.subr.bf16.mxu0 0
        %2741 = vmatpush1.bf16.msra.mxu0 %v2627
        %2742 = vmatprep.subr.bf16.mxu0 0
        %2743 = vmatpush1.bf16.msra.mxu0 %v2628
        %2744 = vmatprep.subr.bf16.mxu0 0
        %2745 = vmatpush1.bf16.msra.mxu0 %v2629
        %2746 = vmatprep.subr.bf16.mxu0 0
        %2747 = vmatpush1.bf16.msra.mxu0 %v2630
        %2748 = vmatprep.subr.bf16.mxu0 0
        %2749 = vmatpush1.bf16.msra.mxu0 %v2631
        %2750 = vmatprep.subr.bf16.mxu0 0
        %2751 = vmatpush1.bf16.msra.mxu0 %v2632
        %2752 = vmatprep.subr.bf16.mxu0 0
        %2753 = vmatpush1.bf16.msra.mxu0 %v2633
        %2754 = vmatprep.subr.bf16.mxu0 0
        %2755 = vmatpush1.bf16.msra.mxu0 %v2634
        %2756 = vmatprep.subr.bf16.mxu0 0
        %2757 = vmatpush1.bf16.msra.mxu0 %v2635
        %2758 = vmatprep.subr.bf16.mxu0 0
        %2759 = vmatpush1.bf16.msra.mxu0 %v2636
        %2760 = vmatprep.subr.bf16.mxu0 0
        %2761 = vmatpush1.bf16.msra.mxu0 %v2637
        %2762 = vmatprep.subr.bf16.mxu0 0
        %2763 = vmatpush1.bf16.msra.mxu0 %v2638
        %2764 = vmatprep.subr.bf16.mxu0 0
        %2765 = vmatpush1.bf16.msra.mxu0 %v2639
        %2766 = vmatprep.subr.bf16.mxu0 0
        %2767 = vmatpush1.bf16.msra.mxu0 %v2640
        %2768 = vmatprep.subr.bf16.mxu0 0
        %2769 = vmatpush1.bf16.msra.mxu0 %v2641
        %2770 = vmatprep.mubr.bf16.mxu0 %v2357
        %2771 = vmatmul.mubr.bf16.gmra.mrb[0].mxu0 %v2348
        %v2772 = vpop.f32.mrb[0].mxu0
        %v2773 = vadd.f32 %v2725, %v2772
        %v2774 = vpop.f32.mrb[0].mxu0
        %v2775 = vpop.f32.mrb[0].mxu0
        %v2776 = vadd.f32 %v2728, %v2775
        %v2777 = vpop.f32.mrb[0].mxu0
        %2778 = vmatprep.mubr.bf16.mxu0 %v2356
        %2779 = vmatmul.mubr.bf16.gmra.mrb[0].mxu0 %v2347
        %v2780 = vpop.f32.mrb[0].mxu0
        %v2781 = vadd.f32 %v2733, %v2780
        %v2782 = vpop.f32.mrb[0].mxu0
        %v2783 = vpop.f32.mrb[0].mxu0
        %v2784 = vpop.f32.mrb[0].mxu0
        %2785 = vdwg.mxu0
        %2786 = vmatprep.subr.bf16.mxu0 0
        %2787 = vmatpush1.bf16.msra.mxu0 %v2642
        %2788 = vmatprep.subr.bf16.mxu0 0
        %2789 = vmatpush1.bf16.msra.mxu0 %v2643
        %2790 = vmatprep.subr.bf16.mxu0 0
        %2791 = vmatpush1.bf16.msra.mxu0 %v2644
        %2792 = vmatprep.subr.bf16.mxu0 0
        %2793 = vmatpush1.bf16.msra.mxu0 %v2645
        %2794 = vmatprep.subr.bf16.mxu0 0
        %2795 = vmatpush1.bf16.msra.mxu0 %v2646
        %2796 = vmatprep.subr.bf16.mxu0 0
        %2797 = vmatpush1.bf16.msra.mxu0 %v2647
        %2798 = vmatprep.subr.bf16.mxu0 0
        %2799 = vmatpush1.bf16.msra.mxu0 %v2648
        %2800 = vmatprep.subr.bf16.mxu0 0
        %2801 = vmatpush1.bf16.msra.mxu0 %v2649
        %2802 = vmatprep.subr.bf16.mxu0 0
        %2803 = vmatpush1.bf16.msra.mxu0 0
        %2804 = vmatprep.subr.bf16.mxu0 0
        %2805 = vmatpush1.bf16.msra.mxu0 0
        %2806 = vmatprep.subr.bf16.mxu0 0
        %2807 = vmatpush1.bf16.msra.mxu0 0
        %2808 = vmatprep.subr.bf16.mxu0 0
        %2809 = vmatpush1.bf16.msra.mxu0 0
        %2810 = vmatprep.subr.bf16.mxu0 0
        %2811 = vmatpush1.bf16.msra.mxu0 0
        %2812 = vmatprep.subr.bf16.mxu0 0
        %2813 = vmatpush1.bf16.msra.mxu0 0
        %2814 = vmatprep.subr.bf16.mxu0 0
        %2815 = vmatpush1.bf16.msra.mxu0 0
        %2816 = vmatprep.subr.bf16.mxu0 0
        %2817 = vmatpush1.bf16.msra.mxu0 0
        %2818 = vmatprep.mubr.bf16.mxu0 0
        %2819 = vmatmul.mubr.bf16.gmra.mrb[0].mxu0 %v2362
        %v2820 = vpop.f32.mrb[0].mxu0
        %v2821 = vadd.f32 %v2773, %v2820
        %v2822 = vpop.f32.mrb[0].mxu0
        %v2823 = vpop.f32.mrb[0].mxu0
        %v2824 = vadd.f32 %v2776, %v2823
        %v2825 = vpop.f32.mrb[0].mxu0
        %2826 = vmatprep.mubr.bf16.mxu0 0
        %2827 = vmatmul.mubr.bf16.gmra.mrb[0].mxu0 %v2361
        %v2828 = vpop.f32.mrb[0].mxu0
        %v2829 = vadd.f32 %v2781, %v2828
        %v2830 = vpop.f32.mrb[0].mxu0
        %v2831 = vpop.f32.mrb[0].mxu0
        %v2832 = vpop.f32.mrb[0].mxu0
        %2833 = vdwg.mxu0
        %v2834 = vmax.f32 %v2821, 0.0
        %v2835 = vmax.f32 %v2824, 0.0
        %v2836 = vmax.f32 %v2829, 0.0
        %v2837 = vlaneseq
        %v2838 = vshrl.u32 %v2837, 7
        %v2839 = vsub.s32 1, %v2838
        %v2840 = vrot.slane %v2445, %v2839
        %v2841 = vmul.f32 %v2834, %v2840
        %v2842 = vmul.f32 %v2835, %v2840
        %v2843 = vmul.f32 %v2836, %v2840
        %v2844 = vlaneseq
        %v2845 = vshrl.u32 %v2844, 7
        %v2846 = vsub.s32 2, %v2845
        %v2847 = vrot.slane %v2445, %v2846
        %v2848 = vadd.f32 %v2841, %v2847
        %v2849 = vadd.f32 %v2842, %v2847
        %v2850 = vadd.f32 %v2843, %v2847
        %s2851 = ssub.s32 %s315, 1
        %v2852 = vstv %s2851
        %v2853 = vadd.s32 %v2299, %v2852
        %v2854 = vadd.s32 %v2300, %v2852
        %v2855 = vadd.s32 %v2301, %v2852
        %vm2856 = vcmp.ge.s32.totalorder %v2853, 0
        %vm2857 = vcmp.ge.s32.totalorder %v2854, 0
        %vm2858 = vcmp.ge.s32.totalorder %v2855, 0
        %vm2859 = vcmp.lt.s32.totalorder %v2853, 16
        %vm2860 = vcmp.lt.s32.totalorder %v2854, 16
        %vm2861 = vcmp.lt.s32.totalorder %v2855, 16
        %vm2862 = vmand %vm2856, %vm2859
        %vm2863 = vmand %vm2857, %vm2860
        %vm2864 = vmand %vm2858, %vm2861
        %vm2868 = vcmask 1041408
        %v2869 = vrot.slane %v2848, 6
        %v2870 = vrot.slane %v2849, 6
        %v2871 = vsel %vm2868, %v2869, %v2870
        %v2872 = vrot.slane %v2850, 6
        %v2873 = vsel %vm2868, %v2870, %v2872
        %v2877 = vadd.f32 %v2286, %v2869
        %v2878 = vadd.f32 %v2290, %v2871
        %v2879 = vadd.f32 %v2294, %v2873
        %v2880 = vsel %vm2862, 1, 0
        %v2881 = vsel %vm2863, 1, 0
        %v2882 = vsel %vm2864, 1, 0
        %vm2883 = vcmp.eq.s32.totalorder %v2880, 1
        %vm2884 = vcmp.eq.s32.totalorder %v2881, 1
        %vm2885 = vcmp.eq.s32.totalorder %v2882, 1
        %vm2889 = vcmask 1045504
        %v2890 = vrot.slane %v2877, 2
        %v2891 = vrot.slane %v2878, 2
        %v2892 = vsel %vm2889, %v2890, %v2891
        %v2893 = vrot.slane %v2879, 2
        %v2894 = vsel %vm2889, %v2891, %v2893
        %v2898 = vsel %vm2883, %v2892, 0.0
        %v2899 = vsel %vm2884, %v2894, 0.0
        %v2900 = vsel %vm2885, %v2893, 0.0
        %v2901 = vpack.c.bf16 %v2899, %v2898
        %v2902 = vpack.c.bf16 %v2900, %v2900
        %v2903 = vadd.f32 %v2288, %v2289
        %v2904 = vadd.f32 %v2292, %v2293
        %v2905 = vadd.f32 %v2296, %v2297
        %v2909 = vrot.slane %v2903, 2
        %v2910 = vrot.slane %v2904, 2
        %v2911 = vsel %vm2889, %v2909, %v2910
        %v2912 = vrot.slane %v2905, 2
        %v2913 = vsel %vm2889, %v2910, %v2912
        %v2917 = vsel %vm2883, %v2911, 0.0
        %v2918 = vsel %vm2884, %v2913, 0.0
        %v2919 = vsel %vm2885, %v2912, 0.0
        %v2920 = vpack.c.bf16 %v2918, %v2917
        %v2921 = vpack.c.bf16 %v2919, %v2919
        %v2923 = vshrl.u32 %v2901, 16
        %v2925 = vshll.u32 %v2901, 16
        %v2927 = vrot.slane %v2925, 1
        %v2928 = vor.u32 %v2923, %v2927
        %v2930 = vshll.u32 %v2902, 16
        %v2932 = vrot.slane %v2930, 1
        %v2933 = vsel %vm334, %v2928, %v2932
        %v2936 = vshrl.u32 %v2920, 16
        %v2938 = vshll.u32 %v2920, 16
        %v2940 = vrot.slane %v2938, 1
        %v2941 = vor.u32 %v2936, %v2940
        %v2943 = vshll.u32 %v2921, 16
        %v2945 = vrot.slane %v2943, 1
        %v2946 = vsel %vm334, %v2941, %v2945
        %v2950 = vrot.slane %v2901, 1
        %v2951 = vrot.slane %v2902, 1
        %v2952 = vsel %vm352, %v2950, %v2951
        %v2956 = vrot.slane %v2920, 1
        %v2957 = vrot.slane %v2921, 1
        %v2958 = vsel %vm352, %v2956, %v2957
        %v2960 = vld [vmem:[#allocation8] sm:$0xf]
        %v2961 = vld [vmem:[#allocation8 + $0x4] sm:$0xf]
        %v2962 = vld [vmem:[#allocation8 + $0x8] sm:$0xf]
        %v2963 = vld [vmem:[#allocation8 + $0xc] sm:$0xf]
        %v2964 = vld [vmem:[#allocation8 + $0x10] sm:$0xf]
        %v2965 = vld [vmem:[#allocation8 + $0x14] sm:$0xf]
        %v2966 = vld [vmem:[#allocation8 + $0x18] sm:$0xf]
        %v2967 = vld [vmem:[#allocation8 + $0x1c] sm:$0xf]
        %v2968 = vld [vmem:[#allocation8 + $0x20] sm:$0xf]
        %v2969 = vld [vmem:[#allocation8 + $0x24] sm:$0xf]
        %v2970 = vld [vmem:[#allocation8 + $0x28] sm:$0xf]
        %v2971 = vld [vmem:[#allocation8 + $0x2c] sm:$0xf]
        %v2972 = vld [vmem:[#allocation8 + $0x30] sm:$0xf]
        %v2973 = vld [vmem:[#allocation8 + $0x34] sm:$0xf]
        %v2974 = vld [vmem:[#allocation8 + $0x38] sm:$0xf]
        %v2975 = vld [vmem:[#allocation8 + $0x3c] sm:$0xf]
        %v2976 = vld [vmem:[#allocation8 + $0x40] sm:$0xf]
        %v2977 = vld [vmem:[#allocation8 + $0x44] sm:$0xf]
        %v2978 = vld [vmem:[#allocation8 + $0x48] sm:$0xf]
        %v2979 = vld [vmem:[#allocation8 + $0x4c] sm:$0xf]
        %v2980 = vld [vmem:[#allocation8 + $0x50] sm:$0xf]
        %v2981 = vld [vmem:[#allocation8 + $0x54] sm:$0xf]
        %v2982 = vld [vmem:[#allocation8 + $0x58] sm:$0xf]
        %v2983 = vld [vmem:[#allocation8 + $0x5c] sm:$0xf]
        %v2984 = vld [vmem:[#allocation8 + $0x60] sm:$0xf]
        %v2985 = vld [vmem:[#allocation8 + $0x64] sm:$0xf]
        %v2986 = vld [vmem:[#allocation8 + $0x68] sm:$0xf]
        %v2987 = vld [vmem:[#allocation8 + $0x6c] sm:$0xf]
        %v2988 = vld [vmem:[#allocation8 + $0x70] sm:$0xf]
        %v2989 = vld [vmem:[#allocation8 + $0x74] sm:$0xf]
        %v2990 = vld [vmem:[#allocation8 + $0x78] sm:$0xf]
        %v2991 = vld [vmem:[#allocation8 + $0x7c] sm:$0xf]
        %v2992 = vld [vmem:[#allocation8 + $0x80] sm:$0xf]
        %v2993 = vld [vmem:[#allocation8 + $0x84] sm:$0xf]
        %v2994 = vld [vmem:[#allocation8 + $0x88] sm:$0xf]
        %v2995 = vld [vmem:[#allocation8 + $0x8c] sm:$0xf]
        %v2996 = vld [vmem:[#allocation8 + $0x90] sm:$0xf]
        %v2997 = vld [vmem:[#allocation8 + $0x94] sm:$0xf]
        %v2998 = vld [vmem:[#allocation8 + $0x98] sm:$0xf]
        %v2999 = vld [vmem:[#allocation8 + $0x9c] sm:$0xf]
        %v3000 = vld [vmem:[#allocation8 + $0xa0] sm:$0xf]
        %v3001 = vld [vmem:[#allocation8 + $0xa4] sm:$0xf]
        %v3002 = vld [vmem:[#allocation8 + $0xa8] sm:$0xf]
        %v3003 = vld [vmem:[#allocation8 + $0xac] sm:$0xf]
        %v3004 = vld [vmem:[#allocation8 + $0xb0] sm:$0xf]
        %v3005 = vld [vmem:[#allocation8 + $0xb4] sm:$0xf]
        %v3006 = vld [vmem:[#allocation8 + $0xb8] sm:$0xf]
        %v3007 = vld [vmem:[#allocation8 + $0xbc] sm:$0xf]
        %v3008 = vld [vmem:[#allocation8 + $0xc0] sm:$0xf]
        %v3009 = vld [vmem:[#allocation8 + $0xc4] sm:$0xf]
        %v3010 = vld [vmem:[#allocation8 + $0xc8] sm:$0xf]
        %v3011 = vld [vmem:[#allocation8 + $0xcc] sm:$0xf]
        %v3012 = vld [vmem:[#allocation8 + $0xd0] sm:$0xf]
        %v3013 = vld [vmem:[#allocation8 + $0xd4] sm:$0xf]
        %v3014 = vld [vmem:[#allocation8 + $0xd8] sm:$0xf]
        %v3015 = vld [vmem:[#allocation8 + $0xdc] sm:$0xf]
        %v3016 = vld [vmem:[#allocation8 + $0xe0] sm:$0xf]
        %v3017 = vld [vmem:[#allocation8 + $0xe4] sm:$0xf]
        %v3018 = vld [vmem:[#allocation8 + $0xe8] sm:$0xf]
        %v3019 = vld [vmem:[#allocation8 + $0xec] sm:$0xf]
        %v3020 = vld [vmem:[#allocation8 + $0xf0] sm:$0xf]
        %v3021 = vld [vmem:[#allocation8 + $0xf4] sm:$0xf]
        %v3022 = vld [vmem:[#allocation8 + $0xf8] sm:$0xf]
        %v3023 = vld [vmem:[#allocation8 + $0xfc] sm:$0xf]
        %v3024 = vld [vmem:[#allocation8 + $0x100] sm:$0xf]
        %v3025 = vld [vmem:[#allocation8 + $0x104] sm:$0xf]
        %v3026 = vld [vmem:[#allocation8 + $0x108] sm:$0xf]
        %v3027 = vld [vmem:[#allocation8 + $0x10c] sm:$0xf]
        %v3028 = vld [vmem:[#allocation8 + $0x110] sm:$0xf]
        %v3029 = vld [vmem:[#allocation8 + $0x114] sm:$0xf]
        %v3030 = vld [vmem:[#allocation8 + $0x118] sm:$0xf]
        %v3031 = vld [vmem:[#allocation8 + $0x11c] sm:$0xf]
        %v3032 = vld [vmem:[#allocation8 + $0x120] sm:$0xf]
        %v3033 = vld [vmem:[#allocation8 + $0x124] sm:$0xf]
        %v3034 = vld [vmem:[#allocation8 + $0x128] sm:$0xf]
        %v3035 = vld [vmem:[#allocation8 + $0x12c] sm:$0xf]
        %v3036 = vld [vmem:[#allocation8 + $0x130] sm:$0xf]
        %v3037 = vld [vmem:[#allocation8 + $0x134] sm:$0xf]
        %v3038 = vld [vmem:[#allocation8 + $0x138] sm:$0xf]
        %v3039 = vld [vmem:[#allocation8 + $0x13c] sm:$0xf]
        %v3040 = vld [vmem:[#allocation8 + $0x140] sm:$0xf]
        %v3041 = vld [vmem:[#allocation8 + $0x144] sm:$0xf]
        %v3042 = vld [vmem:[#allocation8 + $0x148] sm:$0xf]
        %v3043 = vld [vmem:[#allocation8 + $0x14c] sm:$0xf]
        %v3044 = vld [vmem:[#allocation8 + $0x150] sm:$0xf]
        %v3045 = vld [vmem:[#allocation8 + $0x154] sm:$0xf]
        %v3046 = vld [vmem:[#allocation8 + $0x158] sm:$0xf]
        %v3047 = vld [vmem:[#allocation8 + $0x15c] sm:$0xf]
        %v3048 = vld [vmem:[#allocation8 + $0x160] sm:$0xf]
        %v3049 = vld [vmem:[#allocation8 + $0x164] sm:$0xf]
        %v3050 = vld [vmem:[#allocation8 + $0x168] sm:$0xf]
        %v3051 = vld [vmem:[#allocation8 + $0x16c] sm:$0xf]
        %v3052 = vld [vmem:[#allocation8 + $0x170] sm:$0xf]
        %v3053 = vld [vmem:[#allocation8 + $0x174] sm:$0xf]
        %v3054 = vld [vmem:[#allocation8 + $0x178] sm:$0xf]
        %v3055 = vld [vmem:[#allocation8 + $0x17c] sm:$0xf]
        %v3056 = vld [vmem:[#allocation10 + $0x14] sm:$0x7]
        %v3057 = vlaneseq
        %v3058 = vshrl.u32 %v3057, 7
        %v3059 = vsub.s32 0, %v3058
        %v3060 = vrot.slane %v3056, %v3059
        %v3157 = vunpack.c.l.b16 %v2960
        %v3158 = vunpack.c.l.b16 %v2961
        %v3159 = vunpack.c.l.b16 %v2962
        %v3160 = vunpack.c.l.b16 %v2963
        %v3161 = vunpack.c.l.b16 %v2964
        %v3162 = vunpack.c.l.b16 %v2965
        %v3163 = vunpack.c.l.b16 %v2966
        %v3164 = vunpack.c.l.b16 %v2967
        %v3165 = vunpack.c.l.b16 %v2968
        %v3166 = vunpack.c.l.b16 %v2969
        %v3167 = vunpack.c.l.b16 %v2970
        %v3168 = vunpack.c.l.b16 %v2971
        %v3169 = vunpack.c.l.b16 %v2972
        %v3170 = vunpack.c.l.b16 %v2973
        %v3171 = vunpack.c.l.b16 %v2974
        %v3172 = vunpack.c.l.b16 %v2975
        %v3173 = vunpack.c.l.b16 %v2976
        %v3174 = vunpack.c.l.b16 %v2977
        %v3175 = vunpack.c.l.b16 %v2978
        %v3176 = vunpack.c.l.b16 %v2979
        %v3177 = vunpack.c.l.b16 %v2980
        %v3178 = vunpack.c.l.b16 %v2981
        %v3179 = vunpack.c.l.b16 %v2982
        %v3180 = vunpack.c.l.b16 %v2983
        %v3181 = vunpack.c.l.b16 %v2984
        %v3182 = vunpack.c.l.b16 %v2985
        %v3183 = vunpack.c.l.b16 %v2986
        %v3184 = vunpack.c.l.b16 %v2987
        %v3185 = vunpack.c.l.b16 %v2988
        %v3186 = vunpack.c.l.b16 %v2989
        %v3187 = vunpack.c.l.b16 %v2990
        %v3188 = vunpack.c.l.b16 %v2991
        %v3189 = vunpack.c.l.b16 %v2992
        %v3190 = vunpack.c.l.b16 %v2993
        %v3191 = vunpack.c.l.b16 %v2994
        %v3192 = vunpack.c.l.b16 %v2995
        %v3193 = vunpack.c.l.b16 %v2996
        %v3194 = vunpack.c.l.b16 %v2997
        %v3195 = vunpack.c.l.b16 %v2998
        %v3196 = vunpack.c.l.b16 %v2999
        %v3197 = vunpack.c.l.b16 %v3000
        %v3198 = vunpack.c.l.b16 %v3001
        %v3199 = vunpack.c.l.b16 %v3002
        %v3200 = vunpack.c.l.b16 %v3003
        %v3201 = vunpack.c.l.b16 %v3004
        %v3202 = vunpack.c.l.b16 %v3005
        %v3203 = vunpack.c.l.b16 %v3006
        %v3204 = vunpack.c.l.b16 %v3007
        %v3205 = vunpack.c.l.b16 %v3008
        %v3206 = vunpack.c.l.b16 %v3009
        %v3207 = vunpack.c.l.b16 %v3010
        %v3208 = vunpack.c.l.b16 %v3011
        %v3209 = vunpack.c.l.b16 %v3012
        %v3210 = vunpack.c.l.b16 %v3013
        %v3211 = vunpack.c.l.b16 %v3014
        %v3212 = vunpack.c.l.b16 %v3015
        %v3213 = vunpack.c.l.b16 %v3016
        %v3214 = vunpack.c.l.b16 %v3017
        %v3215 = vunpack.c.l.b16 %v3018
        %v3216 = vunpack.c.l.b16 %v3019
        %v3217 = vunpack.c.l.b16 %v3020
        %v3218 = vunpack.c.l.b16 %v3021
        %v3219 = vunpack.c.l.b16 %v3022
        %v3220 = vunpack.c.l.b16 %v3023
        %v3221 = vunpack.c.l.b16 %v3024
        %v3222 = vunpack.c.l.b16 %v3025
        %v3223 = vunpack.c.l.b16 %v3026
        %v3224 = vunpack.c.l.b16 %v3027
        %v3225 = vunpack.c.l.b16 %v3028
        %v3226 = vunpack.c.l.b16 %v3029
        %v3227 = vunpack.c.l.b16 %v3030
        %v3228 = vunpack.c.l.b16 %v3031
        %v3229 = vunpack.c.l.b16 %v3032
        %v3230 = vunpack.c.l.b16 %v3033
        %v3231 = vunpack.c.l.b16 %v3034
        %v3232 = vunpack.c.l.b16 %v3035
        %v3233 = vunpack.c.l.b16 %v3036
        %v3234 = vunpack.c.l.b16 %v3037
        %v3235 = vunpack.c.l.b16 %v3038
        %v3236 = vunpack.c.l.b16 %v3039
        %v3237 = vunpack.c.l.b16 %v3040
        %v3238 = vunpack.c.l.b16 %v3041
        %v3239 = vunpack.c.l.b16 %v3042
        %v3240 = vunpack.c.l.b16 %v3043
        %v3241 = vunpack.c.l.b16 %v3044
        %v3242 = vunpack.c.l.b16 %v3045
        %v3243 = vunpack.c.l.b16 %v3046
        %v3244 = vunpack.c.l.b16 %v3047
        %v3245 = vunpack.c.l.b16 %v3048
        %v3246 = vunpack.c.l.b16 %v3049
        %v3247 = vunpack.c.l.b16 %v3050
        %v3248 = vunpack.c.l.b16 %v3051
        %v3249 = vunpack.c.l.b16 %v3052
        %v3250 = vunpack.c.l.b16 %v3053
        %v3251 = vunpack.c.l.b16 %v3054
        %v3252 = vunpack.c.l.b16 %v3055
        %v3253 = vpack.c.b16 %v3158, %v3157
        %v3254 = vpack.c.b16 %v3160, %v3159
        %v3255 = vpack.c.b16 %v3162, %v3161
        %v3256 = vpack.c.b16 %v3164, %v3163
        %v3257 = vpack.c.b16 %v3166, %v3165
        %v3258 = vpack.c.b16 %v3168, %v3167
        %v3259 = vpack.c.b16 %v3170, %v3169
        %v3260 = vpack.c.b16 %v3172, %v3171
        %v3261 = vpack.c.b16 %v3174, %v3173
        %v3262 = vpack.c.b16 %v3176, %v3175
        %v3263 = vpack.c.b16 %v3178, %v3177
        %v3264 = vpack.c.b16 %v3180, %v3179
        %v3265 = vpack.c.b16 %v3182, %v3181
        %v3266 = vpack.c.b16 %v3184, %v3183
        %v3267 = vpack.c.b16 %v3186, %v3185
        %v3268 = vpack.c.b16 %v3188, %v3187
        %v3269 = vpack.c.b16 %v3190, %v3189
        %v3270 = vpack.c.b16 %v3192, %v3191
        %v3271 = vpack.c.b16 %v3194, %v3193
        %v3272 = vpack.c.b16 %v3196, %v3195
        %v3273 = vpack.c.b16 %v3198, %v3197
        %v3274 = vpack.c.b16 %v3200, %v3199
        %v3275 = vpack.c.b16 %v3202, %v3201
        %v3276 = vpack.c.b16 %v3204, %v3203
        %v3277 = vpack.c.b16 %v3206, %v3205
        %v3278 = vpack.c.b16 %v3208, %v3207
        %v3279 = vpack.c.b16 %v3210, %v3209
        %v3280 = vpack.c.b16 %v3212, %v3211
        %v3281 = vpack.c.b16 %v3214, %v3213
        %v3282 = vpack.c.b16 %v3216, %v3215
        %v3283 = vpack.c.b16 %v3218, %v3217
        %v3284 = vpack.c.b16 %v3220, %v3219
        %v3285 = vpack.c.b16 %v3222, %v3221
        %v3286 = vpack.c.b16 %v3224, %v3223
        %v3287 = vpack.c.b16 %v3226, %v3225
        %v3288 = vpack.c.b16 %v3228, %v3227
        %v3289 = vpack.c.b16 %v3230, %v3229
        %v3290 = vpack.c.b16 %v3232, %v3231
        %v3291 = vpack.c.b16 %v3234, %v3233
        %v3292 = vpack.c.b16 %v3236, %v3235
        %v3293 = vpack.c.b16 %v3238, %v3237
        %v3294 = vpack.c.b16 %v3240, %v3239
        %v3295 = vpack.c.b16 %v3242, %v3241
        %v3296 = vpack.c.b16 %v3244, %v3243
        %v3297 = vpack.c.b16 %v3246, %v3245
        %v3298 = vpack.c.b16 %v3248, %v3247
        %v3299 = vpack.c.b16 %v3250, %v3249
        %v3300 = vpack.c.b16 %v3252, %v3251
        %3349 = vmatprep.subr.bf16.mxu0 0
        %3350 = vmatpush1.bf16.msra.mxu0 %v3253
        %3351 = vmatprep.subr.bf16.mxu0 0
        %3352 = vmatpush1.bf16.msra.mxu0 %v3254
        %3353 = vmatprep.subr.bf16.mxu0 0
        %3354 = vmatpush1.bf16.msra.mxu0 %v3255
        %3355 = vmatprep.subr.bf16.mxu0 0
        %3356 = vmatpush1.bf16.msra.mxu0 %v3256
        %3357 = vmatprep.subr.bf16.mxu0 0
        %3358 = vmatpush1.bf16.msra.mxu0 %v3257
        %3359 = vmatprep.subr.bf16.mxu0 0
        %3360 = vmatpush1.bf16.msra.mxu0 %v3258
        %3361 = vmatprep.subr.bf16.mxu0 0
        %3362 = vmatpush1.bf16.msra.mxu0 %v3259
        %3363 = vmatprep.subr.bf16.mxu0 0
        %3364 = vmatpush1.bf16.msra.mxu0 %v3260
        %3365 = vmatprep.subr.bf16.mxu0 0
        %3366 = vmatpush1.bf16.msra.mxu0 %v3261
        %3367 = vmatprep.subr.bf16.mxu0 0
        %3368 = vmatpush1.bf16.msra.mxu0 %v3262
        %3369 = vmatprep.subr.bf16.mxu0 0
        %3370 = vmatpush1.bf16.msra.mxu0 %v3263
        %3371 = vmatprep.subr.bf16.mxu0 0
        %3372 = vmatpush1.bf16.msra.mxu0 %v3264
        %3373 = vmatprep.subr.bf16.mxu0 0
        %3374 = vmatpush1.bf16.msra.mxu0 %v3265
        %3375 = vmatprep.subr.bf16.mxu0 0
        %3376 = vmatpush1.bf16.msra.mxu0 %v3266
        %3377 = vmatprep.subr.bf16.mxu0 0
        %3378 = vmatpush1.bf16.msra.mxu0 %v3267
        %3379 = vmatprep.subr.bf16.mxu0 0
        %3380 = vmatpush1.bf16.msra.mxu0 %v3268
        %3381 = vmatprep.mubr.bf16.mxu0 %v2920
        %3382 = vmatmul.mubr.bf16.gmra.mrb[0].mxu0 %v2901
        %v3383 = vpop.f32.mrb[0].mxu0
        %v3384 = vadd.f32 %v3060, %v3383
        %v3385 = vpop.f32.mrb[0].mxu0
        %v3386 = vpop.f32.mrb[0].mxu0
        %v3387 = vadd.f32 %v3060, %v3386
        %v3388 = vpop.f32.mrb[0].mxu0
        %3389 = vdwg.mxu0
        %3390 = vmatprep.subr.bf16.mxu0 0
        %3391 = vmatpush1.bf16.msra.mxu0 %v3269
        %3392 = vmatprep.subr.bf16.mxu0 0
        %3393 = vmatpush1.bf16.msra.mxu0 %v3270
        %3394 = vmatprep.subr.bf16.mxu0 0
        %3395 = vmatpush1.bf16.msra.mxu0 %v3271
        %3396 = vmatprep.subr.bf16.mxu0 0
        %3397 = vmatpush1.bf16.msra.mxu0 %v3272
        %3398 = vmatprep.subr.bf16.mxu0 0
        %3399 = vmatpush1.bf16.msra.mxu0 %v3273
        %3400 = vmatprep.subr.bf16.mxu0 0
        %3401 = vmatpush1.bf16.msra.mxu0 %v3274
        %3402 = vmatprep.subr.bf16.mxu0 0
        %3403 = vmatpush1.bf16.msra.mxu0 %v3275
        %3404 = vmatprep.subr.bf16.mxu0 0
        %3405 = vmatpush1.bf16.msra.mxu0 %v3276
        %3406 = vmatprep.subr.bf16.mxu0 0
        %3407 = vmatpush1.bf16.msra.mxu0 %v3277
        %3408 = vmatprep.subr.bf16.mxu0 0
        %3409 = vmatpush1.bf16.msra.mxu0 %v3278
        %3410 = vmatprep.subr.bf16.mxu0 0
        %3411 = vmatpush1.bf16.msra.mxu0 %v3279
        %3412 = vmatprep.subr.bf16.mxu0 0
        %3413 = vmatpush1.bf16.msra.mxu0 %v3280
        %3414 = vmatprep.subr.bf16.mxu0 0
        %3415 = vmatpush1.bf16.msra.mxu0 %v3281
        %3416 = vmatprep.subr.bf16.mxu0 0
        %3417 = vmatpush1.bf16.msra.mxu0 %v3282
        %3418 = vmatprep.subr.bf16.mxu0 0
        %3419 = vmatpush1.bf16.msra.mxu0 %v3283
        %3420 = vmatprep.subr.bf16.mxu0 0
        %3421 = vmatpush1.bf16.msra.mxu0 %v3284
        %3422 = vmatprep.mubr.bf16.mxu0 %v2946
        %3423 = vmatmul.mubr.bf16.gmra.mrb[0].mxu0 %v2933
        %v3424 = vpop.f32.mrb[0].mxu0
        %v3425 = vadd.f32 %v3384, %v3424
        %v3426 = vpop.f32.mrb[0].mxu0
        %v3427 = vpop.f32.mrb[0].mxu0
        %v3428 = vadd.f32 %v3387, %v3427
        %v3429 = vpop.f32.mrb[0].mxu0
        %3430 = vdwg.mxu0
        %3431 = vmatprep.subr.bf16.mxu0 0
        %3432 = vmatpush1.bf16.msra.mxu0 %v3285
        %3433 = vmatprep.subr.bf16.mxu0 0
        %3434 = vmatpush1.bf16.msra.mxu0 %v3286
        %3435 = vmatprep.subr.bf16.mxu0 0
        %3436 = vmatpush1.bf16.msra.mxu0 %v3287
        %3437 = vmatprep.subr.bf16.mxu0 0
        %3438 = vmatpush1.bf16.msra.mxu0 %v3288
        %3439 = vmatprep.subr.bf16.mxu0 0
        %3440 = vmatpush1.bf16.msra.mxu0 %v3289
        %3441 = vmatprep.subr.bf16.mxu0 0
        %3442 = vmatpush1.bf16.msra.mxu0 %v3290
        %3443 = vmatprep.subr.bf16.mxu0 0
        %3444 = vmatpush1.bf16.msra.mxu0 %v3291
        %3445 = vmatprep.subr.bf16.mxu0 0
        %3446 = vmatpush1.bf16.msra.mxu0 %v3292
        %3447 = vmatprep.subr.bf16.mxu0 0
        %3448 = vmatpush1.bf16.msra.mxu0 %v3293
        %3449 = vmatprep.subr.bf16.mxu0 0
        %3450 = vmatpush1.bf16.msra.mxu0 %v3294
        %3451 = vmatprep.subr.bf16.mxu0 0
        %3452 = vmatpush1.bf16.msra.mxu0 %v3295
        %3453 = vmatprep.subr.bf16.mxu0 0
        %3454 = vmatpush1.bf16.msra.mxu0 %v3296
        %3455 = vmatprep.subr.bf16.mxu0 0
        %3456 = vmatpush1.bf16.msra.mxu0 %v3297
        %3457 = vmatprep.subr.bf16.mxu0 0
        %3458 = vmatpush1.bf16.msra.mxu0 %v3298
        %3459 = vmatprep.subr.bf16.mxu0 0
        %3460 = vmatpush1.bf16.msra.mxu0 %v3299
        %3461 = vmatprep.subr.bf16.mxu0 0
        %3462 = vmatpush1.bf16.msra.mxu0 %v3300
        %3463 = vmatprep.mubr.bf16.mxu0 %v2958
        %3464 = vmatmul.mubr.bf16.gmra.mrb[0].mxu0 %v2952
        %v3465 = vpop.f32.mrb[0].mxu0
        %v3466 = vadd.f32 %v3425, %v3465
        %v3467 = vpop.f32.mrb[0].mxu0
        %v3468 = vpop.f32.mrb[0].mxu0
        %v3469 = vadd.f32 %v3428, %v3468
        %v3470 = vpop.f32.mrb[0].mxu0
        %3471 = vdwg.mxu0
        %v3472 = vmax.f32 %v3466, 0.0
        %v3473 = vmax.f32 %v3469, 0.0
        %v3474 = vlaneseq
        %v3475 = vshrl.u32 %v3474, 7
        %v3476 = vsub.s32 1, %v3475
        %v3477 = vrot.slane %v3056, %v3476
        %v3478 = vmul.f32 %v3472, %v3477
        %v3479 = vmul.f32 %v3473, %v3477
        %v3480 = vlaneseq
        %v3481 = vshrl.u32 %v3480, 7
        %v3482 = vsub.s32 2, %v3481
        %v3483 = vrot.slane %v3056, %v3482
        %v3484 = vadd.f32 %v3478, %v3483
        %v3485 = vadd.f32 %v3479, %v3483
        %3486 = vst [vmem:[%s312] sm:$0xff] %v3484
        %3487 = vst [vmem:[%s312 + $0x8] sm:$0xff] %v3485
        %s3488 = sand.u32 %s156, 1
        %s3489 = scalar_lea.sflag [#allocation4], %s3488
        %s3490 = sand.u32 %s156, 1
        %s3491 = smul.addr %s3490, 16
        %s3492 = scalar_lea.vmem [#allocation11], %s3491
        // Predicated region
        $region61: #{inception_block_forward.1} parent=39 // pred_check
          %p3493 = pneg %p166
        $region62: #{inception_block_forward.1} parent=39 // pred_check_branch
          %3495 = sbr.rel (%p3493) target = $region64
        $region63: #{inception_block_forward.1} parent=39 // pred_region
          %s3496 = smul.u32 2, %s29
          %s3498 = ssub.s32 256, 256
          %3499 = vsyncadd %s3489, %s3498
          %s3500 = smul.addr %s28, 2
          %s3501 = sadd.s32 %s3496, %s3500
          %s3502 = smul.addr %s3501, 128
          %s3503 = scalar_lea.hbm %s5, %s3502
          %s3504 = sshll.u32 %s3492, 4
          %s3505 = int_to_ptr.vmem [resolvable:$true] %s3504
          %3510 = dma.vmem_to_hbm [thread:$0]  %s3505, 256, %s3503, %s3489, 128, 128, 8
        $region64: #{inception_block_forward.1} parent=39 // pred_fallthru
          _
      $region40: #{inception_block_forward.1} parent=5 // pred_fallthru
        _
      %p3511 = scmp.le.s32.totalorder 2, %s19
      // Predicated region
      $region65: #{inception_block_forward.1} parent=5 // pred_check
        %p3512 = pneg %p3511
      $region66: #{inception_block_forward.1} parent=5 // pred_check_branch
        %3514 = sbr.rel (%p3512) target = $region68
      $region67: #{inception_block_forward.1} parent=5 // pred_region
        %s3515 = ssub.s32 %s19, 2
        // Predicated region
        $region69: #{inception_block_forward.1} parent=67 // pred_check
          %p3516 = pneg %p172
        $region70: #{inception_block_forward.1} parent=67 // pred_check_branch
          %3518 = sbr.rel (%p3516) target = $region72
        $region71: #{inception_block_forward.1} parent=67 // pred_region
          %s3519 = sand.u32 %s157, 1
          %s3520 = scalar_lea.sflag [#allocation4], %s3519
          %s3521 = sand.u32 %s157, 1
          %s3522 = smul.addr %s3521, 16
          %s3523 = scalar_lea.vmem [#allocation11], %s3522
          %3524 = dma.done %s3520, 256
        $region72: #{inception_block_forward.1} parent=67 // pred_fallthru
          _
      $region68: #{inception_block_forward.1} parent=5 // pred_fallthru
        _
    $region6: #{inception_block_forward.1} parent=1 // loop_footer
      %s23 = sadd.s32 1, %s19
    $region7: #{inception_block_forward.1} parent=1 // loop_footer_branch
      %18 = sbr.rel target = $region3
    $region8: #{inception_block_forward.1} parent=1 // loop_exit
      _
    %3525 = vsyncpa [#allocation3], 1
    %s3526 = scalar_lea.sflag [#allocation3], 1
    %3527 = vsyncpa %s3526, 1
    %3528 = vsyncpa [#allocation6], 1
    %3529 = vsyncpa [#allocation9], 1
    %3530 = vsyncpa [#allocation4], 1
    %s3531 = scalar_lea.sflag [#allocation4], 1
    %3532 = vsyncpa %s3531, 1

</llo_original>
